<compile_context>
chip_gen: v7x
topology: tpu7x:2x2x1
jax: 0.10.0
libtpu: 0.0.40
codegen_flags: <defaults>
</compile_context>

<pallas_src>
import jax
import jax.numpy as jnp
from jax.experimental import pallas as pl
from jax.experimental.pallas import tpu as pltpu

Z_DIM = 2
Y_DIM = 2
ZIN_DIM = Z_DIM + Y_DIM      # 4
H_DIM = 500
X_DIM = 10000

ZIN_PAD = 128                # lane-padded concat(z, y) width
H_PAD = 512                  # 4 * 128
X_PAD = 10240                # 80 * 128
LEAKY_SLOPE = 1e-4           # matches the module's slope_param = 0.0001


def _device_is_v7x():
    try:
        kind = jax.devices()[0].device_kind.lower()
    except Exception:
        return False
    return ("v7" in kind) or ("7x" in kind)


_IS_V7X = _device_is_v7x()
# v5e/v6e: TN=5120 (grid of 2 big tiles, already ~90% of HBM roofline).
# v7x:     TN=2560 (grid of 4 -> 2 tiles per TensorCore for per-core
#          pipelining), axis marked CORE_PARALLEL to guarantee the 2-TC split.
TN = 2560 if _IS_V7X else 5120
N_J = X_PAD // TN
_DIM_SEMANTICS = (pltpu.CORE_PARALLEL,) if _IS_V7X else ("parallel",)


def decoder_kernel(zy_ref, w3_ref, b3_ref, w4q_ref, scale_ref, b4_ref, out_ref):
    # fc3 is tiny; recompute it per output tile so the grid axis has no carry
    # and stays fully parallel / core-parallel.  f32 in, f32 accumulate.
    h = (jnp.dot(zy_ref[...], w3_ref[...], preferred_element_type=jnp.float32)
         + b3_ref[...])
    h = jnp.where(h >= 0.0, h, LEAKY_SLOPE * h)              # leaky_relu(1e-4)

    # fc4 tile, weight-only int8: upcast int8 -> bf16 on the VPU (exact),
    # bf16 x bf16 on the MXU, f32 accumulation; per-output-column scale is
    # applied to the small (B_pad, TN) result instead of the weight tile.
    w_tile = w4q_ref[...].astype(jnp.bfloat16)
    acc = jnp.dot(h.astype(jnp.bfloat16), w_tile,
                  preferred_element_type=jnp.float32)
    logits = acc * scale_ref[...] + b4_ref[...]

    # sigmoid: exp on the EUP, approximate reciprocal also on the EUP
    # (frees VPU slots used by the dequant cast above).
    out_ref[...] = pl.reciprocal(1.0 + jnp.exp(-logits),
                                 approx=True).astype(out_ref.dtype)


def quantize_w4(w4):
    """Symmetric per-output-column int8 quantization of the fc4 weight.

    Returns (q, scale) with q = round(W4^T / scale) as int8 of shape
    (H_DIM, X_DIM) and scale of shape (X_DIM,) so that W4^T ~= q * scale.
    """
    w4_t = w4.T.astype(jnp.float32)                        # (500, 10000)
    absmax = jnp.max(jnp.abs(w4_t), axis=0)                # per output column
    scale = jnp.where(absmax > 0.0, absmax / 127.0, jnp.float32(1.0))
    q = jnp.clip(jnp.round(w4_t / scale[None, :]), -127.0, 127.0).astype(jnp.int8)
    return q, scale


def prepare_params(params):
    """One-time packing: transpose, zero-pad, int8-quantize the big fc4 weight,
    and lay it out tile-contiguously.  Call once and reuse."""
    w3, b3 = params["w3"], params["b3"]      # (500, 4), (500,)
    w4, b4 = params["w4"], params["b4"]      # (10000, 500), (10000,)

    w3_p = (jnp.zeros((ZIN_PAD, H_PAD), jnp.float32)
            .at[:ZIN_DIM, :H_DIM].set(w3.T.astype(jnp.float32)))
    b3_p = jnp.zeros((1, H_PAD), jnp.float32).at[0, :H_DIM].set(b3.astype(jnp.float32))

    q, scale = quantize_w4(w4)
    # Padded rows [500:512) stay zero, so the padded hidden columns (which are
    # exactly 0 after leaky_relu) contribute nothing.
    w4_q = jnp.zeros((H_PAD, X_PAD), jnp.int8).at[:H_DIM, :X_DIM].set(q)
    # Tile-contiguous repack: (N_J, H_PAD, TN).  Each grid step's weight tile
    # becomes one fully contiguous DMA instead of H_PAD strided row segments.
    w4_q = w4_q.reshape(H_PAD, N_J, TN).transpose(1, 0, 2)

    # Padded output columns get scale 0 and bias 0 -> harmless, sliced off.
    scale_p = jnp.zeros((1, X_PAD), jnp.float32).at[0, :X_DIM].set(scale)
    b4_p = jnp.zeros((1, X_PAD), jnp.float32).at[0, :X_DIM].set(b4.astype(jnp.float32))
    return {"w3_p": w3_p, "b3_p": b3_p, "w4_q": w4_q,
            "w4_scale": scale_p, "b4_p": b4_p}


@jax.jit
def decoder_forward(z, y, packed):
    z = z.reshape(-1, Z_DIM).astype(jnp.float32)
    y = y.reshape(-1, Y_DIM).astype(jnp.float32)
    zy = jnp.concatenate([z, y], axis=1)                     # (B, 4)
    B = zy.shape[0]
    B_pad = max(16, ((B + 15) // 16) * 16)                   # bf16-friendly sublanes

    zy_p = jnp.zeros((B_pad, ZIN_PAD), jnp.float32).at[:B, :ZIN_DIM].set(zy)

    cost = pl.CostEstimate(
        flops=2 * B_pad * H_PAD * X_PAD + 2 * B_pad * ZIN_PAD * H_PAD * N_J,
        transcendentals=B_pad * X_PAD,
        bytes_accessed=(packed["w4_q"].size * 1              # int8 W4 stream
                        + packed["w4_scale"].size * 4
                        + packed["b4_p"].size * 4
                        + packed["w3_p"].size * 4 + packed["b3_p"].size * 4
                        + B_pad * ZIN_PAD * 4
                        + B_pad * X_PAD * 2),                 # bf16 output
    )

    out_p = pl.pallas_call(
        decoder_kernel,
        out_shape=jax.ShapeDtypeStruct((B_pad, X_PAD), jnp.bfloat16),
        grid_spec=pltpu.PrefetchScalarGridSpec(
            num_scalar_prefetch=0,
            grid=(N_J,),
            in_specs=[
                pl.BlockSpec((B_pad, ZIN_PAD), lambda j: (0, 0)),   # zy (resident)
                pl.BlockSpec((ZIN_PAD, H_PAD), lambda j: (0, 0)),   # W3 (resident)
                pl.BlockSpec((1, H_PAD), lambda j: (0, 0)),         # b3 (resident)
                pl.BlockSpec((None, H_PAD, TN), lambda j: (j, 0, 0)),  # W4 int8 tile
                pl.BlockSpec((1, TN), lambda j: (0, j)),            # per-col scale
                pl.BlockSpec((1, TN), lambda j: (0, j)),            # b4 tile
            ],
            out_specs=pl.BlockSpec((B_pad, TN), lambda j: (0, j)),  # output tile
        ),
        compiler_params=pltpu.CompilerParams(
            dimension_semantics=_DIM_SEMANTICS,
            vmem_limit_bytes=32 * 1024 * 1024),
        cost_estimate=cost,
    )(zy_p, packed["w3_p"], packed["b3_p"],
      packed["w4_q"], packed["w4_scale"], packed["b4_p"])

    return out_p[:B, :X_DIM].astype(jnp.float32)


def init_params(key):
    """Deterministic init mimicking torch.nn.Linear defaults U(-1/sqrt(fan_in), +)."""
    ks = jax.random.split(key, 4)

    def lin(kw, kb, out_f, in_f):
        bound = 1.0 / jnp.sqrt(jnp.float32(in_f))
        w = jax.random.uniform(kw, (out_f, in_f), jnp.float32, -bound, bound)
        b = jax.random.uniform(kb, (out_f,), jnp.float32, -bound, bound)
        return w, b

    w3, b3 = lin(ks[0], ks[1], H_DIM, ZIN_DIM)
    w4, b4 = lin(ks[2], ks[3], X_DIM, H_DIM)
    return {"w3": w3, "b3": b3, "w4": w4, "b4": b4}


def reference_forward_f32(z, y, params):
    """Full-f32 semantics of the PyTorch module."""
    zy = jnp.concatenate([z.reshape(-1, Z_DIM), y.reshape(-1, Y_DIM)], axis=1)
    h = zy @ params["w3"].T + params["b3"]
    h = jnp.where(h >= 0.0, h, LEAKY_SLOPE * h)
    logits = h @ params["w4"].T + params["b4"]
    return 1.0 / (1.0 + jnp.exp(-logits))


def reference_forward_matched(z, y, params):
    """Mirrors the kernel's numerics: int8 per-column W4, bf16 MXU operands,
    f32 accumulation, per-column rescale, bf16 output store."""
    zy = jnp.concatenate([z.reshape(-1, Z_DIM), y.reshape(-1, Y_DIM)],
                         axis=1).astype(jnp.float32)
    h = zy @ params["w3"].T.astype(jnp.float32) + params["b3"]
    h = jnp.where(h >= 0.0, h, LEAKY_SLOPE * h)
    q, scale = quantize_w4(params["w4"])
    acc = jnp.dot(h.astype(jnp.bfloat16), q.astype(jnp.bfloat16),
                  preferred_element_type=jnp.float32)
    logits = acc * scale[None, :] + params["b4"]
    out = 1.0 / (1.0 + jnp.exp(-logits))
    return out.astype(jnp.bfloat16).astype(jnp.float32)


if __name__ == "__main__":
    key = jax.random.PRNGKey(0)
    kp, kz, ky = jax.random.split(key, 3)
    params = init_params(kp)
    packed = prepare_params(params)            # one-time weight packing (hoisted)

    B = 2
    z = jax.random.normal(kz, (B, Z_DIM), jnp.float32)
    y = jax.random.normal(ky, (B, Y_DIM), jnp.float32)

    out = decoder_forward(z, y, packed)
    jax.block_until_ready(out)

    ref_match = reference_forward_matched(z, y, params)  # same quantized numerics
    ref_f32 = reference_forward_f32(z, y, params)        # full-f32 semantics

    assert out.shape == (B, X_DIM)
    assert jnp.allclose(out, ref_match, atol=5e-3), \
        float(jnp.max(jnp.abs(out - ref_match)))
    # int8 weight-only quant + bf16 output store vs pure f32 reference.
    assert jnp.allclose(out, ref_f32, atol=1e-2), \
        float(jnp.max(jnp.abs(out - ref_f32)))

    print("KERNEL_OK")
</pallas_src>

<mosaic_0001>
module attributes {stable_mosaic.version = 11 : i64} {
  func.func @decoder_kernel(%arg0: i32, %arg1: memref<16x128xf32, #tpu.memory_space<vmem>>, %arg2: memref<128x512xf32, #tpu.memory_space<vmem>>, %arg3: memref<1x512xf32, #tpu.memory_space<vmem>>, %arg4: memref<1x512x5120xi8, #tpu.memory_space<vmem>>, %arg5: memref<1x5120xf32, #tpu.memory_space<vmem>>, %arg6: memref<1x5120xf32, #tpu.memory_space<vmem>>, %arg7: memref<16x5120xbf16, #tpu.memory_space<vmem>>) attributes {dimension_semantics = [#tpu.dimension_semantics<parallel>], iteration_bounds = array<i64: 2>, scalar_prefetch = 0 : i64, scratch_operands = 0 : i64, tpu.core_type = #tpu.core_type<tc>, window_params = [{pipeline_mode = #tpu.pipeline_mode<synchronous>, transform_indices = @transform_0, window_bounds = array<i64: 16, 128>}, {pipeline_mode = #tpu.pipeline_mode<synchronous>, transform_indices = @transform_1, window_bounds = array<i64: 128, 512>}, {pipeline_mode = #tpu.pipeline_mode<synchronous>, transform_indices = @transform_2, window_bounds = array<i64: 1, 512>}, {transform_indices = @transform_3, window_bounds = array<i64: 1, 512, 5120>}, {transform_indices = @transform_4, window_bounds = array<i64: 1, 5120>}, {transform_indices = @transform_5, window_bounds = array<i64: 1, 5120>}, {transform_indices = @transform_6, window_bounds = array<i64: 16, 5120>}]} {
    %c0 = arith.constant 0 : index
    %c0_0 = arith.constant 0 : index
    %0 = vector.load %arg1[%c0, %c0_0] : memref<16x128xf32, #tpu.memory_space<vmem>>, vector<16x128xf32>
    %c0_1 = arith.constant 0 : index
    %c0_2 = arith.constant 0 : index
    %1 = vector.load %arg2[%c0_1, %c0_2] : memref<128x512xf32, #tpu.memory_space<vmem>>, vector<128x512xf32>
    %cst = arith.constant dense<0.000000e+00> : vector<16x512xf32>
    %2 = tpu.matmul %0, %1, %cst {dimension_numbers = #tpu.dot_dimension_numbers<[1], [0], [0], [1], [0, 0, 1, 1], [], []>} : vector<16x128xf32>, vector<128x512xf32>, vector<16x512xf32> -> vector<16x512xf32>
    %c0_3 = arith.constant 0 : index
    %c0_4 = arith.constant 0 : index
    %3 = vector.load %arg3[%c0_3, %c0_4] : memref<1x512xf32, #tpu.memory_space<vmem>>, vector<1x512xf32>
    %4 = vector.broadcast %3 : vector<1x512xf32> to vector<16x512xf32>
    %5 = arith.addf %2, %4 : vector<16x512xf32>
    %cst_5 = arith.constant 0.000000e+00 : f32
    %6 = vector.broadcast %cst_5 : f32 to vector<16x512xf32>
    %7 = arith.cmpf oge, %5, %6 : vector<16x512xf32>
    %cst_6 = arith.constant 9.99999974E-5 : f32
    %8 = vector.broadcast %cst_6 : f32 to vector<16x512xf32>
    %9 = arith.mulf %8, %5 : vector<16x512xf32>
    %10 = arith.select %7, %5, %9 : vector<16x512xi1>, vector<16x512xf32>
    %c0_7 = arith.constant 0 : index
    %c0_8 = arith.constant 0 : index
    %c0_9 = arith.constant 0 : index
    %11 = vector.load %arg4[%c0_7, %c0_8, %c0_9] : memref<1x512x5120xi8, #tpu.memory_space<vmem>>, vector<1x512x5120xi8>
    %12 = vector.shape_cast %11 : vector<1x512x5120xi8> to vector<512x5120xi8>
    %13 = arith.sitofp %12 : vector<512x5120xi8> to vector<512x5120xbf16>
    %14 = arith.truncf %10 : vector<16x512xf32> to vector<16x512xbf16>
    %cst_10 = arith.constant dense<0.000000e+00> : vector<16x5120xf32>
    %15 = tpu.matmul %14, %13, %cst_10 {dimension_numbers = #tpu.dot_dimension_numbers<[1], [0], [0], [1], [0, 0, 1, 1], [], []>} : vector<16x512xbf16>, vector<512x5120xbf16>, vector<16x5120xf32> -> vector<16x5120xf32>
    %c0_11 = arith.constant 0 : index
    %c0_12 = arith.constant 0 : index
    %16 = vector.load %arg5[%c0_11, %c0_12] : memref<1x5120xf32, #tpu.memory_space<vmem>>, vector<1x5120xf32>
    %17 = vector.broadcast %16 : vector<1x5120xf32> to vector<16x5120xf32>
    %18 = arith.mulf %15, %17 : vector<16x5120xf32>
    %c0_13 = arith.constant 0 : index
    %c0_14 = arith.constant 0 : index
    %19 = vector.load %arg6[%c0_13, %c0_14] : memref<1x5120xf32, #tpu.memory_space<vmem>>, vector<1x5120xf32>
    %20 = vector.broadcast %19 : vector<1x5120xf32> to vector<16x5120xf32>
    %21 = arith.addf %18, %20 : vector<16x5120xf32>
    %cst_15 = arith.constant 0.000000e+00 : f32
    %22 = vector.broadcast %cst_15 : f32 to vector<16x5120xf32>
    %23 = arith.subf %22, %21 : vector<16x5120xf32>
    %24 = math.exp %23 : vector<16x5120xf32>
    %cst_16 = arith.constant 1.000000e+00 : f32
    %25 = vector.broadcast %cst_16 : f32 to vector<16x5120xf32>
    %26 = arith.addf %25, %24 : vector<16x5120xf32>
    %27 = tpu.reciprocal %26 {approx = true} : vector<16x5120xf32> -> vector<16x5120xf32>
    %28 = arith.truncf %27 : vector<16x5120xf32> to vector<16x5120xbf16>
    %c0_17 = arith.constant 0 : index
    %c0_18 = arith.constant 0 : index
    %29 = vector.load %arg7[%c0_17, %c0_18] : memref<16x5120xbf16, #tpu.memory_space<vmem>>, vector<16x5120xbf16>
    tpu.vector_store %arg7[%c0_17, %c0_18], %28 {strides = array<i32>} : memref<16x5120xbf16, #tpu.memory_space<vmem>>, vector<16x5120xbf16>,
    return
  }
  func.func @transform_0(%arg0: i32) -> (i32, i32) {
    %c0_i32 = arith.constant 0 : i32
    %c0_i32_0 = arith.constant 0 : i32
    %c0_i32_1 = arith.constant 0 : i32
    return %c0_i32, %c0_i32_0 : i32, i32
  }
  func.func @transform_1(%arg0: i32) -> (i32, i32) {
    %c0_i32 = arith.constant 0 : i32
    %c0_i32_0 = arith.constant 0 : i32
    %c0_i32_1 = arith.constant 0 : i32
    return %c0_i32, %c0_i32_0 : i32, i32
  }
  func.func @transform_2(%arg0: i32) -> (i32, i32) {
    %c0_i32 = arith.constant 0 : i32
    %c0_i32_0 = arith.constant 0 : i32
    %c0_i32_1 = arith.constant 0 : i32
    return %c0_i32, %c0_i32_0 : i32, i32
  }
  func.func @transform_3(%arg0: i32) -> (i32, i32, i32) {
    %c0_i32 = arith.constant 0 : i32
    %c0_i32_0 = arith.constant 0 : i32
    %c0_i32_1 = arith.constant 0 : i32
    return %arg0, %c0_i32, %c0_i32_0 : i32, i32, i32
  }
  func.func @transform_4(%arg0: i32) -> (i32, i32) {
    %c0_i32 = arith.constant 0 : i32
    %c0_i32_0 = arith.constant 0 : i32
    return %c0_i32, %arg0 : i32, i32
  }
  func.func @transform_5(%arg0: i32) -> (i32, i32) {
    %c0_i32 = arith.constant 0 : i32
    %c0_i32_0 = arith.constant 0 : i32
    return %c0_i32, %arg0 : i32, i32
  }
  func.func @transform_6(%arg0: i32) -> (i32, i32) {
    %c0_i32 = arith.constant 0 : i32
    %c0_i32_0 = arith.constant 0 : i32
    return %c0_i32, %arg0 : i32, i32
  }
}

</mosaic_0001>

<llo_original>
// kernel: decoder_forward.1
$region0: #{decoder_forward.1}
  #allocation0 [shape = 'u32[]', space=smem, size = 0x4, offset = 0x4, fixed_abs, tag = 'smem constant byte address 0x4 - core index']
  #allocation1 [shape = 'u32[144,128]{1,0:T(1,128)}', space=vmem, size = 0x12000, scoped, tag = 'internal scratch']
  %s0 = inlined_call_operand.vmem [shape: f32[16,128], index: 0, kind: input, shape index: {}]
  %s1 = inlined_call_operand.hbm [shape: f32[128,512], index: 1, kind: input, shape index: {}]
  %s2 = inlined_call_operand.hbm [shape: f32[1,512], index: 2, kind: input, shape index: {}]
  %s3 = inlined_call_operand.hbm [shape: s8[2,512,5120], index: 3, kind: input, shape index: {}]
  %s4 = inlined_call_operand.hbm [shape: f32[1,10240], index: 4, kind: input, shape index: {}]
  %s5 = inlined_call_operand.hbm [shape: f32[1,10240], index: 5, kind: input, shape index: {}]
  %s6 = inlined_call_operand.vmem [shape: bf16[16,10240], index: 6, kind: output, shape index: {}]
  %s7 = sld [smem:[#allocation0]]
  $region96: #{decoder_forward.1} parent=0
    _
  %s9 = ssub.s32 1, %s7
  %s10 = scalar_select 0, %s9, %s7
  $region1: #{decoder_forward.1} parent=0
    #allocation2 [shape = 'u8[262144]{0}', space=vmem, size = 0x40000, scoped, tag = 'input window, operand 1, single buffered']
    #allocation3 [shape = 's32[2]{0}', space=sflag, size = 0x8, scoped, tag = 'scoped memory for decoder_forward.1']
    #allocation4 [shape = 'u8[2048]{0}', space=vmem, size = 0x800, scoped, tag = 'input window, operand 2, single buffered']
    #allocation5 [shape = 's32[1]{0}', space=sflag, size = 0x4, scoped, tag = 'scoped memory for decoder_forward.1']
    #allocation6 [shape = 'u8[5242880]{0}', space=vmem, size = 0x500000, scoped, tag = 'input window, operand 3']
    #allocation7 [shape = 'u8[40960]{0}', space=vmem, size = 0xa000, scoped, tag = 'input window, operand 4']
    #allocation8 [shape = 'u8[40960]{0}', space=vmem, size = 0xa000, scoped, tag = 'input window, operand 5']
    #allocation9 [shape = 'u8[327680]{0}', space=vmem, size = 0x50000, scoped, tag = 'output window, operand 0']
    %11 = vsyncpa [#allocation3], 0
    %12 = vsyncpa [#allocation5], 0
    loop: start=0, step=1, limit=4
    $region2: #{decoder_forward.1} parent=1 // loop_pre_header
      _
    $region3: #{decoder_forward.1} parent=1 // loop_header
      %s14 = sphi 0, %s18
      %p15 = scmp.ge.s32.totalorder %s14, 4
      %s22 = sphi 0, %s22
      %s24 = sphi 0, %s22
      %s25 = sphi 0, %s24
      %s39 = sphi 0, %s25
      %s43 = sphi 0, %s43
      %s45 = sphi 0, %s43
      %s46 = sphi 0, %s45
      %s60 = sphi 0, %s46
      %s64 = sphi 0, %s64
      %s66 = sphi 0, %s64
      %s67 = sphi 0, %s66
      %s81 = sphi 0, %s67
      %s87 = sphi 0, %s89
      %s90 = sphi 0, %s87
      %s91 = sphi 0, %s90
      %s107 = sphi 0, %s91
      %s113 = sphi 0, %s115
      %s116 = sphi 0, %s113
      %s117 = sphi 0, %s116
      %s133 = sphi 0, %s117
      %s139 = sphi 0, %s141
      %s142 = sphi 0, %s139
      %s143 = sphi 0, %s142
      %s159 = sphi 0, %s143
      %s165 = sphi 0, %s167
      %s168 = sphi 0, %s165
      %s169 = sphi 0, %s168
      %s185 = sphi 0, %s169
    $region4: #{decoder_forward.1} parent=1 // loop_header_branch
      %17 = sbr.rel (%p15) target = $region8
    $region5: #{decoder_forward.1} parent=1 // loop_body
      %s19 = ssub.s32 %s14, 1
      %s20 = ssub.s32 %s14, 2
      %s21 = sadd.s32 %s14, 1
      %s23 = sadd.s32 %s22, 1
      %p26 = scmp.eq.s32.totalorder %s14, 1
      %p27 = scmp.ne.s32.totalorder %s22, %s24
      %p28 = scmp.eq.s32.totalorder %s14, 0
      %p29 = por %p27, %p28
      %p30 = scmp.ne.s32.totalorder %s22, %s24
      %p31 = scmp.eq.s32.totalorder %s19, 1
      %p32 = por %p30, %p31
      %p33 = scmp.ne.s32.totalorder %s24, %s25
      %p34 = scmp.eq.s32.totalorder %s19, 0
      %p35 = por %p33, %p34
      %p36 = scmp.ne.s32.totalorder %s24, %s25
      %p37 = scmp.eq.s32.totalorder %s20, 1
      %p38 = por %p36, %p37
      %p40 = scmp.ne.s32.totalorder %s25, %s39
      %p41 = scmp.eq.s32.totalorder %s20, 0
      %p42 = por %p40, %p41
      %s44 = sadd.s32 %s43, 1
      %p47 = scmp.eq.s32.totalorder %s14, 1
      %p48 = scmp.ne.s32.totalorder %s43, %s45
      %p49 = scmp.eq.s32.totalorder %s14, 0
      %p50 = por %p48, %p49
      %p51 = scmp.ne.s32.totalorder %s43, %s45
      %p52 = scmp.eq.s32.totalorder %s19, 1
      %p53 = por %p51, %p52
      %p54 = scmp.ne.s32.totalorder %s45, %s46
      %p55 = scmp.eq.s32.totalorder %s19, 0
      %p56 = por %p54, %p55
      %p57 = scmp.ne.s32.totalorder %s45, %s46
      %p58 = scmp.eq.s32.totalorder %s20, 1
      %p59 = por %p57, %p58
      %p61 = scmp.ne.s32.totalorder %s46, %s60
      %p62 = scmp.eq.s32.totalorder %s20, 0
      %p63 = por %p61, %p62
      %s65 = sadd.s32 %s64, 1
      %p68 = scmp.eq.s32.totalorder %s14, 1
      %p69 = scmp.ne.s32.totalorder %s64, %s66
      %p70 = scmp.eq.s32.totalorder %s14, 0
      %p71 = por %p69, %p70
      %p72 = scmp.ne.s32.totalorder %s64, %s66
      %p73 = scmp.eq.s32.totalorder %s19, 1
      %p74 = por %p72, %p73
      %p75 = scmp.ne.s32.totalorder %s66, %s67
      %p76 = scmp.eq.s32.totalorder %s19, 0
      %p77 = por %p75, %p76
      %p78 = scmp.ne.s32.totalorder %s66, %s67
      %p79 = scmp.eq.s32.totalorder %s20, 1
      %p80 = por %p78, %p79
      %p82 = scmp.ne.s32.totalorder %s67, %s81
      %p83 = scmp.eq.s32.totalorder %s20, 0
      %p84 = por %p82, %p83
      %s85 = ssub.s32 %s14, %s21
      %p86 = scmp.eq.s32.totalorder %s85, 0
      %s88 = sadd.s32 %s87, 1
      %s89 = scalar_select %p86, %s87, %s88
      %p92 = pneg %p86
      %p93 = scmp.eq.s32.totalorder %s14, 1
      %p94 = por %p92, %p93
      %p95 = scmp.ne.s32.totalorder %s87, %s90
      %p96 = scmp.eq.s32.totalorder %s14, 0
      %p97 = por %p95, %p96
      %p98 = scmp.ne.s32.totalorder %s87, %s90
      %p99 = scmp.eq.s32.totalorder %s19, 1
      %p100 = por %p98, %p99
      %p101 = scmp.ne.s32.totalorder %s90, %s91
      %p102 = scmp.eq.s32.totalorder %s19, 0
      %p103 = por %p101, %p102
      %p104 = scmp.ne.s32.totalorder %s90, %s91
      %p105 = scmp.eq.s32.totalorder %s20, 1
      %p106 = por %p104, %p105
      %p108 = scmp.ne.s32.totalorder %s91, %s107
      %p109 = scmp.eq.s32.totalorder %s20, 0
      %p110 = por %p108, %p109
      %s111 = ssub.s32 %s14, %s21
      %p112 = scmp.eq.s32.totalorder %s111, 0
      %s114 = sadd.s32 %s113, 1
      %s115 = scalar_select %p112, %s113, %s114
      %p118 = pneg %p112
      %p119 = scmp.eq.s32.totalorder %s14, 1
      %p120 = por %p118, %p119
      %p121 = scmp.ne.s32.totalorder %s113, %s116
      %p122 = scmp.eq.s32.totalorder %s14, 0
      %p123 = por %p121, %p122
      %p124 = scmp.ne.s32.totalorder %s113, %s116
      %p125 = scmp.eq.s32.totalorder %s19, 1
      %p126 = por %p124, %p125
      %p127 = scmp.ne.s32.totalorder %s116, %s117
      %p128 = scmp.eq.s32.totalorder %s19, 0
      %p129 = por %p127, %p128
      %p130 = scmp.ne.s32.totalorder %s116, %s117
      %p131 = scmp.eq.s32.totalorder %s20, 1
      %p132 = por %p130, %p131
      %p134 = scmp.ne.s32.totalorder %s117, %s133
      %p135 = scmp.eq.s32.totalorder %s20, 0
      %p136 = por %p134, %p135
      %s137 = ssub.s32 %s14, %s21
      %p138 = scmp.eq.s32.totalorder %s137, 0
      %s140 = sadd.s32 %s139, 1
      %s141 = scalar_select %p138, %s139, %s140
      %p144 = pneg %p138
      %p145 = scmp.eq.s32.totalorder %s14, 1
      %p146 = por %p144, %p145
      %p147 = scmp.ne.s32.totalorder %s139, %s142
      %p148 = scmp.eq.s32.totalorder %s14, 0
      %p149 = por %p147, %p148
      %p150 = scmp.ne.s32.totalorder %s139, %s142
      %p151 = scmp.eq.s32.totalorder %s19, 1
      %p152 = por %p150, %p151
      %p153 = scmp.ne.s32.totalorder %s142, %s143
      %p154 = scmp.eq.s32.totalorder %s19, 0
      %p155 = por %p153, %p154
      %p156 = scmp.ne.s32.totalorder %s142, %s143
      %p157 = scmp.eq.s32.totalorder %s20, 1
      %p158 = por %p156, %p157
      %p160 = scmp.ne.s32.totalorder %s143, %s159
      %p161 = scmp.eq.s32.totalorder %s20, 0
      %p162 = por %p160, %p161
      %s163 = ssub.s32 %s14, %s21
      %p164 = scmp.eq.s32.totalorder %s163, 0
      %s166 = sadd.s32 %s165, 1
      %s167 = scalar_select %p164, %s165, %s166
      %p170 = pneg %p164
      %p171 = scmp.eq.s32.totalorder %s14, 1
      %p172 = por %p170, %p171
      %p173 = scmp.ne.s32.totalorder %s165, %s168
      %p174 = scmp.eq.s32.totalorder %s14, 0
      %p175 = por %p173, %p174
      %p176 = scmp.ne.s32.totalorder %s165, %s168
      %p177 = scmp.eq.s32.totalorder %s19, 1
      %p178 = por %p176, %p177
      %p179 = scmp.ne.s32.totalorder %s168, %s169
      %p180 = scmp.eq.s32.totalorder %s19, 0
      %p181 = por %p179, %p180
      %p182 = scmp.ne.s32.totalorder %s168, %s169
      %p183 = scmp.eq.s32.totalorder %s20, 1
      %p184 = por %p182, %p183
      %p186 = scmp.ne.s32.totalorder %s169, %s185
      %p187 = scmp.eq.s32.totalorder %s20, 0
      %p188 = por %p186, %p187
      %p189 = scmp.le.s32.totalorder 1, %s14
      %p190 = scmp.lt.s32.totalorder %s14, 3
      %p191 = pnand %p189, %p190
      %p192 = pneg %p191
      // Predicated region
      $region9: #{decoder_forward.1} parent=5 // pred_check
        _
      $region10: #{decoder_forward.1} parent=5 // pred_check_branch
        %194 = sbr.rel (%p191) target = $region12
      $region11: #{decoder_forward.1} parent=5 // pred_region
        %s195 = ssub.s32 %s14, 1
        // Predicated region
        $region13: #{decoder_forward.1} parent=11 // pred_check
          %p196 = pneg %p35
        $region14: #{decoder_forward.1} parent=11 // pred_check_branch
          %198 = sbr.rel (%p196) target = $region16
        $region15: #{decoder_forward.1} parent=11 // pred_region
          _
        $region16: #{decoder_forward.1} parent=11 // pred_fallthru
          _
        // Predicated region
        $region17: #{decoder_forward.1} parent=11 // pred_check
          %p199 = pneg %p56
        $region18: #{decoder_forward.1} parent=11 // pred_check_branch
          %201 = sbr.rel (%p199) target = $region20
        $region19: #{decoder_forward.1} parent=11 // pred_region
          %s203 = ssub.s32 8192, 8192
          %204 = vsyncadd [#allocation3], %s203
          %s205 = sshll.u32 [#allocation2], 4
          %s206 = int_to_ptr.vmem [resolvable:$true] %s205
          %211 = dma.hbm_to_vmem [thread:$0]  %s1, 8192, %s206, [#allocation3], 512, 512, 32
        $region20: #{decoder_forward.1} parent=11 // pred_fallthru
          _
        // Predicated region
        $region21: #{decoder_forward.1} parent=11 // pred_check
          %p212 = pneg %p77
        $region22: #{decoder_forward.1} parent=11 // pred_check_branch
          %214 = sbr.rel (%p212) target = $region24
        $region23: #{decoder_forward.1} parent=11 // pred_region
          %s216 = ssub.s32 64, 64
          %217 = vsyncadd [#allocation5], %s216
          %s219 = sshll.u32 [#allocation4], 4
          %s220 = int_to_ptr.vmem [resolvable:$true] %s219
          %222 = dma.hbm_to_vmem [thread:$0]  %s2, 64, %s220, [#allocation5]
        $region24: #{decoder_forward.1} parent=11 // pred_fallthru
          _
      $region12: #{decoder_forward.1} parent=5 // pred_fallthru
        _
      %p223 = scmp.lt.s32.totalorder %s14, 2
      // Predicated region
      $region25: #{decoder_forward.1} parent=5 // pred_check
        %p224 = pneg %p223
      $region26: #{decoder_forward.1} parent=5 // pred_check_branch
        %226 = sbr.rel (%p224) target = $region28
      $region27: #{decoder_forward.1} parent=5 // pred_region
        // Predicated region
        $region29: #{decoder_forward.1} parent=27 // pred_check
          %p227 = pneg %p97
        $region30: #{decoder_forward.1} parent=27 // pred_check_branch
          %229 = sbr.rel (%p227) target = $region32
        $region31: #{decoder_forward.1} parent=27 // pred_region
          %s230 = sand.u32 %s14, 1
          %s231 = scalar_lea.sflag [#allocation3], %s230
          %s232 = sand.u32 %s87, 1
          %s233 = smul.addr %s232, 5120
          %s234 = scalar_lea.vmem [#allocation6], %s233
          %s236 = ssub.s32 81920, 81920
          %237 = vsyncadd %s231, %s236
          %s238 = smul.addr %s14, 640
          %s239 = smul.addr %s238, 128
          %s240 = scalar_lea.hbm %s3, %s239
          %s241 = sshll.u32 %s234, 4
          %s242 = int_to_ptr.vmem [resolvable:$true] %s241
          %247 = dma.hbm_to_vmem [thread:$0]  %s240, 81920, %s242, %s231, 5120, 5120, 320
        $region32: #{decoder_forward.1} parent=27 // pred_fallthru
          _
        // Predicated region
        $region33: #{decoder_forward.1} parent=27 // pred_check
          %p248 = pneg %p123
        $region34: #{decoder_forward.1} parent=27 // pred_check_branch
          %250 = sbr.rel (%p248) target = $region36
        $region35: #{decoder_forward.1} parent=27 // pred_region
          %s251 = sand.u32 %s14, 1
          %s252 = scalar_lea.sflag [#allocation3], %s251
          %s253 = sand.u32 %s113, 1
          %s254 = smul.addr %s253, 40
          %s255 = scalar_lea.vmem [#allocation7], %s254
          %s256 = smul.u32 40, %s14
          %s258 = ssub.s32 640, 640
          %259 = vsyncadd %s252, %s258
          %s260 = smul.addr %s256, 16
          %s261 = scalar_lea.hbm %s4, %s260
          %s263 = sshll.u32 %s255, 4
          %s264 = int_to_ptr.vmem [resolvable:$true] %s263
          %266 = dma.hbm_to_vmem [thread:$0]  %s261, 640, %s264, %s252
        $region36: #{decoder_forward.1} parent=27 // pred_fallthru
          _
        // Predicated region
        $region37: #{decoder_forward.1} parent=27 // pred_check
          %p267 = pneg %p149
        $region38: #{decoder_forward.1} parent=27 // pred_check_branch
          %269 = sbr.rel (%p267) target = $region40
        $region39: #{decoder_forward.1} parent=27 // pred_region
          %s270 = sand.u32 %s14, 1
          %s271 = scalar_lea.sflag [#allocation3], %s270
          %s272 = sand.u32 %s139, 1
          %s273 = smul.addr %s272, 40
          %s274 = scalar_lea.vmem [#allocation8], %s273
          %s275 = smul.u32 40, %s14
          %s277 = ssub.s32 640, 640
          %278 = vsyncadd %s271, %s277
          %s279 = smul.addr %s275, 16
          %s280 = scalar_lea.hbm %s5, %s279
          %s282 = sshll.u32 %s274, 4
          %s283 = int_to_ptr.vmem [resolvable:$true] %s282
          %285 = dma.hbm_to_vmem [thread:$0]  %s280, 640, %s283, %s271
        $region40: #{decoder_forward.1} parent=27 // pred_fallthru
          _
      $region28: #{decoder_forward.1} parent=5 // pred_fallthru
        _
      %p286 = scmp.le.s32.totalorder 1, %s14
      %p287 = scmp.lt.s32.totalorder %s14, 3
      %p288 = pnand %p286, %p287
      %p289 = pneg %p288
      // Predicated region
      $region41: #{decoder_forward.1} parent=5 // pred_check
        _
      $region42: #{decoder_forward.1} parent=5 // pred_check_branch
        %291 = sbr.rel (%p288) target = $region44
      $region43: #{decoder_forward.1} parent=5 // pred_region
        %s292 = ssub.s32 %s14, 1
        // Predicated region
        $region45: #{decoder_forward.1} parent=43 // pred_check
          %p293 = pneg %p56
        $region46: #{decoder_forward.1} parent=43 // pred_check_branch
          %295 = sbr.rel (%p293) target = $region48
        $region47: #{decoder_forward.1} parent=43 // pred_region
          %296 = dma.done [#allocation3], 8192
        $region48: #{decoder_forward.1} parent=43 // pred_fallthru
          _
        // Predicated region
        $region49: #{decoder_forward.1} parent=43 // pred_check
          %p297 = pneg %p77
        $region50: #{decoder_forward.1} parent=43 // pred_check_branch
          %299 = sbr.rel (%p297) target = $region52
        $region51: #{decoder_forward.1} parent=43 // pred_region
          %300 = dma.done [#allocation5], 64
        $region52: #{decoder_forward.1} parent=43 // pred_fallthru
          _
        %s301 = sand.u32 %s19, 1
        %s302 = scalar_lea.sflag [#allocation3], %s301
        %s303 = sand.u32 %s90, 1
        %s304 = smul.addr %s303, 5120
        %s305 = scalar_lea.vmem [#allocation6], %s304
        // Predicated region
        $region53: #{decoder_forward.1} parent=43 // pred_check
          %p306 = pneg %p103
        $region54: #{decoder_forward.1} parent=43 // pred_check_branch
          %308 = sbr.rel (%p306) target = $region56
        $region55: #{decoder_forward.1} parent=43 // pred_region
          %309 = dma.done %s302, 81920
        $region56: #{decoder_forward.1} parent=43 // pred_fallthru
          _
        %s310 = sand.u32 %s19, 1
        %s311 = scalar_lea.sflag [#allocation3], %s310
        %s312 = sand.u32 %s116, 1
        %s313 = smul.addr %s312, 40
        %s314 = scalar_lea.vmem [#allocation7], %s313
        // Predicated region
        $region57: #{decoder_forward.1} parent=43 // pred_check
          %p315 = pneg %p129
        $region58: #{decoder_forward.1} parent=43 // pred_check_branch
          %317 = sbr.rel (%p315) target = $region60
        $region59: #{decoder_forward.1} parent=43 // pred_region
          %318 = dma.done %s311, 640
        $region60: #{decoder_forward.1} parent=43 // pred_fallthru
          _
        %s319 = sand.u32 %s19, 1
        %s320 = scalar_lea.sflag [#allocation3], %s319
        %s321 = sand.u32 %s142, 1
        %s322 = smul.addr %s321, 40
        %s323 = scalar_lea.vmem [#allocation8], %s322
        // Predicated region
        $region61: #{decoder_forward.1} parent=43 // pred_check
          %p324 = pneg %p155
        $region62: #{decoder_forward.1} parent=43 // pred_check_branch
          %326 = sbr.rel (%p324) target = $region64
        $region63: #{decoder_forward.1} parent=43 // pred_region
          %327 = dma.done %s320, 640
        $region64: #{decoder_forward.1} parent=43 // pred_fallthru
          _
        %p328 = pneg %p35
        %p329 = pneg %p32
        %p330 = pneg %p56
        %p331 = pneg %p53
        %p332 = pneg %p77
        %p333 = pneg %p74
        %s334 = sand.u32 %s19, 1
        %s335 = scalar_lea.sflag [#allocation3], %s334
        %s336 = sand.u32 %s90, 1
        %s337 = smul.addr %s336, 5120
        %s338 = scalar_lea.vmem [#allocation6], %s337
        %p339 = pneg %p103
        %p340 = pneg %p100
        %s341 = sand.u32 %s19, 1
        %s342 = scalar_lea.sflag [#allocation3], %s341
        %s343 = sand.u32 %s116, 1
        %s344 = smul.addr %s343, 40
        %s345 = scalar_lea.vmem [#allocation7], %s344
        %p346 = pneg %p129
        %p347 = pneg %p126
        %s348 = sand.u32 %s19, 1
        %s349 = scalar_lea.sflag [#allocation3], %s348
        %s350 = sand.u32 %s142, 1
        %s351 = smul.addr %s350, 40
        %s352 = scalar_lea.vmem [#allocation8], %s351
        %p353 = pneg %p155
        %p354 = pneg %p152
        %p355 = pneg %p181
        %p356 = pneg %p178
        %s357 = sand.u32 %s168, 1
        %s358 = sand.u32 %s168, 1
        %s359 = smul.addr %s358, 320
        %s360 = scalar_lea.vmem [#allocation9], %s359
        %s361 = smul.u32 40, %s19
        %s362 = smul.u32 40, %s19
        %s363 = smul.u32 40, %s19
        %v364 = vld [vmem:[%s0] sm:$0xff]
        %v365 = vld [vmem:[%s0 + $0x8] sm:$0xff]
        %v366 = vld [vmem:[#allocation2] sm:$0xff]
        %v367 = vld [vmem:[#allocation2 + $0x8] sm:$0xff]
        %v368 = vld [vmem:[#allocation2 + $0x10] sm:$0xff]
        %v369 = vld [vmem:[#allocation2 + $0x18] sm:$0xff]
        %v370 = vld [vmem:[#allocation2 + $0x20] sm:$0xff]
        %v371 = vld [vmem:[#allocation2 + $0x28] sm:$0xff]
        %v372 = vld [vmem:[#allocation2 + $0x30] sm:$0xff]
        %v373 = vld [vmem:[#allocation2 + $0x38] sm:$0xff]
        %v374 = vld [vmem:[#allocation2 + $0x40] sm:$0xff]
        %v375 = vld [vmem:[#allocation2 + $0x48] sm:$0xff]
        %v376 = vld [vmem:[#allocation2 + $0x50] sm:$0xff]
        %v377 = vld [vmem:[#allocation2 + $0x58] sm:$0xff]
        %v378 = vld [vmem:[#allocation2 + $0x60] sm:$0xff]
        %v379 = vld [vmem:[#allocation2 + $0x68] sm:$0xff]
        %v380 = vld [vmem:[#allocation2 + $0x70] sm:$0xff]
        %v381 = vld [vmem:[#allocation2 + $0x78] sm:$0xff]
        %v382 = vld [vmem:[#allocation2 + $0x80] sm:$0xff]
        %v383 = vld [vmem:[#allocation2 + $0x88] sm:$0xff]
        %v384 = vld [vmem:[#allocation2 + $0x90] sm:$0xff]
        %v385 = vld [vmem:[#allocation2 + $0x98] sm:$0xff]
        %v386 = vld [vmem:[#allocation2 + $0xa0] sm:$0xff]
        %v387 = vld [vmem:[#allocation2 + $0xa8] sm:$0xff]
        %v388 = vld [vmem:[#allocation2 + $0xb0] sm:$0xff]
        %v389 = vld [vmem:[#allocation2 + $0xb8] sm:$0xff]
        %v390 = vld [vmem:[#allocation2 + $0xc0] sm:$0xff]
        %v391 = vld [vmem:[#allocation2 + $0xc8] sm:$0xff]
        %v392 = vld [vmem:[#allocation2 + $0xd0] sm:$0xff]
        %v393 = vld [vmem:[#allocation2 + $0xd8] sm:$0xff]
        %v394 = vld [vmem:[#allocation2 + $0xe0] sm:$0xff]
        %v395 = vld [vmem:[#allocation2 + $0xe8] sm:$0xff]
        %v396 = vld [vmem:[#allocation2 + $0xf0] sm:$0xff]
        %v397 = vld [vmem:[#allocation2 + $0xf8] sm:$0xff]
        %v398 = vld [vmem:[#allocation2 + $0x100] sm:$0xff]
        %v399 = vld [vmem:[#allocation2 + $0x108] sm:$0xff]
        %v400 = vld [vmem:[#allocation2 + $0x110] sm:$0xff]
        %v401 = vld [vmem:[#allocation2 + $0x118] sm:$0xff]
        %v402 = vld [vmem:[#allocation2 + $0x120] sm:$0xff]
        %v403 = vld [vmem:[#allocation2 + $0x128] sm:$0xff]
        %v404 = vld [vmem:[#allocation2 + $0x130] sm:$0xff]
        %v405 = vld [vmem:[#allocation2 + $0x138] sm:$0xff]
        %v406 = vld [vmem:[#allocation2 + $0x140] sm:$0xff]
        %v407 = vld [vmem:[#allocation2 + $0x148] sm:$0xff]
        %v408 = vld [vmem:[#allocation2 + $0x150] sm:$0xff]
        %v409 = vld [vmem:[#allocation2 + $0x158] sm:$0xff]
        %v410 = vld [vmem:[#allocation2 + $0x160] sm:$0xff]
        %v411 = vld [vmem:[#allocation2 + $0x168] sm:$0xff]
        %v412 = vld [vmem:[#allocation2 + $0x170] sm:$0xff]
        %v413 = vld [vmem:[#allocation2 + $0x178] sm:$0xff]
        %v414 = vld [vmem:[#allocation2 + $0x180] sm:$0xff]
        %v415 = vld [vmem:[#allocation2 + $0x188] sm:$0xff]
        %v416 = vld [vmem:[#allocation2 + $0x190] sm:$0xff]
        %v417 = vld [vmem:[#allocation2 + $0x198] sm:$0xff]
        %v418 = vld [vmem:[#allocation2 + $0x1a0] sm:$0xff]
        %v419 = vld [vmem:[#allocation2 + $0x1a8] sm:$0xff]
        %v420 = vld [vmem:[#allocation2 + $0x1b0] sm:$0xff]
        %v421 = vld [vmem:[#allocation2 + $0x1b8] sm:$0xff]
        %v422 = vld [vmem:[#allocation2 + $0x1c0] sm:$0xff]
        %v423 = vld [vmem:[#allocation2 + $0x1c8] sm:$0xff]
        %v424 = vld [vmem:[#allocation2 + $0x1d0] sm:$0xff]
        %v425 = vld [vmem:[#allocation2 + $0x1d8] sm:$0xff]
        %v426 = vld [vmem:[#allocation2 + $0x1e0] sm:$0xff]
        %v427 = vld [vmem:[#allocation2 + $0x1e8] sm:$0xff]
        %v428 = vld [vmem:[#allocation2 + $0x1f0] sm:$0xff]
        %v429 = vld [vmem:[#allocation2 + $0x1f8] sm:$0xff]
        %v430 = vld [vmem:[#allocation4] sm:$0xf]
        %v432 = vlaneseq
        %v433 = vshrl.u32 %v432, 7
        %v434 = vsub.s32 0, %v433
        %v435 = vrot.slane %v430, %v434
        %v436 = vlaneseq
        %v437 = vshrl.u32 %v436, 7
        %v438 = vsub.s32 1, %v437
        %v439 = vrot.slane %v430, %v438
        %v440 = vlaneseq
        %v441 = vshrl.u32 %v440, 7
        %v442 = vsub.s32 2, %v441
        %v443 = vrot.slane %v430, %v442
        %v444 = vlaneseq
        %v445 = vshrl.u32 %v444, 7
        %v446 = vsub.s32 3, %v445
        %v447 = vrot.slane %v430, %v446
        %452 = vmatprep.subr.mxu0 %v367
        %453 = vmatpush1.msra.mxu0 %v366
        %454 = vmatprep.subr.mxu0 %v371
        %455 = vmatpush1.msra.mxu0 %v370
        %456 = vmatprep.subr.mxu0 %v375
        %457 = vmatpush1.msra.mxu0 %v374
        %458 = vmatprep.subr.mxu0 %v379
        %459 = vmatpush1.msra.mxu0 %v378
        %460 = vmatprep.subr.mxu0 %v383
        %461 = vmatpush1.msra.mxu0 %v382
        %462 = vmatprep.subr.mxu0 %v387
        %463 = vmatpush1.msra.mxu0 %v386
        %464 = vmatprep.subr.mxu0 %v391
        %465 = vmatpush1.msra.mxu0 %v390
        %466 = vmatprep.subr.mxu0 %v395
        %467 = vmatpush1.msra.mxu0 %v394
        %468 = vmatprep.subr.mxu0 %v399
        %469 = vmatpush1.msra.mxu0 %v398
        %470 = vmatprep.subr.mxu0 %v403
        %471 = vmatpush1.msra.mxu0 %v402
        %472 = vmatprep.subr.mxu0 %v407
        %473 = vmatpush1.msra.mxu0 %v406
        %474 = vmatprep.subr.mxu0 %v411
        %475 = vmatpush1.msra.mxu0 %v410
        %476 = vmatprep.subr.mxu0 %v415
        %477 = vmatpush1.msra.mxu0 %v414
        %478 = vmatprep.subr.mxu0 %v419
        %479 = vmatpush1.msra.mxu0 %v418
        %480 = vmatprep.subr.mxu0 %v423
        %481 = vmatpush1.msra.mxu0 %v422
        %482 = vmatprep.subr.mxu0 %v427
        %483 = vmatpush1.msra.mxu0 %v426
        %484 = vmatprep.subr.mxu0 0.0
        %485 = vmatpush1.msra.mxu0 0.0
        %486 = vmatprep.subr.mxu0 0.0
        %487 = vmatpush1.msra.mxu0 0.0
        %488 = vmatprep.subr.mxu0 0.0
        %489 = vmatpush1.msra.mxu0 0.0
        %490 = vmatprep.subr.mxu0 0.0
        %491 = vmatpush1.msra.mxu0 0.0
        %492 = vmatprep.subr.mxu0 0.0
        %493 = vmatpush1.msra.mxu0 0.0
        %494 = vmatprep.subr.mxu0 0.0
        %495 = vmatpush1.msra.mxu0 0.0
        %496 = vmatprep.subr.mxu0 0.0
        %497 = vmatpush1.msra.mxu0 0.0
        %498 = vmatprep.subr.mxu0 0.0
        %499 = vmatpush1.msra.mxu0 0.0
        %500 = vmatprep.subr.mxu0 0.0
        %501 = vmatpush1.msra.mxu0 0.0
        %502 = vmatprep.subr.mxu0 0.0
        %503 = vmatpush1.msra.mxu0 0.0
        %504 = vmatprep.subr.mxu0 0.0
        %505 = vmatpush1.msra.mxu0 0.0
        %506 = vmatprep.subr.mxu0 0.0
        %507 = vmatpush1.msra.mxu0 0.0
        %508 = vmatprep.subr.mxu0 0.0
        %509 = vmatpush1.msra.mxu0 0.0
        %510 = vmatprep.subr.mxu0 0.0
        %511 = vmatpush1.msra.mxu0 0.0
        %512 = vmatprep.subr.mxu0 0.0
        %513 = vmatpush1.msra.mxu0 0.0
        %514 = vmatprep.subr.mxu0 0.0
        %515 = vmatpush1.msra.mxu0 0.0
        %516 = vmatprep.mubr.f32.mxu0 0.0
        %517 = vmatmul.mubr.f32.gmra.mrb[0].mxu0 %v364
        %v518 = vpop.f32.mrb[0].mxu0
        %v519 = vadd.f32 %v435, %v518
        %v520 = vpop.f32.mrb[0].mxu0
        %v521 = vadd.f32 %v439, %v520
        %522 = vmatprep.mubr.f32.mxu0 0.0
        %523 = vmatmul.mubr.f32.gmra.mrb[0].mxu0 %v365
        %v524 = vpop.f32.mrb[0].mxu0
        %v525 = vadd.f32 %v435, %v524
        %v526 = vpop.f32.mrb[0].mxu0
        %v527 = vadd.f32 %v439, %v526
        %528 = vdwg.mxu0
        %529 = vmatprep.subr.mxu0 %v369
        %530 = vmatpush1.msra.mxu0 %v368
        %531 = vmatprep.subr.mxu0 %v373
        %532 = vmatpush1.msra.mxu0 %v372
        %533 = vmatprep.subr.mxu0 %v377
        %534 = vmatpush1.msra.mxu0 %v376
        %535 = vmatprep.subr.mxu0 %v381
        %536 = vmatpush1.msra.mxu0 %v380
        %537 = vmatprep.subr.mxu0 %v385
        %538 = vmatpush1.msra.mxu0 %v384
        %539 = vmatprep.subr.mxu0 %v389
        %540 = vmatpush1.msra.mxu0 %v388
        %541 = vmatprep.subr.mxu0 %v393
        %542 = vmatpush1.msra.mxu0 %v392
        %543 = vmatprep.subr.mxu0 %v397
        %544 = vmatpush1.msra.mxu0 %v396
        %545 = vmatprep.subr.mxu0 %v401
        %546 = vmatpush1.msra.mxu0 %v400
        %547 = vmatprep.subr.mxu0 %v405
        %548 = vmatpush1.msra.mxu0 %v404
        %549 = vmatprep.subr.mxu0 %v409
        %550 = vmatpush1.msra.mxu0 %v408
        %551 = vmatprep.subr.mxu0 %v413
        %552 = vmatpush1.msra.mxu0 %v412
        %553 = vmatprep.subr.mxu0 %v417
        %554 = vmatpush1.msra.mxu0 %v416
        %555 = vmatprep.subr.mxu0 %v421
        %556 = vmatpush1.msra.mxu0 %v420
        %557 = vmatprep.subr.mxu0 %v425
        %558 = vmatpush1.msra.mxu0 %v424
        %559 = vmatprep.subr.mxu0 %v429
        %560 = vmatpush1.msra.mxu0 %v428
        %561 = vmatprep.subr.mxu0 0.0
        %562 = vmatpush1.msra.mxu0 0.0
        %563 = vmatprep.subr.mxu0 0.0
        %564 = vmatpush1.msra.mxu0 0.0
        %565 = vmatprep.subr.mxu0 0.0
        %566 = vmatpush1.msra.mxu0 0.0
        %567 = vmatprep.subr.mxu0 0.0
        %568 = vmatpush1.msra.mxu0 0.0
        %569 = vmatprep.subr.mxu0 0.0
        %570 = vmatpush1.msra.mxu0 0.0
        %571 = vmatprep.subr.mxu0 0.0
        %572 = vmatpush1.msra.mxu0 0.0
        %573 = vmatprep.subr.mxu0 0.0
        %574 = vmatpush1.msra.mxu0 0.0
        %575 = vmatprep.subr.mxu0 0.0
        %576 = vmatpush1.msra.mxu0 0.0
        %577 = vmatprep.subr.mxu0 0.0
        %578 = vmatpush1.msra.mxu0 0.0
        %579 = vmatprep.subr.mxu0 0.0
        %580 = vmatpush1.msra.mxu0 0.0
        %581 = vmatprep.subr.mxu0 0.0
        %582 = vmatpush1.msra.mxu0 0.0
        %583 = vmatprep.subr.mxu0 0.0
        %584 = vmatpush1.msra.mxu0 0.0
        %585 = vmatprep.subr.mxu0 0.0
        %586 = vmatpush1.msra.mxu0 0.0
        %587 = vmatprep.subr.mxu0 0.0
        %588 = vmatpush1.msra.mxu0 0.0
        %589 = vmatprep.subr.mxu0 0.0
        %590 = vmatpush1.msra.mxu0 0.0
        %591 = vmatprep.subr.mxu0 0.0
        %592 = vmatpush1.msra.mxu0 0.0
        %593 = vmatprep.mubr.f32.mxu0 0.0
        %594 = vmatmul.mubr.f32.gmra.mrb[0].mxu0 %v364
        %v595 = vpop.f32.mrb[0].mxu0
        %v596 = vadd.f32 %v443, %v595
        %v597 = vpop.f32.mrb[0].mxu0
        %v598 = vadd.f32 %v447, %v597
        %599 = vmatprep.mubr.f32.mxu0 0.0
        %600 = vmatmul.mubr.f32.gmra.mrb[0].mxu0 %v365
        %v601 = vpop.f32.mrb[0].mxu0
        %v602 = vadd.f32 %v443, %v601
        %v603 = vpop.f32.mrb[0].mxu0
        %v604 = vadd.f32 %v447, %v603
        %605 = vdwg.mxu0
        %vm606 = vcmp.ge.f32.partialorder %v519, 0.0
        %vm607 = vcmp.ge.f32.partialorder %v521, 0.0
        %vm608 = vcmp.ge.f32.partialorder %v596, 0.0
        %vm609 = vcmp.ge.f32.partialorder %v598, 0.0
        %vm610 = vcmp.ge.f32.partialorder %v525, 0.0
        %vm611 = vcmp.ge.f32.partialorder %v527, 0.0
        %vm612 = vcmp.ge.f32.partialorder %v602, 0.0
        %vm613 = vcmp.ge.f32.partialorder %v604, 0.0
        %v614 = vmul.f32 %v519, 0.0001
        %v615 = vmul.f32 %v521, 0.0001
        %v616 = vmul.f32 %v596, 0.0001
        %v617 = vmul.f32 %v598, 0.0001
        %v618 = vmul.f32 %v525, 0.0001
        %v619 = vmul.f32 %v527, 0.0001
        %v620 = vmul.f32 %v602, 0.0001
        %v621 = vmul.f32 %v604, 0.0001
        %v622 = vsel %vm606, %v519, %v614
        %v623 = vsel %vm607, %v521, %v615
        %v624 = vsel %vm608, %v596, %v616
        %v625 = vsel %vm609, %v598, %v617
        %v626 = vsel %vm610, %v525, %v618
        %v627 = vsel %vm611, %v527, %v619
        %v628 = vsel %vm612, %v602, %v620
        %v629 = vsel %vm613, %v604, %v621
        %v630 = vld [vmem:[%s305] sm:$0xff]
        %v631 = vld [vmem:[%s305 + $0x8] sm:$0xff]
        %v632 = vld [vmem:[%s305 + $0x10] sm:$0xff]
        %v633 = vld [vmem:[%s305 + $0x18] sm:$0xff]
        %v634 = vld [vmem:[%s305 + $0x20] sm:$0xff]
        %v635 = vld [vmem:[%s305 + $0x28] sm:$0xff]
        %v636 = vld [vmem:[%s305 + $0x30] sm:$0xff]
        %v637 = vld [vmem:[%s305 + $0x38] sm:$0xff]
        %v638 = vld [vmem:[%s305 + $0x40] sm:$0xff]
        %v639 = vld [vmem:[%s305 + $0x48] sm:$0xff]
        %v640 = vld [vmem:[%s305 + $0x50] sm:$0xff]
        %v641 = vld [vmem:[%s305 + $0x58] sm:$0xff]
        %v642 = vld [vmem:[%s305 + $0x60] sm:$0xff]
        %v643 = vld [vmem:[%s305 + $0x68] sm:$0xff]
        %v644 = vld [vmem:[%s305 + $0x70] sm:$0xff]
        %v645 = vld [vmem:[%s305 + $0x78] sm:$0xff]
        %v646 = vld [vmem:[%s305 + $0x80] sm:$0xff]
        %v647 = vld [vmem:[%s305 + $0x88] sm:$0xff]
        %v648 = vld [vmem:[%s305 + $0x90] sm:$0xff]
        %v649 = vld [vmem:[%s305 + $0x98] sm:$0xff]
        %v650 = vld [vmem:[%s305 + $0xa0] sm:$0xff]
        %v651 = vld [vmem:[%s305 + $0xa8] sm:$0xff]
        %v652 = vld [vmem:[%s305 + $0xb0] sm:$0xff]
        %v653 = vld [vmem:[%s305 + $0xb8] sm:$0xff]
        %v654 = vld [vmem:[%s305 + $0xc0] sm:$0xff]
        %v655 = vld [vmem:[%s305 + $0xc8] sm:$0xff]
        %v656 = vld [vmem:[%s305 + $0xd0] sm:$0xff]
        %v657 = vld [vmem:[%s305 + $0xd8] sm:$0xff]
        %v658 = vld [vmem:[%s305 + $0xe0] sm:$0xff]
        %v659 = vld [vmem:[%s305 + $0xe8] sm:$0xff]
        %v660 = vld [vmem:[%s305 + $0xf0] sm:$0xff]
        %v661 = vld [vmem:[%s305 + $0xf8] sm:$0xff]
        %v662 = vld [vmem:[%s305 + $0x100] sm:$0xff]
        %v663 = vld [vmem:[%s305 + $0x108] sm:$0xff]
        %v664 = vld [vmem:[%s305 + $0x110] sm:$0xff]
        %v665 = vld [vmem:[%s305 + $0x118] sm:$0xff]
        %v666 = vld [vmem:[%s305 + $0x120] sm:$0xff]
        %v667 = vld [vmem:[%s305 + $0x128] sm:$0xff]
        %v668 = vld [vmem:[%s305 + $0x130] sm:$0xff]
        %v669 = vld [vmem:[%s305 + $0x138] sm:$0xff]
        %v670 = vld [vmem:[%s305 + $0x140] sm:$0xff]
        %v671 = vld [vmem:[%s305 + $0x148] sm:$0xff]
        %v672 = vld [vmem:[%s305 + $0x150] sm:$0xff]
        %v673 = vld [vmem:[%s305 + $0x158] sm:$0xff]
        %v674 = vld [vmem:[%s305 + $0x160] sm:$0xff]
        %v675 = vld [vmem:[%s305 + $0x168] sm:$0xff]
        %v676 = vld [vmem:[%s305 + $0x170] sm:$0xff]
        %v677 = vld [vmem:[%s305 + $0x178] sm:$0xff]
        %v678 = vld [vmem:[%s305 + $0x180] sm:$0xff]
        %v679 = vld [vmem:[%s305 + $0x188] sm:$0xff]
        %v680 = vld [vmem:[%s305 + $0x190] sm:$0xff]
        %v681 = vld [vmem:[%s305 + $0x198] sm:$0xff]
        %v682 = vld [vmem:[%s305 + $0x1a0] sm:$0xff]
        %v683 = vld [vmem:[%s305 + $0x1a8] sm:$0xff]
        %v684 = vld [vmem:[%s305 + $0x1b0] sm:$0xff]
        %v685 = vld [vmem:[%s305 + $0x1b8] sm:$0xff]
        %v686 = vld [vmem:[%s305 + $0x1c0] sm:$0xff]
        %v687 = vld [vmem:[%s305 + $0x1c8] sm:$0xff]
        %v688 = vld [vmem:[%s305 + $0x1d0] sm:$0xff]
        %v689 = vld [vmem:[%s305 + $0x1d8] sm:$0xff]
        %v690 = vld [vmem:[%s305 + $0x1e0] sm:$0xff]
        %v691 = vld [vmem:[%s305 + $0x1e8] sm:$0xff]
        %v692 = vld [vmem:[%s305 + $0x1f0] sm:$0xff]
        %v693 = vld [vmem:[%s305 + $0x1f8] sm:$0xff]
        %v694 = vld [vmem:[%s305 + $0x200] sm:$0xff]
        %v695 = vld [vmem:[%s305 + $0x208] sm:$0xff]
        %v696 = vld [vmem:[%s305 + $0x210] sm:$0xff]
        %v697 = vld [vmem:[%s305 + $0x218] sm:$0xff]
        %v698 = vld [vmem:[%s305 + $0x220] sm:$0xff]
        %v699 = vld [vmem:[%s305 + $0x228] sm:$0xff]
        %v700 = vld [vmem:[%s305 + $0x230] sm:$0xff]
        %v701 = vld [vmem:[%s305 + $0x238] sm:$0xff]
        %v702 = vld [vmem:[%s305 + $0x240] sm:$0xff]
        %v703 = vld [vmem:[%s305 + $0x248] sm:$0xff]
        %v704 = vld [vmem:[%s305 + $0x250] sm:$0xff]
        %v705 = vld [vmem:[%s305 + $0x258] sm:$0xff]
        %v706 = vld [vmem:[%s305 + $0x260] sm:$0xff]
        %v707 = vld [vmem:[%s305 + $0x268] sm:$0xff]
        %v708 = vld [vmem:[%s305 + $0x270] sm:$0xff]
        %v709 = vld [vmem:[%s305 + $0x278] sm:$0xff]
        %v710 = vld [vmem:[%s305 + $0x280] sm:$0xff]
        %v711 = vld [vmem:[%s305 + $0x288] sm:$0xff]
        %v712 = vld [vmem:[%s305 + $0x290] sm:$0xff]
        %v713 = vld [vmem:[%s305 + $0x298] sm:$0xff]
        %v714 = vld [vmem:[%s305 + $0x2a0] sm:$0xff]
        %v715 = vld [vmem:[%s305 + $0x2a8] sm:$0xff]
        %v716 = vld [vmem:[%s305 + $0x2b0] sm:$0xff]
        %v717 = vld [vmem:[%s305 + $0x2b8] sm:$0xff]
        %v718 = vld [vmem:[%s305 + $0x2c0] sm:$0xff]
        %v719 = vld [vmem:[%s305 + $0x2c8] sm:$0xff]
        %v720 = vld [vmem:[%s305 + $0x2d0] sm:$0xff]
        %v721 = vld [vmem:[%s305 + $0x2d8] sm:$0xff]
        %v722 = vld [vmem:[%s305 + $0x2e0] sm:$0xff]
        %v723 = vld [vmem:[%s305 + $0x2e8] sm:$0xff]
        %v724 = vld [vmem:[%s305 + $0x2f0] sm:$0xff]
        %v725 = vld [vmem:[%s305 + $0x2f8] sm:$0xff]
        %v726 = vld [vmem:[%s305 + $0x300] sm:$0xff]
        %v727 = vld [vmem:[%s305 + $0x308] sm:$0xff]
        %v728 = vld [vmem:[%s305 + $0x310] sm:$0xff]
        %v729 = vld [vmem:[%s305 + $0x318] sm:$0xff]
        %v730 = vld [vmem:[%s305 + $0x320] sm:$0xff]
        %v731 = vld [vmem:[%s305 + $0x328] sm:$0xff]
        %v732 = vld [vmem:[%s305 + $0x330] sm:$0xff]
        %v733 = vld [vmem:[%s305 + $0x338] sm:$0xff]
        %v734 = vld [vmem:[%s305 + $0x340] sm:$0xff]
        %v735 = vld [vmem:[%s305 + $0x348] sm:$0xff]
        %v736 = vld [vmem:[%s305 + $0x350] sm:$0xff]
        %v737 = vld [vmem:[%s305 + $0x358] sm:$0xff]
        %v738 = vld [vmem:[%s305 + $0x360] sm:$0xff]
        %v739 = vld [vmem:[%s305 + $0x368] sm:$0xff]
        %v740 = vld [vmem:[%s305 + $0x370] sm:$0xff]
        %v741 = vld [vmem:[%s305 + $0x378] sm:$0xff]
        %v742 = vld [vmem:[%s305 + $0x380] sm:$0xff]
        %v743 = vld [vmem:[%s305 + $0x388] sm:$0xff]
        %v744 = vld [vmem:[%s305 + $0x390] sm:$0xff]
        %v745 = vld [vmem:[%s305 + $0x398] sm:$0xff]
        %v746 = vld [vmem:[%s305 + $0x3a0] sm:$0xff]
        %v747 = vld [vmem:[%s305 + $0x3a8] sm:$0xff]
        %v748 = vld [vmem:[%s305 + $0x3b0] sm:$0xff]
        %v749 = vld [vmem:[%s305 + $0x3b8] sm:$0xff]
        %v750 = vld [vmem:[%s305 + $0x3c0] sm:$0xff]
        %v751 = vld [vmem:[%s305 + $0x3c8] sm:$0xff]
        %v752 = vld [vmem:[%s305 + $0x3d0] sm:$0xff]
        %v753 = vld [vmem:[%s305 + $0x3d8] sm:$0xff]
        %v754 = vld [vmem:[%s305 + $0x3e0] sm:$0xff]
        %v755 = vld [vmem:[%s305 + $0x3e8] sm:$0xff]
        %v756 = vld [vmem:[%s305 + $0x3f0] sm:$0xff]
        %v757 = vld [vmem:[%s305 + $0x3f8] sm:$0xff]
        %v758 = vld [vmem:[%s305 + $0x400] sm:$0xff]
        %v759 = vld [vmem:[%s305 + $0x408] sm:$0xff]
        %v760 = vld [vmem:[%s305 + $0x410] sm:$0xff]
        %v761 = vld [vmem:[%s305 + $0x418] sm:$0xff]
        %v762 = vld [vmem:[%s305 + $0x420] sm:$0xff]
        %v763 = vld [vmem:[%s305 + $0x428] sm:$0xff]
        %v764 = vld [vmem:[%s305 + $0x430] sm:$0xff]
        %v765 = vld [vmem:[%s305 + $0x438] sm:$0xff]
        %v766 = vld [vmem:[%s305 + $0x440] sm:$0xff]
        %v767 = vld [vmem:[%s305 + $0x448] sm:$0xff]
        %v768 = vld [vmem:[%s305 + $0x450] sm:$0xff]
        %v769 = vld [vmem:[%s305 + $0x458] sm:$0xff]
        %v770 = vld [vmem:[%s305 + $0x460] sm:$0xff]
        %v771 = vld [vmem:[%s305 + $0x468] sm:$0xff]
        %v772 = vld [vmem:[%s305 + $0x470] sm:$0xff]
        %v773 = vld [vmem:[%s305 + $0x478] sm:$0xff]
        %v774 = vld [vmem:[%s305 + $0x480] sm:$0xff]
        %v775 = vld [vmem:[%s305 + $0x488] sm:$0xff]
        %v776 = vld [vmem:[%s305 + $0x490] sm:$0xff]
        %v777 = vld [vmem:[%s305 + $0x498] sm:$0xff]
        %v778 = vld [vmem:[%s305 + $0x4a0] sm:$0xff]
        %v779 = vld [vmem:[%s305 + $0x4a8] sm:$0xff]
        %v780 = vld [vmem:[%s305 + $0x4b0] sm:$0xff]
        %v781 = vld [vmem:[%s305 + $0x4b8] sm:$0xff]
        %v782 = vld [vmem:[%s305 + $0x4c0] sm:$0xff]
        %v783 = vld [vmem:[%s305 + $0x4c8] sm:$0xff]
        %v784 = vld [vmem:[%s305 + $0x4d0] sm:$0xff]
        %v785 = vld [vmem:[%s305 + $0x4d8] sm:$0xff]
        %v786 = vld [vmem:[%s305 + $0x4e0] sm:$0xff]
        %v787 = vld [vmem:[%s305 + $0x4e8] sm:$0xff]
        %v788 = vld [vmem:[%s305 + $0x4f0] sm:$0xff]
        %v789 = vld [vmem:[%s305 + $0x4f8] sm:$0xff]
        %v790 = vld [vmem:[%s305 + $0x500] sm:$0xff]
        %v791 = vld [vmem:[%s305 + $0x508] sm:$0xff]
        %v792 = vld [vmem:[%s305 + $0x510] sm:$0xff]
        %v793 = vld [vmem:[%s305 + $0x518] sm:$0xff]
        %v794 = vld [vmem:[%s305 + $0x520] sm:$0xff]
        %v795 = vld [vmem:[%s305 + $0x528] sm:$0xff]
        %v796 = vld [vmem:[%s305 + $0x530] sm:$0xff]
        %v797 = vld [vmem:[%s305 + $0x538] sm:$0xff]
        %v798 = vld [vmem:[%s305 + $0x540] sm:$0xff]
        %v799 = vld [vmem:[%s305 + $0x548] sm:$0xff]
        %v800 = vld [vmem:[%s305 + $0x550] sm:$0xff]
        %v801 = vld [vmem:[%s305 + $0x558] sm:$0xff]
        %v802 = vld [vmem:[%s305 + $0x560] sm:$0xff]
        %v803 = vld [vmem:[%s305 + $0x568] sm:$0xff]
        %v804 = vld [vmem:[%s305 + $0x570] sm:$0xff]
        %v805 = vld [vmem:[%s305 + $0x578] sm:$0xff]
        %v806 = vld [vmem:[%s305 + $0x580] sm:$0xff]
        %v807 = vld [vmem:[%s305 + $0x588] sm:$0xff]
        %v808 = vld [vmem:[%s305 + $0x590] sm:$0xff]
        %v809 = vld [vmem:[%s305 + $0x598] sm:$0xff]
        %v810 = vld [vmem:[%s305 + $0x5a0] sm:$0xff]
        %v811 = vld [vmem:[%s305 + $0x5a8] sm:$0xff]
        %v812 = vld [vmem:[%s305 + $0x5b0] sm:$0xff]
        %v813 = vld [vmem:[%s305 + $0x5b8] sm:$0xff]
        %v814 = vld [vmem:[%s305 + $0x5c0] sm:$0xff]
        %v815 = vld [vmem:[%s305 + $0x5c8] sm:$0xff]
        %v816 = vld [vmem:[%s305 + $0x5d0] sm:$0xff]
        %v817 = vld [vmem:[%s305 + $0x5d8] sm:$0xff]
        %v818 = vld [vmem:[%s305 + $0x5e0] sm:$0xff]
        %v819 = vld [vmem:[%s305 + $0x5e8] sm:$0xff]
        %v820 = vld [vmem:[%s305 + $0x5f0] sm:$0xff]
        %v821 = vld [vmem:[%s305 + $0x5f8] sm:$0xff]
        %v822 = vld [vmem:[%s305 + $0x600] sm:$0xff]
        %v823 = vld [vmem:[%s305 + $0x608] sm:$0xff]
        %v824 = vld [vmem:[%s305 + $0x610] sm:$0xff]
        %v825 = vld [vmem:[%s305 + $0x618] sm:$0xff]
        %v826 = vld [vmem:[%s305 + $0x620] sm:$0xff]
        %v827 = vld [vmem:[%s305 + $0x628] sm:$0xff]
        %v828 = vld [vmem:[%s305 + $0x630] sm:$0xff]
        %v829 = vld [vmem:[%s305 + $0x638] sm:$0xff]
        %v830 = vld [vmem:[%s305 + $0x640] sm:$0xff]
        %v831 = vld [vmem:[%s305 + $0x648] sm:$0xff]
        %v832 = vld [vmem:[%s305 + $0x650] sm:$0xff]
        %v833 = vld [vmem:[%s305 + $0x658] sm:$0xff]
        %v834 = vld [vmem:[%s305 + $0x660] sm:$0xff]
        %v835 = vld [vmem:[%s305 + $0x668] sm:$0xff]
        %v836 = vld [vmem:[%s305 + $0x670] sm:$0xff]
        %v837 = vld [vmem:[%s305 + $0x678] sm:$0xff]
        %v838 = vld [vmem:[%s305 + $0x680] sm:$0xff]
        %v839 = vld [vmem:[%s305 + $0x688] sm:$0xff]
        %v840 = vld [vmem:[%s305 + $0x690] sm:$0xff]
        %v841 = vld [vmem:[%s305 + $0x698] sm:$0xff]
        %v842 = vld [vmem:[%s305 + $0x6a0] sm:$0xff]
        %v843 = vld [vmem:[%s305 + $0x6a8] sm:$0xff]
        %v844 = vld [vmem:[%s305 + $0x6b0] sm:$0xff]
        %v845 = vld [vmem:[%s305 + $0x6b8] sm:$0xff]
        %v846 = vld [vmem:[%s305 + $0x6c0] sm:$0xff]
        %v847 = vld [vmem:[%s305 + $0x6c8] sm:$0xff]
        %v848 = vld [vmem:[%s305 + $0x6d0] sm:$0xff]
        %v849 = vld [vmem:[%s305 + $0x6d8] sm:$0xff]
        %v850 = vld [vmem:[%s305 + $0x6e0] sm:$0xff]
        %v851 = vld [vmem:[%s305 + $0x6e8] sm:$0xff]
        %v852 = vld [vmem:[%s305 + $0x6f0] sm:$0xff]
        %v853 = vld [vmem:[%s305 + $0x6f8] sm:$0xff]
        %v854 = vld [vmem:[%s305 + $0x700] sm:$0xff]
        %v855 = vld [vmem:[%s305 + $0x708] sm:$0xff]
        %v856 = vld [vmem:[%s305 + $0x710] sm:$0xff]
        %v857 = vld [vmem:[%s305 + $0x718] sm:$0xff]
        %v858 = vld [vmem:[%s305 + $0x720] sm:$0xff]
        %v859 = vld [vmem:[%s305 + $0x728] sm:$0xff]
        %v860 = vld [vmem:[%s305 + $0x730] sm:$0xff]
        %v861 = vld [vmem:[%s305 + $0x738] sm:$0xff]
        %v862 = vld [vmem:[%s305 + $0x740] sm:$0xff]
        %v863 = vld [vmem:[%s305 + $0x748] sm:$0xff]
        %v864 = vld [vmem:[%s305 + $0x750] sm:$0xff]
        %v865 = vld [vmem:[%s305 + $0x758] sm:$0xff]
        %v866 = vld [vmem:[%s305 + $0x760] sm:$0xff]
        %v867 = vld [vmem:[%s305 + $0x768] sm:$0xff]
        %v868 = vld [vmem:[%s305 + $0x770] sm:$0xff]
        %v869 = vld [vmem:[%s305 + $0x778] sm:$0xff]
        %v870 = vld [vmem:[%s305 + $0x780] sm:$0xff]
        %v871 = vld [vmem:[%s305 + $0x788] sm:$0xff]
        %v872 = vld [vmem:[%s305 + $0x790] sm:$0xff]
        %v873 = vld [vmem:[%s305 + $0x798] sm:$0xff]
        %v874 = vld [vmem:[%s305 + $0x7a0] sm:$0xff]
        %v875 = vld [vmem:[%s305 + $0x7a8] sm:$0xff]
        %v876 = vld [vmem:[%s305 + $0x7b0] sm:$0xff]
        %v877 = vld [vmem:[%s305 + $0x7b8] sm:$0xff]
        %v878 = vld [vmem:[%s305 + $0x7c0] sm:$0xff]
        %v879 = vld [vmem:[%s305 + $0x7c8] sm:$0xff]
        %v880 = vld [vmem:[%s305 + $0x7d0] sm:$0xff]
        %v881 = vld [vmem:[%s305 + $0x7d8] sm:$0xff]
        %v882 = vld [vmem:[%s305 + $0x7e0] sm:$0xff]
        %v883 = vld [vmem:[%s305 + $0x7e8] sm:$0xff]
        %v884 = vld [vmem:[%s305 + $0x7f0] sm:$0xff]
        %v885 = vld [vmem:[%s305 + $0x7f8] sm:$0xff]
        %v886 = vld [vmem:[%s305 + $0x800] sm:$0xff]
        %v887 = vld [vmem:[%s305 + $0x808] sm:$0xff]
        %v888 = vld [vmem:[%s305 + $0x810] sm:$0xff]
        %v889 = vld [vmem:[%s305 + $0x818] sm:$0xff]
        %v890 = vld [vmem:[%s305 + $0x820] sm:$0xff]
        %v891 = vld [vmem:[%s305 + $0x828] sm:$0xff]
        %v892 = vld [vmem:[%s305 + $0x830] sm:$0xff]
        %v893 = vld [vmem:[%s305 + $0x838] sm:$0xff]
        %v894 = vld [vmem:[%s305 + $0x840] sm:$0xff]
        %v895 = vld [vmem:[%s305 + $0x848] sm:$0xff]
        %v896 = vld [vmem:[%s305 + $0x850] sm:$0xff]
        %v897 = vld [vmem:[%s305 + $0x858] sm:$0xff]
        %v898 = vld [vmem:[%s305 + $0x860] sm:$0xff]
        %v899 = vld [vmem:[%s305 + $0x868] sm:$0xff]
        %v900 = vld [vmem:[%s305 + $0x870] sm:$0xff]
        %v901 = vld [vmem:[%s305 + $0x878] sm:$0xff]
        %v902 = vld [vmem:[%s305 + $0x880] sm:$0xff]
        %v903 = vld [vmem:[%s305 + $0x888] sm:$0xff]
        %v904 = vld [vmem:[%s305 + $0x890] sm:$0xff]
        %v905 = vld [vmem:[%s305 + $0x898] sm:$0xff]
        %v906 = vld [vmem:[%s305 + $0x8a0] sm:$0xff]
        %v907 = vld [vmem:[%s305 + $0x8a8] sm:$0xff]
        %v908 = vld [vmem:[%s305 + $0x8b0] sm:$0xff]
        %v909 = vld [vmem:[%s305 + $0x8b8] sm:$0xff]
        %v910 = vld [vmem:[%s305 + $0x8c0] sm:$0xff]
        %v911 = vld [vmem:[%s305 + $0x8c8] sm:$0xff]
        %v912 = vld [vmem:[%s305 + $0x8d0] sm:$0xff]
        %v913 = vld [vmem:[%s305 + $0x8d8] sm:$0xff]
        %v914 = vld [vmem:[%s305 + $0x8e0] sm:$0xff]
        %v915 = vld [vmem:[%s305 + $0x8e8] sm:$0xff]
        %v916 = vld [vmem:[%s305 + $0x8f0] sm:$0xff]
        %v917 = vld [vmem:[%s305 + $0x8f8] sm:$0xff]
        %v918 = vld [vmem:[%s305 + $0x900] sm:$0xff]
        %v919 = vld [vmem:[%s305 + $0x908] sm:$0xff]
        %v920 = vld [vmem:[%s305 + $0x910] sm:$0xff]
        %v921 = vld [vmem:[%s305 + $0x918] sm:$0xff]
        %v922 = vld [vmem:[%s305 + $0x920] sm:$0xff]
        %v923 = vld [vmem:[%s305 + $0x928] sm:$0xff]
        %v924 = vld [vmem:[%s305 + $0x930] sm:$0xff]
        %v925 = vld [vmem:[%s305 + $0x938] sm:$0xff]
        %v926 = vld [vmem:[%s305 + $0x940] sm:$0xff]
        %v927 = vld [vmem:[%s305 + $0x948] sm:$0xff]
        %v928 = vld [vmem:[%s305 + $0x950] sm:$0xff]
        %v929 = vld [vmem:[%s305 + $0x958] sm:$0xff]
        %v930 = vld [vmem:[%s305 + $0x960] sm:$0xff]
        %v931 = vld [vmem:[%s305 + $0x968] sm:$0xff]
        %v932 = vld [vmem:[%s305 + $0x970] sm:$0xff]
        %v933 = vld [vmem:[%s305 + $0x978] sm:$0xff]
        %v934 = vld [vmem:[%s305 + $0x980] sm:$0xff]
        %v935 = vld [vmem:[%s305 + $0x988] sm:$0xff]
        %v936 = vld [vmem:[%s305 + $0x990] sm:$0xff]
        %v937 = vld [vmem:[%s305 + $0x998] sm:$0xff]
        %v938 = vld [vmem:[%s305 + $0x9a0] sm:$0xff]
        %v939 = vld [vmem:[%s305 + $0x9a8] sm:$0xff]
        %v940 = vld [vmem:[%s305 + $0x9b0] sm:$0xff]
        %v941 = vld [vmem:[%s305 + $0x9b8] sm:$0xff]
        %v942 = vld [vmem:[%s305 + $0x9c0] sm:$0xff]
        %v943 = vld [vmem:[%s305 + $0x9c8] sm:$0xff]
        %v944 = vld [vmem:[%s305 + $0x9d0] sm:$0xff]
        %v945 = vld [vmem:[%s305 + $0x9d8] sm:$0xff]
        %v946 = vld [vmem:[%s305 + $0x9e0] sm:$0xff]
        %v947 = vld [vmem:[%s305 + $0x9e8] sm:$0xff]
        %v948 = vld [vmem:[%s305 + $0x9f0] sm:$0xff]
        %v949 = vld [vmem:[%s305 + $0x9f8] sm:$0xff]
        %v950 = vld [vmem:[%s305 + $0xa00] sm:$0xff]
        %v951 = vld [vmem:[%s305 + $0xa08] sm:$0xff]
        %v952 = vld [vmem:[%s305 + $0xa10] sm:$0xff]
        %v953 = vld [vmem:[%s305 + $0xa18] sm:$0xff]
        %v954 = vld [vmem:[%s305 + $0xa20] sm:$0xff]
        %v955 = vld [vmem:[%s305 + $0xa28] sm:$0xff]
        %v956 = vld [vmem:[%s305 + $0xa30] sm:$0xff]
        %v957 = vld [vmem:[%s305 + $0xa38] sm:$0xff]
        %v958 = vld [vmem:[%s305 + $0xa40] sm:$0xff]
        %v959 = vld [vmem:[%s305 + $0xa48] sm:$0xff]
        %v960 = vld [vmem:[%s305 + $0xa50] sm:$0xff]
        %v961 = vld [vmem:[%s305 + $0xa58] sm:$0xff]
        %v962 = vld [vmem:[%s305 + $0xa60] sm:$0xff]
        %v963 = vld [vmem:[%s305 + $0xa68] sm:$0xff]
        %v964 = vld [vmem:[%s305 + $0xa70] sm:$0xff]
        %v965 = vld [vmem:[%s305 + $0xa78] sm:$0xff]
        %v966 = vld [vmem:[%s305 + $0xa80] sm:$0xff]
        %v967 = vld [vmem:[%s305 + $0xa88] sm:$0xff]
        %v968 = vld [vmem:[%s305 + $0xa90] sm:$0xff]
        %v969 = vld [vmem:[%s305 + $0xa98] sm:$0xff]
        %v970 = vld [vmem:[%s305 + $0xaa0] sm:$0xff]
        %v971 = vld [vmem:[%s305 + $0xaa8] sm:$0xff]
        %v972 = vld [vmem:[%s305 + $0xab0] sm:$0xff]
        %v973 = vld [vmem:[%s305 + $0xab8] sm:$0xff]
        %v974 = vld [vmem:[%s305 + $0xac0] sm:$0xff]
        %v975 = vld [vmem:[%s305 + $0xac8] sm:$0xff]
        %v976 = vld [vmem:[%s305 + $0xad0] sm:$0xff]
        %v977 = vld [vmem:[%s305 + $0xad8] sm:$0xff]
        %v978 = vld [vmem:[%s305 + $0xae0] sm:$0xff]
        %v979 = vld [vmem:[%s305 + $0xae8] sm:$0xff]
        %v980 = vld [vmem:[%s305 + $0xaf0] sm:$0xff]
        %v981 = vld [vmem:[%s305 + $0xaf8] sm:$0xff]
        %v982 = vld [vmem:[%s305 + $0xb00] sm:$0xff]
        %v983 = vld [vmem:[%s305 + $0xb08] sm:$0xff]
        %v984 = vld [vmem:[%s305 + $0xb10] sm:$0xff]
        %v985 = vld [vmem:[%s305 + $0xb18] sm:$0xff]
        %v986 = vld [vmem:[%s305 + $0xb20] sm:$0xff]
        %v987 = vld [vmem:[%s305 + $0xb28] sm:$0xff]
        %v988 = vld [vmem:[%s305 + $0xb30] sm:$0xff]
        %v989 = vld [vmem:[%s305 + $0xb38] sm:$0xff]
        %v990 = vld [vmem:[%s305 + $0xb40] sm:$0xff]
        %v991 = vld [vmem:[%s305 + $0xb48] sm:$0xff]
        %v992 = vld [vmem:[%s305 + $0xb50] sm:$0xff]
        %v993 = vld [vmem:[%s305 + $0xb58] sm:$0xff]
        %v994 = vld [vmem:[%s305 + $0xb60] sm:$0xff]
        %v995 = vld [vmem:[%s305 + $0xb68] sm:$0xff]
        %v996 = vld [vmem:[%s305 + $0xb70] sm:$0xff]
        %v997 = vld [vmem:[%s305 + $0xb78] sm:$0xff]
        %v998 = vld [vmem:[%s305 + $0xb80] sm:$0xff]
        %v999 = vld [vmem:[%s305 + $0xb88] sm:$0xff]
        %v1000 = vld [vmem:[%s305 + $0xb90] sm:$0xff]
        %v1001 = vld [vmem:[%s305 + $0xb98] sm:$0xff]
        %v1002 = vld [vmem:[%s305 + $0xba0] sm:$0xff]
        %v1003 = vld [vmem:[%s305 + $0xba8] sm:$0xff]
        %v1004 = vld [vmem:[%s305 + $0xbb0] sm:$0xff]
        %v1005 = vld [vmem:[%s305 + $0xbb8] sm:$0xff]
        %v1006 = vld [vmem:[%s305 + $0xbc0] sm:$0xff]
        %v1007 = vld [vmem:[%s305 + $0xbc8] sm:$0xff]
        %v1008 = vld [vmem:[%s305 + $0xbd0] sm:$0xff]
        %v1009 = vld [vmem:[%s305 + $0xbd8] sm:$0xff]
        %v1010 = vld [vmem:[%s305 + $0xbe0] sm:$0xff]
        %v1011 = vld [vmem:[%s305 + $0xbe8] sm:$0xff]
        %v1012 = vld [vmem:[%s305 + $0xbf0] sm:$0xff]
        %v1013 = vld [vmem:[%s305 + $0xbf8] sm:$0xff]
        %v1014 = vld [vmem:[%s305 + $0xc00] sm:$0xff]
        %v1015 = vld [vmem:[%s305 + $0xc08] sm:$0xff]
        %v1016 = vld [vmem:[%s305 + $0xc10] sm:$0xff]
        %v1017 = vld [vmem:[%s305 + $0xc18] sm:$0xff]
        %v1018 = vld [vmem:[%s305 + $0xc20] sm:$0xff]
        %v1019 = vld [vmem:[%s305 + $0xc28] sm:$0xff]
        %v1020 = vld [vmem:[%s305 + $0xc30] sm:$0xff]
        %v1021 = vld [vmem:[%s305 + $0xc38] sm:$0xff]
        %v1022 = vld [vmem:[%s305 + $0xc40] sm:$0xff]
        %v1023 = vld [vmem:[%s305 + $0xc48] sm:$0xff]
        %v1024 = vld [vmem:[%s305 + $0xc50] sm:$0xff]
        %v1025 = vld [vmem:[%s305 + $0xc58] sm:$0xff]
        %v1026 = vld [vmem:[%s305 + $0xc60] sm:$0xff]
        %v1027 = vld [vmem:[%s305 + $0xc68] sm:$0xff]
        %v1028 = vld [vmem:[%s305 + $0xc70] sm:$0xff]
        %v1029 = vld [vmem:[%s305 + $0xc78] sm:$0xff]
        %v1030 = vld [vmem:[%s305 + $0xc80] sm:$0xff]
        %v1031 = vld [vmem:[%s305 + $0xc88] sm:$0xff]
        %v1032 = vld [vmem:[%s305 + $0xc90] sm:$0xff]
        %v1033 = vld [vmem:[%s305 + $0xc98] sm:$0xff]
        %v1034 = vld [vmem:[%s305 + $0xca0] sm:$0xff]
        %v1035 = vld [vmem:[%s305 + $0xca8] sm:$0xff]
        %v1036 = vld [vmem:[%s305 + $0xcb0] sm:$0xff]
        %v1037 = vld [vmem:[%s305 + $0xcb8] sm:$0xff]
        %v1038 = vld [vmem:[%s305 + $0xcc0] sm:$0xff]
        %v1039 = vld [vmem:[%s305 + $0xcc8] sm:$0xff]
        %v1040 = vld [vmem:[%s305 + $0xcd0] sm:$0xff]
        %v1041 = vld [vmem:[%s305 + $0xcd8] sm:$0xff]
        %v1042 = vld [vmem:[%s305 + $0xce0] sm:$0xff]
        %v1043 = vld [vmem:[%s305 + $0xce8] sm:$0xff]
        %v1044 = vld [vmem:[%s305 + $0xcf0] sm:$0xff]
        %v1045 = vld [vmem:[%s305 + $0xcf8] sm:$0xff]
        %v1046 = vld [vmem:[%s305 + $0xd00] sm:$0xff]
        %v1047 = vld [vmem:[%s305 + $0xd08] sm:$0xff]
        %v1048 = vld [vmem:[%s305 + $0xd10] sm:$0xff]
        %v1049 = vld [vmem:[%s305 + $0xd18] sm:$0xff]
        %v1050 = vld [vmem:[%s305 + $0xd20] sm:$0xff]
        %v1051 = vld [vmem:[%s305 + $0xd28] sm:$0xff]
        %v1052 = vld [vmem:[%s305 + $0xd30] sm:$0xff]
        %v1053 = vld [vmem:[%s305 + $0xd38] sm:$0xff]
        %v1054 = vld [vmem:[%s305 + $0xd40] sm:$0xff]
        %v1055 = vld [vmem:[%s305 + $0xd48] sm:$0xff]
        %v1056 = vld [vmem:[%s305 + $0xd50] sm:$0xff]
        %v1057 = vld [vmem:[%s305 + $0xd58] sm:$0xff]
        %v1058 = vld [vmem:[%s305 + $0xd60] sm:$0xff]
        %v1059 = vld [vmem:[%s305 + $0xd68] sm:$0xff]
        %v1060 = vld [vmem:[%s305 + $0xd70] sm:$0xff]
        %v1061 = vld [vmem:[%s305 + $0xd78] sm:$0xff]
        %v1062 = vld [vmem:[%s305 + $0xd80] sm:$0xff]
        %v1063 = vld [vmem:[%s305 + $0xd88] sm:$0xff]
        %v1064 = vld [vmem:[%s305 + $0xd90] sm:$0xff]
        %v1065 = vld [vmem:[%s305 + $0xd98] sm:$0xff]
        %v1066 = vld [vmem:[%s305 + $0xda0] sm:$0xff]
        %v1067 = vld [vmem:[%s305 + $0xda8] sm:$0xff]
        %v1068 = vld [vmem:[%s305 + $0xdb0] sm:$0xff]
        %v1069 = vld [vmem:[%s305 + $0xdb8] sm:$0xff]
        %v1070 = vld [vmem:[%s305 + $0xdc0] sm:$0xff]
        %v1071 = vld [vmem:[%s305 + $0xdc8] sm:$0xff]
        %v1072 = vld [vmem:[%s305 + $0xdd0] sm:$0xff]
        %v1073 = vld [vmem:[%s305 + $0xdd8] sm:$0xff]
        %v1074 = vld [vmem:[%s305 + $0xde0] sm:$0xff]
        %v1075 = vld [vmem:[%s305 + $0xde8] sm:$0xff]
        %v1076 = vld [vmem:[%s305 + $0xdf0] sm:$0xff]
        %v1077 = vld [vmem:[%s305 + $0xdf8] sm:$0xff]
        %v1078 = vld [vmem:[%s305 + $0xe00] sm:$0xff]
        %v1079 = vld [vmem:[%s305 + $0xe08] sm:$0xff]
        %v1080 = vld [vmem:[%s305 + $0xe10] sm:$0xff]
        %v1081 = vld [vmem:[%s305 + $0xe18] sm:$0xff]
        %v1082 = vld [vmem:[%s305 + $0xe20] sm:$0xff]
        %v1083 = vld [vmem:[%s305 + $0xe28] sm:$0xff]
        %v1084 = vld [vmem:[%s305 + $0xe30] sm:$0xff]
        %v1085 = vld [vmem:[%s305 + $0xe38] sm:$0xff]
        %v1086 = vld [vmem:[%s305 + $0xe40] sm:$0xff]
        %v1087 = vld [vmem:[%s305 + $0xe48] sm:$0xff]
        %v1088 = vld [vmem:[%s305 + $0xe50] sm:$0xff]
        %v1089 = vld [vmem:[%s305 + $0xe58] sm:$0xff]
        %v1090 = vld [vmem:[%s305 + $0xe60] sm:$0xff]
        %v1091 = vld [vmem:[%s305 + $0xe68] sm:$0xff]
        %v1092 = vld [vmem:[%s305 + $0xe70] sm:$0xff]
        %v1093 = vld [vmem:[%s305 + $0xe78] sm:$0xff]
        %v1094 = vld [vmem:[%s305 + $0xe80] sm:$0xff]
        %v1095 = vld [vmem:[%s305 + $0xe88] sm:$0xff]
        %v1096 = vld [vmem:[%s305 + $0xe90] sm:$0xff]
        %v1097 = vld [vmem:[%s305 + $0xe98] sm:$0xff]
        %v1098 = vld [vmem:[%s305 + $0xea0] sm:$0xff]
        %v1099 = vld [vmem:[%s305 + $0xea8] sm:$0xff]
        %v1100 = vld [vmem:[%s305 + $0xeb0] sm:$0xff]
        %v1101 = vld [vmem:[%s305 + $0xeb8] sm:$0xff]
        %v1102 = vld [vmem:[%s305 + $0xec0] sm:$0xff]
        %v1103 = vld [vmem:[%s305 + $0xec8] sm:$0xff]
        %v1104 = vld [vmem:[%s305 + $0xed0] sm:$0xff]
        %v1105 = vld [vmem:[%s305 + $0xed8] sm:$0xff]
        %v1106 = vld [vmem:[%s305 + $0xee0] sm:$0xff]
        %v1107 = vld [vmem:[%s305 + $0xee8] sm:$0xff]
        %v1108 = vld [vmem:[%s305 + $0xef0] sm:$0xff]
        %v1109 = vld [vmem:[%s305 + $0xef8] sm:$0xff]
        %v1110 = vld [vmem:[%s305 + $0xf00] sm:$0xff]
        %v1111 = vld [vmem:[%s305 + $0xf08] sm:$0xff]
        %v1112 = vld [vmem:[%s305 + $0xf10] sm:$0xff]
        %v1113 = vld [vmem:[%s305 + $0xf18] sm:$0xff]
        %v1114 = vld [vmem:[%s305 + $0xf20] sm:$0xff]
        %v1115 = vld [vmem:[%s305 + $0xf28] sm:$0xff]
        %v1116 = vld [vmem:[%s305 + $0xf30] sm:$0xff]
        %v1117 = vld [vmem:[%s305 + $0xf38] sm:$0xff]
        %v1118 = vld [vmem:[%s305 + $0xf40] sm:$0xff]
        %v1119 = vld [vmem:[%s305 + $0xf48] sm:$0xff]
        %v1120 = vld [vmem:[%s305 + $0xf50] sm:$0xff]
        %v1121 = vld [vmem:[%s305 + $0xf58] sm:$0xff]
        %v1122 = vld [vmem:[%s305 + $0xf60] sm:$0xff]
        %v1123 = vld [vmem:[%s305 + $0xf68] sm:$0xff]
        %v1124 = vld [vmem:[%s305 + $0xf70] sm:$0xff]
        %v1125 = vld [vmem:[%s305 + $0xf78] sm:$0xff]
        %v1126 = vld [vmem:[%s305 + $0xf80] sm:$0xff]
        %v1127 = vld [vmem:[%s305 + $0xf88] sm:$0xff]
        %v1128 = vld [vmem:[%s305 + $0xf90] sm:$0xff]
        %v1129 = vld [vmem:[%s305 + $0xf98] sm:$0xff]
        %v1130 = vld [vmem:[%s305 + $0xfa0] sm:$0xff]
        %v1131 = vld [vmem:[%s305 + $0xfa8] sm:$0xff]
        %v1132 = vld [vmem:[%s305 + $0xfb0] sm:$0xff]
        %v1133 = vld [vmem:[%s305 + $0xfb8] sm:$0xff]
        %v1134 = vld [vmem:[%s305 + $0xfc0] sm:$0xff]
        %v1135 = vld [vmem:[%s305 + $0xfc8] sm:$0xff]
        %v1136 = vld [vmem:[%s305 + $0xfd0] sm:$0xff]
        %v1137 = vld [vmem:[%s305 + $0xfd8] sm:$0xff]
        %v1138 = vld [vmem:[%s305 + $0xfe0] sm:$0xff]
        %v1139 = vld [vmem:[%s305 + $0xfe8] sm:$0xff]
        %v1140 = vld [vmem:[%s305 + $0xff0] sm:$0xff]
        %v1141 = vld [vmem:[%s305 + $0xff8] sm:$0xff]
        %v1142 = vld [vmem:[%s305 + $0x1000] sm:$0xff]
        %v1143 = vld [vmem:[%s305 + $0x1008] sm:$0xff]
        %v1144 = vld [vmem:[%s305 + $0x1010] sm:$0xff]
        %v1145 = vld [vmem:[%s305 + $0x1018] sm:$0xff]
        %v1146 = vld [vmem:[%s305 + $0x1020] sm:$0xff]
        %v1147 = vld [vmem:[%s305 + $0x1028] sm:$0xff]
        %v1148 = vld [vmem:[%s305 + $0x1030] sm:$0xff]
        %v1149 = vld [vmem:[%s305 + $0x1038] sm:$0xff]
        %v1150 = vld [vmem:[%s305 + $0x1040] sm:$0xff]
        %v1151 = vld [vmem:[%s305 + $0x1048] sm:$0xff]
        %v1152 = vld [vmem:[%s305 + $0x1050] sm:$0xff]
        %v1153 = vld [vmem:[%s305 + $0x1058] sm:$0xff]
        %v1154 = vld [vmem:[%s305 + $0x1060] sm:$0xff]
        %v1155 = vld [vmem:[%s305 + $0x1068] sm:$0xff]
        %v1156 = vld [vmem:[%s305 + $0x1070] sm:$0xff]
        %v1157 = vld [vmem:[%s305 + $0x1078] sm:$0xff]
        %v1158 = vld [vmem:[%s305 + $0x1080] sm:$0xff]
        %v1159 = vld [vmem:[%s305 + $0x1088] sm:$0xff]
        %v1160 = vld [vmem:[%s305 + $0x1090] sm:$0xff]
        %v1161 = vld [vmem:[%s305 + $0x1098] sm:$0xff]
        %v1162 = vld [vmem:[%s305 + $0x10a0] sm:$0xff]
        %v1163 = vld [vmem:[%s305 + $0x10a8] sm:$0xff]
        %v1164 = vld [vmem:[%s305 + $0x10b0] sm:$0xff]
        %v1165 = vld [vmem:[%s305 + $0x10b8] sm:$0xff]
        %v1166 = vld [vmem:[%s305 + $0x10c0] sm:$0xff]
        %v1167 = vld [vmem:[%s305 + $0x10c8] sm:$0xff]
        %v1168 = vld [vmem:[%s305 + $0x10d0] sm:$0xff]
        %v1169 = vld [vmem:[%s305 + $0x10d8] sm:$0xff]
        %v1170 = vld [vmem:[%s305 + $0x10e0] sm:$0xff]
        %v1171 = vld [vmem:[%s305 + $0x10e8] sm:$0xff]
        %v1172 = vld [vmem:[%s305 + $0x10f0] sm:$0xff]
        %v1173 = vld [vmem:[%s305 + $0x10f8] sm:$0xff]
        %v1174 = vld [vmem:[%s305 + $0x1100] sm:$0xff]
        %v1175 = vld [vmem:[%s305 + $0x1108] sm:$0xff]
        %v1176 = vld [vmem:[%s305 + $0x1110] sm:$0xff]
        %v1177 = vld [vmem:[%s305 + $0x1118] sm:$0xff]
        %v1178 = vld [vmem:[%s305 + $0x1120] sm:$0xff]
        %v1179 = vld [vmem:[%s305 + $0x1128] sm:$0xff]
        %v1180 = vld [vmem:[%s305 + $0x1130] sm:$0xff]
        %v1181 = vld [vmem:[%s305 + $0x1138] sm:$0xff]
        %v1182 = vld [vmem:[%s305 + $0x1140] sm:$0xff]
        %v1183 = vld [vmem:[%s305 + $0x1148] sm:$0xff]
        %v1184 = vld [vmem:[%s305 + $0x1150] sm:$0xff]
        %v1185 = vld [vmem:[%s305 + $0x1158] sm:$0xff]
        %v1186 = vld [vmem:[%s305 + $0x1160] sm:$0xff]
        %v1187 = vld [vmem:[%s305 + $0x1168] sm:$0xff]
        %v1188 = vld [vmem:[%s305 + $0x1170] sm:$0xff]
        %v1189 = vld [vmem:[%s305 + $0x1178] sm:$0xff]
        %v1190 = vld [vmem:[%s305 + $0x1180] sm:$0xff]
        %v1191 = vld [vmem:[%s305 + $0x1188] sm:$0xff]
        %v1192 = vld [vmem:[%s305 + $0x1190] sm:$0xff]
        %v1193 = vld [vmem:[%s305 + $0x1198] sm:$0xff]
        %v1194 = vld [vmem:[%s305 + $0x11a0] sm:$0xff]
        %v1195 = vld [vmem:[%s305 + $0x11a8] sm:$0xff]
        %v1196 = vld [vmem:[%s305 + $0x11b0] sm:$0xff]
        %v1197 = vld [vmem:[%s305 + $0x11b8] sm:$0xff]
        %v1198 = vld [vmem:[%s305 + $0x11c0] sm:$0xff]
        %v1199 = vld [vmem:[%s305 + $0x11c8] sm:$0xff]
        %v1200 = vld [vmem:[%s305 + $0x11d0] sm:$0xff]
        %v1201 = vld [vmem:[%s305 + $0x11d8] sm:$0xff]
        %v1202 = vld [vmem:[%s305 + $0x11e0] sm:$0xff]
        %v1203 = vld [vmem:[%s305 + $0x11e8] sm:$0xff]
        %v1204 = vld [vmem:[%s305 + $0x11f0] sm:$0xff]
        %v1205 = vld [vmem:[%s305 + $0x11f8] sm:$0xff]
        %v1206 = vld [vmem:[%s305 + $0x1200] sm:$0xff]
        %v1207 = vld [vmem:[%s305 + $0x1208] sm:$0xff]
        %v1208 = vld [vmem:[%s305 + $0x1210] sm:$0xff]
        %v1209 = vld [vmem:[%s305 + $0x1218] sm:$0xff]
        %v1210 = vld [vmem:[%s305 + $0x1220] sm:$0xff]
        %v1211 = vld [vmem:[%s305 + $0x1228] sm:$0xff]
        %v1212 = vld [vmem:[%s305 + $0x1230] sm:$0xff]
        %v1213 = vld [vmem:[%s305 + $0x1238] sm:$0xff]
        %v1214 = vld [vmem:[%s305 + $0x1240] sm:$0xff]
        %v1215 = vld [vmem:[%s305 + $0x1248] sm:$0xff]
        %v1216 = vld [vmem:[%s305 + $0x1250] sm:$0xff]
        %v1217 = vld [vmem:[%s305 + $0x1258] sm:$0xff]
        %v1218 = vld [vmem:[%s305 + $0x1260] sm:$0xff]
        %v1219 = vld [vmem:[%s305 + $0x1268] sm:$0xff]
        %v1220 = vld [vmem:[%s305 + $0x1270] sm:$0xff]
        %v1221 = vld [vmem:[%s305 + $0x1278] sm:$0xff]
        %v1222 = vld [vmem:[%s305 + $0x1280] sm:$0xff]
        %v1223 = vld [vmem:[%s305 + $0x1288] sm:$0xff]
        %v1224 = vld [vmem:[%s305 + $0x1290] sm:$0xff]
        %v1225 = vld [vmem:[%s305 + $0x1298] sm:$0xff]
        %v1226 = vld [vmem:[%s305 + $0x12a0] sm:$0xff]
        %v1227 = vld [vmem:[%s305 + $0x12a8] sm:$0xff]
        %v1228 = vld [vmem:[%s305 + $0x12b0] sm:$0xff]
        %v1229 = vld [vmem:[%s305 + $0x12b8] sm:$0xff]
        %v1230 = vld [vmem:[%s305 + $0x12c0] sm:$0xff]
        %v1231 = vld [vmem:[%s305 + $0x12c8] sm:$0xff]
        %v1232 = vld [vmem:[%s305 + $0x12d0] sm:$0xff]
        %v1233 = vld [vmem:[%s305 + $0x12d8] sm:$0xff]
        %v1234 = vld [vmem:[%s305 + $0x12e0] sm:$0xff]
        %v1235 = vld [vmem:[%s305 + $0x12e8] sm:$0xff]
        %v1236 = vld [vmem:[%s305 + $0x12f0] sm:$0xff]
        %v1237 = vld [vmem:[%s305 + $0x12f8] sm:$0xff]
        %v1238 = vld [vmem:[%s305 + $0x1300] sm:$0xff]
        %v1239 = vld [vmem:[%s305 + $0x1308] sm:$0xff]
        %v1240 = vld [vmem:[%s305 + $0x1310] sm:$0xff]
        %v1241 = vld [vmem:[%s305 + $0x1318] sm:$0xff]
        %v1242 = vld [vmem:[%s305 + $0x1320] sm:$0xff]
        %v1243 = vld [vmem:[%s305 + $0x1328] sm:$0xff]
        %v1244 = vld [vmem:[%s305 + $0x1330] sm:$0xff]
        %v1245 = vld [vmem:[%s305 + $0x1338] sm:$0xff]
        %v1246 = vld [vmem:[%s305 + $0x1340] sm:$0xff]
        %v1247 = vld [vmem:[%s305 + $0x1348] sm:$0xff]
        %v1248 = vld [vmem:[%s305 + $0x1350] sm:$0xff]
        %v1249 = vld [vmem:[%s305 + $0x1358] sm:$0xff]
        %v1250 = vld [vmem:[%s305 + $0x1360] sm:$0xff]
        %v1251 = vld [vmem:[%s305 + $0x1368] sm:$0xff]
        %v1252 = vld [vmem:[%s305 + $0x1370] sm:$0xff]
        %v1253 = vld [vmem:[%s305 + $0x1378] sm:$0xff]
        %v1254 = vld [vmem:[%s305 + $0x1380] sm:$0xff]
        %v1255 = vld [vmem:[%s305 + $0x1388] sm:$0xff]
        %v1256 = vld [vmem:[%s305 + $0x1390] sm:$0xff]
        %v1257 = vld [vmem:[%s305 + $0x1398] sm:$0xff]
        %v1258 = vld [vmem:[%s305 + $0x13a0] sm:$0xff]
        %v1259 = vld [vmem:[%s305 + $0x13a8] sm:$0xff]
        %v1260 = vld [vmem:[%s305 + $0x13b0] sm:$0xff]
        %v1261 = vld [vmem:[%s305 + $0x13b8] sm:$0xff]
        %v1262 = vld [vmem:[%s305 + $0x13c0] sm:$0xff]
        %v1263 = vld [vmem:[%s305 + $0x13c8] sm:$0xff]
        %v1264 = vld [vmem:[%s305 + $0x13d0] sm:$0xff]
        %v1265 = vld [vmem:[%s305 + $0x13d8] sm:$0xff]
        %v1266 = vld [vmem:[%s305 + $0x13e0] sm:$0xff]
        %v1267 = vld [vmem:[%s305 + $0x13e8] sm:$0xff]
        %v1268 = vld [vmem:[%s305 + $0x13f0] sm:$0xff]
        %v1269 = vld [vmem:[%s305 + $0x13f8] sm:$0xff]
        %v1270 = vunpack.c.l.s8.bf16 %v630
        %v1271 = vunpack.c.l.s8.bf16 %v631
        %v1272 = vunpack.c.l.s8.bf16 %v632
        %v1273 = vunpack.c.l.s8.bf16 %v633
        %v1274 = vunpack.c.l.s8.bf16 %v634
        %v1275 = vunpack.c.l.s8.bf16 %v635
        %v1276 = vunpack.c.l.s8.bf16 %v636
        %v1277 = vunpack.c.l.s8.bf16 %v637
        %v1278 = vunpack.c.l.s8.bf16 %v638
        %v1279 = vunpack.c.l.s8.bf16 %v639
        %v1280 = vunpack.c.l.s8.bf16 %v640
        %v1281 = vunpack.c.l.s8.bf16 %v641
        %v1282 = vunpack.c.l.s8.bf16 %v642
        %v1283 = vunpack.c.l.s8.bf16 %v643
        %v1284 = vunpack.c.l.s8.bf16 %v644
        %v1285 = vunpack.c.l.s8.bf16 %v645
        %v1286 = vunpack.c.l.s8.bf16 %v646
        %v1287 = vunpack.c.l.s8.bf16 %v647
        %v1288 = vunpack.c.l.s8.bf16 %v648
        %v1289 = vunpack.c.l.s8.bf16 %v649
        %v1290 = vunpack.c.l.s8.bf16 %v650
        %v1291 = vunpack.c.l.s8.bf16 %v651
        %v1292 = vunpack.c.l.s8.bf16 %v652
        %v1293 = vunpack.c.l.s8.bf16 %v653
        %v1294 = vunpack.c.l.s8.bf16 %v654
        %v1295 = vunpack.c.l.s8.bf16 %v655
        %v1296 = vunpack.c.l.s8.bf16 %v656
        %v1297 = vunpack.c.l.s8.bf16 %v657
        %v1298 = vunpack.c.l.s8.bf16 %v658
        %v1299 = vunpack.c.l.s8.bf16 %v659
        %v1300 = vunpack.c.l.s8.bf16 %v660
        %v1301 = vunpack.c.l.s8.bf16 %v661
        %v1302 = vunpack.c.l.s8.bf16 %v662
        %v1303 = vunpack.c.l.s8.bf16 %v663
        %v1304 = vunpack.c.l.s8.bf16 %v664
        %v1305 = vunpack.c.l.s8.bf16 %v665
        %v1306 = vunpack.c.l.s8.bf16 %v666
        %v1307 = vunpack.c.l.s8.bf16 %v667
        %v1308 = vunpack.c.l.s8.bf16 %v668
        %v1309 = vunpack.c.l.s8.bf16 %v669
        %v1310 = vunpack.c.h.s8.bf16 %v630
        %v1311 = vunpack.c.h.s8.bf16 %v631
        %v1312 = vunpack.c.h.s8.bf16 %v632
        %v1313 = vunpack.c.h.s8.bf16 %v633
        %v1314 = vunpack.c.h.s8.bf16 %v634
        %v1315 = vunpack.c.h.s8.bf16 %v635
        %v1316 = vunpack.c.h.s8.bf16 %v636
        %v1317 = vunpack.c.h.s8.bf16 %v637
        %v1318 = vunpack.c.h.s8.bf16 %v638
        %v1319 = vunpack.c.h.s8.bf16 %v639
        %v1320 = vunpack.c.h.s8.bf16 %v640
        %v1321 = vunpack.c.h.s8.bf16 %v641
        %v1322 = vunpack.c.h.s8.bf16 %v642
        %v1323 = vunpack.c.h.s8.bf16 %v643
        %v1324 = vunpack.c.h.s8.bf16 %v644
        %v1325 = vunpack.c.h.s8.bf16 %v645
        %v1326 = vunpack.c.h.s8.bf16 %v646
        %v1327 = vunpack.c.h.s8.bf16 %v647
        %v1328 = vunpack.c.h.s8.bf16 %v648
        %v1329 = vunpack.c.h.s8.bf16 %v649
        %v1330 = vunpack.c.h.s8.bf16 %v650
        %v1331 = vunpack.c.h.s8.bf16 %v651
        %v1332 = vunpack.c.h.s8.bf16 %v652
        %v1333 = vunpack.c.h.s8.bf16 %v653
        %v1334 = vunpack.c.h.s8.bf16 %v654
        %v1335 = vunpack.c.h.s8.bf16 %v655
        %v1336 = vunpack.c.h.s8.bf16 %v656
        %v1337 = vunpack.c.h.s8.bf16 %v657
        %v1338 = vunpack.c.h.s8.bf16 %v658
        %v1339 = vunpack.c.h.s8.bf16 %v659
        %v1340 = vunpack.c.h.s8.bf16 %v660
        %v1341 = vunpack.c.h.s8.bf16 %v661
        %v1342 = vunpack.c.h.s8.bf16 %v662
        %v1343 = vunpack.c.h.s8.bf16 %v663
        %v1344 = vunpack.c.h.s8.bf16 %v664
        %v1345 = vunpack.c.h.s8.bf16 %v665
        %v1346 = vunpack.c.h.s8.bf16 %v666
        %v1347 = vunpack.c.h.s8.bf16 %v667
        %v1348 = vunpack.c.h.s8.bf16 %v668
        %v1349 = vunpack.c.h.s8.bf16 %v669
        %v1350 = vunpack.c.l.s8.bf16 %v670
        %v1351 = vunpack.c.l.s8.bf16 %v671
        %v1352 = vunpack.c.l.s8.bf16 %v672
        %v1353 = vunpack.c.l.s8.bf16 %v673
        %v1354 = vunpack.c.l.s8.bf16 %v674
        %v1355 = vunpack.c.l.s8.bf16 %v675
        %v1356 = vunpack.c.l.s8.bf16 %v676
        %v1357 = vunpack.c.l.s8.bf16 %v677
        %v1358 = vunpack.c.l.s8.bf16 %v678
        %v1359 = vunpack.c.l.s8.bf16 %v679
        %v1360 = vunpack.c.l.s8.bf16 %v680
        %v1361 = vunpack.c.l.s8.bf16 %v681
        %v1362 = vunpack.c.l.s8.bf16 %v682
        %v1363 = vunpack.c.l.s8.bf16 %v683
        %v1364 = vunpack.c.l.s8.bf16 %v684
        %v1365 = vunpack.c.l.s8.bf16 %v685
        %v1366 = vunpack.c.l.s8.bf16 %v686
        %v1367 = vunpack.c.l.s8.bf16 %v687
        %v1368 = vunpack.c.l.s8.bf16 %v688
        %v1369 = vunpack.c.l.s8.bf16 %v689
        %v1370 = vunpack.c.l.s8.bf16 %v690
        %v1371 = vunpack.c.l.s8.bf16 %v691
        %v1372 = vunpack.c.l.s8.bf16 %v692
        %v1373 = vunpack.c.l.s8.bf16 %v693
        %v1374 = vunpack.c.l.s8.bf16 %v694
        %v1375 = vunpack.c.l.s8.bf16 %v695
        %v1376 = vunpack.c.l.s8.bf16 %v696
        %v1377 = vunpack.c.l.s8.bf16 %v697
        %v1378 = vunpack.c.l.s8.bf16 %v698
        %v1379 = vunpack.c.l.s8.bf16 %v699
        %v1380 = vunpack.c.l.s8.bf16 %v700
        %v1381 = vunpack.c.l.s8.bf16 %v701
        %v1382 = vunpack.c.l.s8.bf16 %v702
        %v1383 = vunpack.c.l.s8.bf16 %v703
        %v1384 = vunpack.c.l.s8.bf16 %v704
        %v1385 = vunpack.c.l.s8.bf16 %v705
        %v1386 = vunpack.c.l.s8.bf16 %v706
        %v1387 = vunpack.c.l.s8.bf16 %v707
        %v1388 = vunpack.c.l.s8.bf16 %v708
        %v1389 = vunpack.c.l.s8.bf16 %v709
        %v1390 = vunpack.c.h.s8.bf16 %v670
        %v1391 = vunpack.c.h.s8.bf16 %v671
        %v1392 = vunpack.c.h.s8.bf16 %v672
        %v1393 = vunpack.c.h.s8.bf16 %v673
        %v1394 = vunpack.c.h.s8.bf16 %v674
        %v1395 = vunpack.c.h.s8.bf16 %v675
        %v1396 = vunpack.c.h.s8.bf16 %v676
        %v1397 = vunpack.c.h.s8.bf16 %v677
        %v1398 = vunpack.c.h.s8.bf16 %v678
        %v1399 = vunpack.c.h.s8.bf16 %v679
        %v1400 = vunpack.c.h.s8.bf16 %v680
        %v1401 = vunpack.c.h.s8.bf16 %v681
        %v1402 = vunpack.c.h.s8.bf16 %v682
        %v1403 = vunpack.c.h.s8.bf16 %v683
        %v1404 = vunpack.c.h.s8.bf16 %v684
        %v1405 = vunpack.c.h.s8.bf16 %v685
        %v1406 = vunpack.c.h.s8.bf16 %v686
        %v1407 = vunpack.c.h.s8.bf16 %v687
        %v1408 = vunpack.c.h.s8.bf16 %v688
        %v1409 = vunpack.c.h.s8.bf16 %v689
        %v1410 = vunpack.c.h.s8.bf16 %v690
        %v1411 = vunpack.c.h.s8.bf16 %v691
        %v1412 = vunpack.c.h.s8.bf16 %v692
        %v1413 = vunpack.c.h.s8.bf16 %v693
        %v1414 = vunpack.c.h.s8.bf16 %v694
        %v1415 = vunpack.c.h.s8.bf16 %v695
        %v1416 = vunpack.c.h.s8.bf16 %v696
        %v1417 = vunpack.c.h.s8.bf16 %v697
        %v1418 = vunpack.c.h.s8.bf16 %v698
        %v1419 = vunpack.c.h.s8.bf16 %v699
        %v1420 = vunpack.c.h.s8.bf16 %v700
        %v1421 = vunpack.c.h.s8.bf16 %v701
        %v1422 = vunpack.c.h.s8.bf16 %v702
        %v1423 = vunpack.c.h.s8.bf16 %v703
        %v1424 = vunpack.c.h.s8.bf16 %v704
        %v1425 = vunpack.c.h.s8.bf16 %v705
        %v1426 = vunpack.c.h.s8.bf16 %v706
        %v1427 = vunpack.c.h.s8.bf16 %v707
        %v1428 = vunpack.c.h.s8.bf16 %v708
        %v1429 = vunpack.c.h.s8.bf16 %v709
        %v1430 = vunpack.c.l.s8.bf16 %v710
        %v1431 = vunpack.c.l.s8.bf16 %v711
        %v1432 = vunpack.c.l.s8.bf16 %v712
        %v1433 = vunpack.c.l.s8.bf16 %v713
        %v1434 = vunpack.c.l.s8.bf16 %v714
        %v1435 = vunpack.c.l.s8.bf16 %v715
        %v1436 = vunpack.c.l.s8.bf16 %v716
        %v1437 = vunpack.c.l.s8.bf16 %v717
        %v1438 = vunpack.c.l.s8.bf16 %v718
        %v1439 = vunpack.c.l.s8.bf16 %v719
        %v1440 = vunpack.c.l.s8.bf16 %v720
        %v1441 = vunpack.c.l.s8.bf16 %v721
        %v1442 = vunpack.c.l.s8.bf16 %v722
        %v1443 = vunpack.c.l.s8.bf16 %v723
        %v1444 = vunpack.c.l.s8.bf16 %v724
        %v1445 = vunpack.c.l.s8.bf16 %v725
        %v1446 = vunpack.c.l.s8.bf16 %v726
        %v1447 = vunpack.c.l.s8.bf16 %v727
        %v1448 = vunpack.c.l.s8.bf16 %v728
        %v1449 = vunpack.c.l.s8.bf16 %v729
        %v1450 = vunpack.c.l.s8.bf16 %v730
        %v1451 = vunpack.c.l.s8.bf16 %v731
        %v1452 = vunpack.c.l.s8.bf16 %v732
        %v1453 = vunpack.c.l.s8.bf16 %v733
        %v1454 = vunpack.c.l.s8.bf16 %v734
        %v1455 = vunpack.c.l.s8.bf16 %v735
        %v1456 = vunpack.c.l.s8.bf16 %v736
        %v1457 = vunpack.c.l.s8.bf16 %v737
        %v1458 = vunpack.c.l.s8.bf16 %v738
        %v1459 = vunpack.c.l.s8.bf16 %v739
        %v1460 = vunpack.c.l.s8.bf16 %v740
        %v1461 = vunpack.c.l.s8.bf16 %v741
        %v1462 = vunpack.c.l.s8.bf16 %v742
        %v1463 = vunpack.c.l.s8.bf16 %v743
        %v1464 = vunpack.c.l.s8.bf16 %v744
        %v1465 = vunpack.c.l.s8.bf16 %v745
        %v1466 = vunpack.c.l.s8.bf16 %v746
        %v1467 = vunpack.c.l.s8.bf16 %v747
        %v1468 = vunpack.c.l.s8.bf16 %v748
        %v1469 = vunpack.c.l.s8.bf16 %v749
        %v1470 = vunpack.c.h.s8.bf16 %v710
        %v1471 = vunpack.c.h.s8.bf16 %v711
        %v1472 = vunpack.c.h.s8.bf16 %v712
        %v1473 = vunpack.c.h.s8.bf16 %v713
        %v1474 = vunpack.c.h.s8.bf16 %v714
        %v1475 = vunpack.c.h.s8.bf16 %v715
        %v1476 = vunpack.c.h.s8.bf16 %v716
        %v1477 = vunpack.c.h.s8.bf16 %v717
        %v1478 = vunpack.c.h.s8.bf16 %v718
        %v1479 = vunpack.c.h.s8.bf16 %v719
        %v1480 = vunpack.c.h.s8.bf16 %v720
        %v1481 = vunpack.c.h.s8.bf16 %v721
        %v1482 = vunpack.c.h.s8.bf16 %v722
        %v1483 = vunpack.c.h.s8.bf16 %v723
        %v1484 = vunpack.c.h.s8.bf16 %v724
        %v1485 = vunpack.c.h.s8.bf16 %v725
        %v1486 = vunpack.c.h.s8.bf16 %v726
        %v1487 = vunpack.c.h.s8.bf16 %v727
        %v1488 = vunpack.c.h.s8.bf16 %v728
        %v1489 = vunpack.c.h.s8.bf16 %v729
        %v1490 = vunpack.c.h.s8.bf16 %v730
        %v1491 = vunpack.c.h.s8.bf16 %v731
        %v1492 = vunpack.c.h.s8.bf16 %v732
        %v1493 = vunpack.c.h.s8.bf16 %v733
        %v1494 = vunpack.c.h.s8.bf16 %v734
        %v1495 = vunpack.c.h.s8.bf16 %v735
        %v1496 = vunpack.c.h.s8.bf16 %v736
        %v1497 = vunpack.c.h.s8.bf16 %v737
        %v1498 = vunpack.c.h.s8.bf16 %v738
        %v1499 = vunpack.c.h.s8.bf16 %v739
        %v1500 = vunpack.c.h.s8.bf16 %v740
        %v1501 = vunpack.c.h.s8.bf16 %v741
        %v1502 = vunpack.c.h.s8.bf16 %v742
        %v1503 = vunpack.c.h.s8.bf16 %v743
        %v1504 = vunpack.c.h.s8.bf16 %v744
        %v1505 = vunpack.c.h.s8.bf16 %v745
        %v1506 = vunpack.c.h.s8.bf16 %v746
        %v1507 = vunpack.c.h.s8.bf16 %v747
        %v1508 = vunpack.c.h.s8.bf16 %v748
        %v1509 = vunpack.c.h.s8.bf16 %v749
        %v1510 = vunpack.c.l.s8.bf16 %v750
        %v1511 = vunpack.c.l.s8.bf16 %v751
        %v1512 = vunpack.c.l.s8.bf16 %v752
        %v1513 = vunpack.c.l.s8.bf16 %v753
        %v1514 = vunpack.c.l.s8.bf16 %v754
        %v1515 = vunpack.c.l.s8.bf16 %v755
        %v1516 = vunpack.c.l.s8.bf16 %v756
        %v1517 = vunpack.c.l.s8.bf16 %v757
        %v1518 = vunpack.c.l.s8.bf16 %v758
        %v1519 = vunpack.c.l.s8.bf16 %v759
        %v1520 = vunpack.c.l.s8.bf16 %v760
        %v1521 = vunpack.c.l.s8.bf16 %v761
        %v1522 = vunpack.c.l.s8.bf16 %v762
        %v1523 = vunpack.c.l.s8.bf16 %v763
        %v1524 = vunpack.c.l.s8.bf16 %v764
        %v1525 = vunpack.c.l.s8.bf16 %v765
        %v1526 = vunpack.c.l.s8.bf16 %v766
        %v1527 = vunpack.c.l.s8.bf16 %v767
        %v1528 = vunpack.c.l.s8.bf16 %v768
        %v1529 = vunpack.c.l.s8.bf16 %v769
        %v1530 = vunpack.c.l.s8.bf16 %v770
        %v1531 = vunpack.c.l.s8.bf16 %v771
        %v1532 = vunpack.c.l.s8.bf16 %v772
        %v1533 = vunpack.c.l.s8.bf16 %v773
        %v1534 = vunpack.c.l.s8.bf16 %v774
        %v1535 = vunpack.c.l.s8.bf16 %v775
        %v1536 = vunpack.c.l.s8.bf16 %v776
        %v1537 = vunpack.c.l.s8.bf16 %v777
        %v1538 = vunpack.c.l.s8.bf16 %v778
        %v1539 = vunpack.c.l.s8.bf16 %v779
        %v1540 = vunpack.c.l.s8.bf16 %v780
        %v1541 = vunpack.c.l.s8.bf16 %v781
        %v1542 = vunpack.c.l.s8.bf16 %v782
        %v1543 = vunpack.c.l.s8.bf16 %v783
        %v1544 = vunpack.c.l.s8.bf16 %v784
        %v1545 = vunpack.c.l.s8.bf16 %v785
        %v1546 = vunpack.c.l.s8.bf16 %v786
        %v1547 = vunpack.c.l.s8.bf16 %v787
        %v1548 = vunpack.c.l.s8.bf16 %v788
        %v1549 = vunpack.c.l.s8.bf16 %v789
        %v1550 = vunpack.c.h.s8.bf16 %v750
        %v1551 = vunpack.c.h.s8.bf16 %v751
        %v1552 = vunpack.c.h.s8.bf16 %v752
        %v1553 = vunpack.c.h.s8.bf16 %v753
        %v1554 = vunpack.c.h.s8.bf16 %v754
        %v1555 = vunpack.c.h.s8.bf16 %v755
        %v1556 = vunpack.c.h.s8.bf16 %v756
        %v1557 = vunpack.c.h.s8.bf16 %v757
        %v1558 = vunpack.c.h.s8.bf16 %v758
        %v1559 = vunpack.c.h.s8.bf16 %v759
        %v1560 = vunpack.c.h.s8.bf16 %v760
        %v1561 = vunpack.c.h.s8.bf16 %v761
        %v1562 = vunpack.c.h.s8.bf16 %v762
        %v1563 = vunpack.c.h.s8.bf16 %v763
        %v1564 = vunpack.c.h.s8.bf16 %v764
        %v1565 = vunpack.c.h.s8.bf16 %v765
        %v1566 = vunpack.c.h.s8.bf16 %v766
        %v1567 = vunpack.c.h.s8.bf16 %v767
        %v1568 = vunpack.c.h.s8.bf16 %v768
        %v1569 = vunpack.c.h.s8.bf16 %v769
        %v1570 = vunpack.c.h.s8.bf16 %v770
        %v1571 = vunpack.c.h.s8.bf16 %v771
        %v1572 = vunpack.c.h.s8.bf16 %v772
        %v1573 = vunpack.c.h.s8.bf16 %v773
        %v1574 = vunpack.c.h.s8.bf16 %v774
        %v1575 = vunpack.c.h.s8.bf16 %v775
        %v1576 = vunpack.c.h.s8.bf16 %v776
        %v1577 = vunpack.c.h.s8.bf16 %v777
        %v1578 = vunpack.c.h.s8.bf16 %v778
        %v1579 = vunpack.c.h.s8.bf16 %v779
        %v1580 = vunpack.c.h.s8.bf16 %v780
        %v1581 = vunpack.c.h.s8.bf16 %v781
        %v1582 = vunpack.c.h.s8.bf16 %v782
        %v1583 = vunpack.c.h.s8.bf16 %v783
        %v1584 = vunpack.c.h.s8.bf16 %v784
        %v1585 = vunpack.c.h.s8.bf16 %v785
        %v1586 = vunpack.c.h.s8.bf16 %v786
        %v1587 = vunpack.c.h.s8.bf16 %v787
        %v1588 = vunpack.c.h.s8.bf16 %v788
        %v1589 = vunpack.c.h.s8.bf16 %v789
        %v1590 = vunpack.c.l.s8.bf16 %v790
        %v1591 = vunpack.c.l.s8.bf16 %v791
        %v1592 = vunpack.c.l.s8.bf16 %v792
        %v1593 = vunpack.c.l.s8.bf16 %v793
        %v1594 = vunpack.c.l.s8.bf16 %v794
        %v1595 = vunpack.c.l.s8.bf16 %v795
        %v1596 = vunpack.c.l.s8.bf16 %v796
        %v1597 = vunpack.c.l.s8.bf16 %v797
        %v1598 = vunpack.c.l.s8.bf16 %v798
        %v1599 = vunpack.c.l.s8.bf16 %v799
        %v1600 = vunpack.c.l.s8.bf16 %v800
        %v1601 = vunpack.c.l.s8.bf16 %v801
        %v1602 = vunpack.c.l.s8.bf16 %v802
        %v1603 = vunpack.c.l.s8.bf16 %v803
        %v1604 = vunpack.c.l.s8.bf16 %v804
        %v1605 = vunpack.c.l.s8.bf16 %v805
        %v1606 = vunpack.c.l.s8.bf16 %v806
        %v1607 = vunpack.c.l.s8.bf16 %v807
        %v1608 = vunpack.c.l.s8.bf16 %v808
        %v1609 = vunpack.c.l.s8.bf16 %v809
        %v1610 = vunpack.c.l.s8.bf16 %v810
        %v1611 = vunpack.c.l.s8.bf16 %v811
        %v1612 = vunpack.c.l.s8.bf16 %v812
        %v1613 = vunpack.c.l.s8.bf16 %v813
        %v1614 = vunpack.c.l.s8.bf16 %v814
        %v1615 = vunpack.c.l.s8.bf16 %v815
        %v1616 = vunpack.c.l.s8.bf16 %v816
        %v1617 = vunpack.c.l.s8.bf16 %v817
        %v1618 = vunpack.c.l.s8.bf16 %v818
        %v1619 = vunpack.c.l.s8.bf16 %v819
        %v1620 = vunpack.c.l.s8.bf16 %v820
        %v1621 = vunpack.c.l.s8.bf16 %v821
        %v1622 = vunpack.c.l.s8.bf16 %v822
        %v1623 = vunpack.c.l.s8.bf16 %v823
        %v1624 = vunpack.c.l.s8.bf16 %v824
        %v1625 = vunpack.c.l.s8.bf16 %v825
        %v1626 = vunpack.c.l.s8.bf16 %v826
        %v1627 = vunpack.c.l.s8.bf16 %v827
        %v1628 = vunpack.c.l.s8.bf16 %v828
        %v1629 = vunpack.c.l.s8.bf16 %v829
        %v1630 = vunpack.c.h.s8.bf16 %v790
        %v1631 = vunpack.c.h.s8.bf16 %v791
        %v1632 = vunpack.c.h.s8.bf16 %v792
        %v1633 = vunpack.c.h.s8.bf16 %v793
        %v1634 = vunpack.c.h.s8.bf16 %v794
        %v1635 = vunpack.c.h.s8.bf16 %v795
        %v1636 = vunpack.c.h.s8.bf16 %v796
        %v1637 = vunpack.c.h.s8.bf16 %v797
        %v1638 = vunpack.c.h.s8.bf16 %v798
        %v1639 = vunpack.c.h.s8.bf16 %v799
        %v1640 = vunpack.c.h.s8.bf16 %v800
        %v1641 = vunpack.c.h.s8.bf16 %v801
        %v1642 = vunpack.c.h.s8.bf16 %v802
        %v1643 = vunpack.c.h.s8.bf16 %v803
        %v1644 = vunpack.c.h.s8.bf16 %v804
        %v1645 = vunpack.c.h.s8.bf16 %v805
        %v1646 = vunpack.c.h.s8.bf16 %v806
        %v1647 = vunpack.c.h.s8.bf16 %v807
        %v1648 = vunpack.c.h.s8.bf16 %v808
        %v1649 = vunpack.c.h.s8.bf16 %v809
        %v1650 = vunpack.c.h.s8.bf16 %v810
        %v1651 = vunpack.c.h.s8.bf16 %v811
        %v1652 = vunpack.c.h.s8.bf16 %v812
        %v1653 = vunpack.c.h.s8.bf16 %v813
        %v1654 = vunpack.c.h.s8.bf16 %v814
        %v1655 = vunpack.c.h.s8.bf16 %v815
        %v1656 = vunpack.c.h.s8.bf16 %v816
        %v1657 = vunpack.c.h.s8.bf16 %v817
        %v1658 = vunpack.c.h.s8.bf16 %v818
        %v1659 = vunpack.c.h.s8.bf16 %v819
        %v1660 = vunpack.c.h.s8.bf16 %v820
        %v1661 = vunpack.c.h.s8.bf16 %v821
        %v1662 = vunpack.c.h.s8.bf16 %v822
        %v1663 = vunpack.c.h.s8.bf16 %v823
        %v1664 = vunpack.c.h.s8.bf16 %v824
        %v1665 = vunpack.c.h.s8.bf16 %v825
        %v1666 = vunpack.c.h.s8.bf16 %v826
        %v1667 = vunpack.c.h.s8.bf16 %v827
        %v1668 = vunpack.c.h.s8.bf16 %v828
        %v1669 = vunpack.c.h.s8.bf16 %v829
        %v1670 = vunpack.c.l.s8.bf16 %v830
        %v1671 = vunpack.c.l.s8.bf16 %v831
        %v1672 = vunpack.c.l.s8.bf16 %v832
        %v1673 = vunpack.c.l.s8.bf16 %v833
        %v1674 = vunpack.c.l.s8.bf16 %v834
        %v1675 = vunpack.c.l.s8.bf16 %v835
        %v1676 = vunpack.c.l.s8.bf16 %v836
        %v1677 = vunpack.c.l.s8.bf16 %v837
        %v1678 = vunpack.c.l.s8.bf16 %v838
        %v1679 = vunpack.c.l.s8.bf16 %v839
        %v1680 = vunpack.c.l.s8.bf16 %v840
        %v1681 = vunpack.c.l.s8.bf16 %v841
        %v1682 = vunpack.c.l.s8.bf16 %v842
        %v1683 = vunpack.c.l.s8.bf16 %v843
        %v1684 = vunpack.c.l.s8.bf16 %v844
        %v1685 = vunpack.c.l.s8.bf16 %v845
        %v1686 = vunpack.c.l.s8.bf16 %v846
        %v1687 = vunpack.c.l.s8.bf16 %v847
        %v1688 = vunpack.c.l.s8.bf16 %v848
        %v1689 = vunpack.c.l.s8.bf16 %v849
        %v1690 = vunpack.c.l.s8.bf16 %v850
        %v1691 = vunpack.c.l.s8.bf16 %v851
        %v1692 = vunpack.c.l.s8.bf16 %v852
        %v1693 = vunpack.c.l.s8.bf16 %v853
        %v1694 = vunpack.c.l.s8.bf16 %v854
        %v1695 = vunpack.c.l.s8.bf16 %v855
        %v1696 = vunpack.c.l.s8.bf16 %v856
        %v1697 = vunpack.c.l.s8.bf16 %v857
        %v1698 = vunpack.c.l.s8.bf16 %v858
        %v1699 = vunpack.c.l.s8.bf16 %v859
        %v1700 = vunpack.c.l.s8.bf16 %v860
        %v1701 = vunpack.c.l.s8.bf16 %v861
        %v1702 = vunpack.c.l.s8.bf16 %v862
        %v1703 = vunpack.c.l.s8.bf16 %v863
        %v1704 = vunpack.c.l.s8.bf16 %v864
        %v1705 = vunpack.c.l.s8.bf16 %v865
        %v1706 = vunpack.c.l.s8.bf16 %v866
        %v1707 = vunpack.c.l.s8.bf16 %v867
        %v1708 = vunpack.c.l.s8.bf16 %v868
        %v1709 = vunpack.c.l.s8.bf16 %v869
        %v1710 = vunpack.c.h.s8.bf16 %v830
        %v1711 = vunpack.c.h.s8.bf16 %v831
        %v1712 = vunpack.c.h.s8.bf16 %v832
        %v1713 = vunpack.c.h.s8.bf16 %v833
        %v1714 = vunpack.c.h.s8.bf16 %v834
        %v1715 = vunpack.c.h.s8.bf16 %v835
        %v1716 = vunpack.c.h.s8.bf16 %v836
        %v1717 = vunpack.c.h.s8.bf16 %v837
        %v1718 = vunpack.c.h.s8.bf16 %v838
        %v1719 = vunpack.c.h.s8.bf16 %v839
        %v1720 = vunpack.c.h.s8.bf16 %v840
        %v1721 = vunpack.c.h.s8.bf16 %v841
        %v1722 = vunpack.c.h.s8.bf16 %v842
        %v1723 = vunpack.c.h.s8.bf16 %v843
        %v1724 = vunpack.c.h.s8.bf16 %v844
        %v1725 = vunpack.c.h.s8.bf16 %v845
        %v1726 = vunpack.c.h.s8.bf16 %v846
        %v1727 = vunpack.c.h.s8.bf16 %v847
        %v1728 = vunpack.c.h.s8.bf16 %v848
        %v1729 = vunpack.c.h.s8.bf16 %v849
        %v1730 = vunpack.c.h.s8.bf16 %v850
        %v1731 = vunpack.c.h.s8.bf16 %v851
        %v1732 = vunpack.c.h.s8.bf16 %v852
        %v1733 = vunpack.c.h.s8.bf16 %v853
        %v1734 = vunpack.c.h.s8.bf16 %v854
        %v1735 = vunpack.c.h.s8.bf16 %v855
        %v1736 = vunpack.c.h.s8.bf16 %v856
        %v1737 = vunpack.c.h.s8.bf16 %v857
        %v1738 = vunpack.c.h.s8.bf16 %v858
        %v1739 = vunpack.c.h.s8.bf16 %v859
        %v1740 = vunpack.c.h.s8.bf16 %v860
        %v1741 = vunpack.c.h.s8.bf16 %v861
        %v1742 = vunpack.c.h.s8.bf16 %v862
        %v1743 = vunpack.c.h.s8.bf16 %v863
        %v1744 = vunpack.c.h.s8.bf16 %v864
        %v1745 = vunpack.c.h.s8.bf16 %v865
        %v1746 = vunpack.c.h.s8.bf16 %v866
        %v1747 = vunpack.c.h.s8.bf16 %v867
        %v1748 = vunpack.c.h.s8.bf16 %v868
        %v1749 = vunpack.c.h.s8.bf16 %v869
        %v1750 = vunpack.c.l.s8.bf16 %v870
        %v1751 = vunpack.c.l.s8.bf16 %v871
        %v1752 = vunpack.c.l.s8.bf16 %v872
        %v1753 = vunpack.c.l.s8.bf16 %v873
        %v1754 = vunpack.c.l.s8.bf16 %v874
        %v1755 = vunpack.c.l.s8.bf16 %v875
        %v1756 = vunpack.c.l.s8.bf16 %v876
        %v1757 = vunpack.c.l.s8.bf16 %v877
        %v1758 = vunpack.c.l.s8.bf16 %v878
        %v1759 = vunpack.c.l.s8.bf16 %v879
        %v1760 = vunpack.c.l.s8.bf16 %v880
        %v1761 = vunpack.c.l.s8.bf16 %v881
        %v1762 = vunpack.c.l.s8.bf16 %v882
        %v1763 = vunpack.c.l.s8.bf16 %v883
        %v1764 = vunpack.c.l.s8.bf16 %v884
        %v1765 = vunpack.c.l.s8.bf16 %v885
        %v1766 = vunpack.c.l.s8.bf16 %v886
        %v1767 = vunpack.c.l.s8.bf16 %v887
        %v1768 = vunpack.c.l.s8.bf16 %v888
        %v1769 = vunpack.c.l.s8.bf16 %v889
        %v1770 = vunpack.c.l.s8.bf16 %v890
        %v1771 = vunpack.c.l.s8.bf16 %v891
        %v1772 = vunpack.c.l.s8.bf16 %v892
        %v1773 = vunpack.c.l.s8.bf16 %v893
        %v1774 = vunpack.c.l.s8.bf16 %v894
        %v1775 = vunpack.c.l.s8.bf16 %v895
        %v1776 = vunpack.c.l.s8.bf16 %v896
        %v1777 = vunpack.c.l.s8.bf16 %v897
        %v1778 = vunpack.c.l.s8.bf16 %v898
        %v1779 = vunpack.c.l.s8.bf16 %v899
        %v1780 = vunpack.c.l.s8.bf16 %v900
        %v1781 = vunpack.c.l.s8.bf16 %v901
        %v1782 = vunpack.c.l.s8.bf16 %v902
        %v1783 = vunpack.c.l.s8.bf16 %v903
        %v1784 = vunpack.c.l.s8.bf16 %v904
        %v1785 = vunpack.c.l.s8.bf16 %v905
        %v1786 = vunpack.c.l.s8.bf16 %v906
        %v1787 = vunpack.c.l.s8.bf16 %v907
        %v1788 = vunpack.c.l.s8.bf16 %v908
        %v1789 = vunpack.c.l.s8.bf16 %v909
        %v1790 = vunpack.c.h.s8.bf16 %v870
        %v1791 = vunpack.c.h.s8.bf16 %v871
        %v1792 = vunpack.c.h.s8.bf16 %v872
        %v1793 = vunpack.c.h.s8.bf16 %v873
        %v1794 = vunpack.c.h.s8.bf16 %v874
        %v1795 = vunpack.c.h.s8.bf16 %v875
        %v1796 = vunpack.c.h.s8.bf16 %v876
        %v1797 = vunpack.c.h.s8.bf16 %v877
        %v1798 = vunpack.c.h.s8.bf16 %v878
        %v1799 = vunpack.c.h.s8.bf16 %v879
        %v1800 = vunpack.c.h.s8.bf16 %v880
        %v1801 = vunpack.c.h.s8.bf16 %v881
        %v1802 = vunpack.c.h.s8.bf16 %v882
        %v1803 = vunpack.c.h.s8.bf16 %v883
        %v1804 = vunpack.c.h.s8.bf16 %v884
        %v1805 = vunpack.c.h.s8.bf16 %v885
        %v1806 = vunpack.c.h.s8.bf16 %v886
        %v1807 = vunpack.c.h.s8.bf16 %v887
        %v1808 = vunpack.c.h.s8.bf16 %v888
        %v1809 = vunpack.c.h.s8.bf16 %v889
        %v1810 = vunpack.c.h.s8.bf16 %v890
        %v1811 = vunpack.c.h.s8.bf16 %v891
        %v1812 = vunpack.c.h.s8.bf16 %v892
        %v1813 = vunpack.c.h.s8.bf16 %v893
        %v1814 = vunpack.c.h.s8.bf16 %v894
        %v1815 = vunpack.c.h.s8.bf16 %v895
        %v1816 = vunpack.c.h.s8.bf16 %v896
        %v1817 = vunpack.c.h.s8.bf16 %v897
        %v1818 = vunpack.c.h.s8.bf16 %v898
        %v1819 = vunpack.c.h.s8.bf16 %v899
        %v1820 = vunpack.c.h.s8.bf16 %v900
        %v1821 = vunpack.c.h.s8.bf16 %v901
        %v1822 = vunpack.c.h.s8.bf16 %v902
        %v1823 = vunpack.c.h.s8.bf16 %v903
        %v1824 = vunpack.c.h.s8.bf16 %v904
        %v1825 = vunpack.c.h.s8.bf16 %v905
        %v1826 = vunpack.c.h.s8.bf16 %v906
        %v1827 = vunpack.c.h.s8.bf16 %v907
        %v1828 = vunpack.c.h.s8.bf16 %v908
        %v1829 = vunpack.c.h.s8.bf16 %v909
        %v1830 = vunpack.c.l.s8.bf16 %v910
        %v1831 = vunpack.c.l.s8.bf16 %v911
        %v1832 = vunpack.c.l.s8.bf16 %v912
        %v1833 = vunpack.c.l.s8.bf16 %v913
        %v1834 = vunpack.c.l.s8.bf16 %v914
        %v1835 = vunpack.c.l.s8.bf16 %v915
        %v1836 = vunpack.c.l.s8.bf16 %v916
        %v1837 = vunpack.c.l.s8.bf16 %v917
        %v1838 = vunpack.c.l.s8.bf16 %v918
        %v1839 = vunpack.c.l.s8.bf16 %v919
        %v1840 = vunpack.c.l.s8.bf16 %v920
        %v1841 = vunpack.c.l.s8.bf16 %v921
        %v1842 = vunpack.c.l.s8.bf16 %v922
        %v1843 = vunpack.c.l.s8.bf16 %v923
        %v1844 = vunpack.c.l.s8.bf16 %v924
        %v1845 = vunpack.c.l.s8.bf16 %v925
        %v1846 = vunpack.c.l.s8.bf16 %v926
        %v1847 = vunpack.c.l.s8.bf16 %v927
        %v1848 = vunpack.c.l.s8.bf16 %v928
        %v1849 = vunpack.c.l.s8.bf16 %v929
        %v1850 = vunpack.c.l.s8.bf16 %v930
        %v1851 = vunpack.c.l.s8.bf16 %v931
        %v1852 = vunpack.c.l.s8.bf16 %v932
        %v1853 = vunpack.c.l.s8.bf16 %v933
        %v1854 = vunpack.c.l.s8.bf16 %v934
        %v1855 = vunpack.c.l.s8.bf16 %v935
        %v1856 = vunpack.c.l.s8.bf16 %v936
        %v1857 = vunpack.c.l.s8.bf16 %v937
        %v1858 = vunpack.c.l.s8.bf16 %v938
        %v1859 = vunpack.c.l.s8.bf16 %v939
        %v1860 = vunpack.c.l.s8.bf16 %v940
        %v1861 = vunpack.c.l.s8.bf16 %v941
        %v1862 = vunpack.c.l.s8.bf16 %v942
        %v1863 = vunpack.c.l.s8.bf16 %v943
        %v1864 = vunpack.c.l.s8.bf16 %v944
        %v1865 = vunpack.c.l.s8.bf16 %v945
        %v1866 = vunpack.c.l.s8.bf16 %v946
        %v1867 = vunpack.c.l.s8.bf16 %v947
        %v1868 = vunpack.c.l.s8.bf16 %v948
        %v1869 = vunpack.c.l.s8.bf16 %v949
        %v1870 = vunpack.c.h.s8.bf16 %v910
        %v1871 = vunpack.c.h.s8.bf16 %v911
        %v1872 = vunpack.c.h.s8.bf16 %v912
        %v1873 = vunpack.c.h.s8.bf16 %v913
        %v1874 = vunpack.c.h.s8.bf16 %v914
        %v1875 = vunpack.c.h.s8.bf16 %v915
        %v1876 = vunpack.c.h.s8.bf16 %v916
        %v1877 = vunpack.c.h.s8.bf16 %v917
        %v1878 = vunpack.c.h.s8.bf16 %v918
        %v1879 = vunpack.c.h.s8.bf16 %v919
        %v1880 = vunpack.c.h.s8.bf16 %v920
        %v1881 = vunpack.c.h.s8.bf16 %v921
        %v1882 = vunpack.c.h.s8.bf16 %v922
        %v1883 = vunpack.c.h.s8.bf16 %v923
        %v1884 = vunpack.c.h.s8.bf16 %v924
        %v1885 = vunpack.c.h.s8.bf16 %v925
        %v1886 = vunpack.c.h.s8.bf16 %v926
        %v1887 = vunpack.c.h.s8.bf16 %v927
        %v1888 = vunpack.c.h.s8.bf16 %v928
        %v1889 = vunpack.c.h.s8.bf16 %v929
        %v1890 = vunpack.c.h.s8.bf16 %v930
        %v1891 = vunpack.c.h.s8.bf16 %v931
        %v1892 = vunpack.c.h.s8.bf16 %v932
        %v1893 = vunpack.c.h.s8.bf16 %v933
        %v1894 = vunpack.c.h.s8.bf16 %v934
        %v1895 = vunpack.c.h.s8.bf16 %v935
        %v1896 = vunpack.c.h.s8.bf16 %v936
        %v1897 = vunpack.c.h.s8.bf16 %v937
        %v1898 = vunpack.c.h.s8.bf16 %v938
        %v1899 = vunpack.c.h.s8.bf16 %v939
        %v1900 = vunpack.c.h.s8.bf16 %v940
        %v1901 = vunpack.c.h.s8.bf16 %v941
        %v1902 = vunpack.c.h.s8.bf16 %v942
        %v1903 = vunpack.c.h.s8.bf16 %v943
        %v1904 = vunpack.c.h.s8.bf16 %v944
        %v1905 = vunpack.c.h.s8.bf16 %v945
        %v1906 = vunpack.c.h.s8.bf16 %v946
        %v1907 = vunpack.c.h.s8.bf16 %v947
        %v1908 = vunpack.c.h.s8.bf16 %v948
        %v1909 = vunpack.c.h.s8.bf16 %v949
        %v1910 = vunpack.c.l.s8.bf16 %v950
        %v1911 = vunpack.c.l.s8.bf16 %v951
        %v1912 = vunpack.c.l.s8.bf16 %v952
        %v1913 = vunpack.c.l.s8.bf16 %v953
        %v1914 = vunpack.c.l.s8.bf16 %v954
        %v1915 = vunpack.c.l.s8.bf16 %v955
        %v1916 = vunpack.c.l.s8.bf16 %v956
        %v1917 = vunpack.c.l.s8.bf16 %v957
        %v1918 = vunpack.c.l.s8.bf16 %v958
        %v1919 = vunpack.c.l.s8.bf16 %v959
        %v1920 = vunpack.c.l.s8.bf16 %v960
        %v1921 = vunpack.c.l.s8.bf16 %v961
        %v1922 = vunpack.c.l.s8.bf16 %v962
        %v1923 = vunpack.c.l.s8.bf16 %v963
        %v1924 = vunpack.c.l.s8.bf16 %v964
        %v1925 = vunpack.c.l.s8.bf16 %v965
        %v1926 = vunpack.c.l.s8.bf16 %v966
        %v1927 = vunpack.c.l.s8.bf16 %v967
        %v1928 = vunpack.c.l.s8.bf16 %v968
        %v1929 = vunpack.c.l.s8.bf16 %v969
        %v1930 = vunpack.c.l.s8.bf16 %v970
        %v1931 = vunpack.c.l.s8.bf16 %v971
        %v1932 = vunpack.c.l.s8.bf16 %v972
        %v1933 = vunpack.c.l.s8.bf16 %v973
        %v1934 = vunpack.c.l.s8.bf16 %v974
        %v1935 = vunpack.c.l.s8.bf16 %v975
        %v1936 = vunpack.c.l.s8.bf16 %v976
        %v1937 = vunpack.c.l.s8.bf16 %v977
        %v1938 = vunpack.c.l.s8.bf16 %v978
        %v1939 = vunpack.c.l.s8.bf16 %v979
        %v1940 = vunpack.c.l.s8.bf16 %v980
        %v1941 = vunpack.c.l.s8.bf16 %v981
        %v1942 = vunpack.c.l.s8.bf16 %v982
        %v1943 = vunpack.c.l.s8.bf16 %v983
        %v1944 = vunpack.c.l.s8.bf16 %v984
        %v1945 = vunpack.c.l.s8.bf16 %v985
        %v1946 = vunpack.c.l.s8.bf16 %v986
        %v1947 = vunpack.c.l.s8.bf16 %v987
        %v1948 = vunpack.c.l.s8.bf16 %v988
        %v1949 = vunpack.c.l.s8.bf16 %v989
        %v1950 = vunpack.c.h.s8.bf16 %v950
        %v1951 = vunpack.c.h.s8.bf16 %v951
        %v1952 = vunpack.c.h.s8.bf16 %v952
        %v1953 = vunpack.c.h.s8.bf16 %v953
        %v1954 = vunpack.c.h.s8.bf16 %v954
        %v1955 = vunpack.c.h.s8.bf16 %v955
        %v1956 = vunpack.c.h.s8.bf16 %v956
        %v1957 = vunpack.c.h.s8.bf16 %v957
        %v1958 = vunpack.c.h.s8.bf16 %v958
        %v1959 = vunpack.c.h.s8.bf16 %v959
        %v1960 = vunpack.c.h.s8.bf16 %v960
        %v1961 = vunpack.c.h.s8.bf16 %v961
        %v1962 = vunpack.c.h.s8.bf16 %v962
        %v1963 = vunpack.c.h.s8.bf16 %v963
        %v1964 = vunpack.c.h.s8.bf16 %v964
        %v1965 = vunpack.c.h.s8.bf16 %v965
        %v1966 = vunpack.c.h.s8.bf16 %v966
        %v1967 = vunpack.c.h.s8.bf16 %v967
        %v1968 = vunpack.c.h.s8.bf16 %v968
        %v1969 = vunpack.c.h.s8.bf16 %v969
        %v1970 = vunpack.c.h.s8.bf16 %v970
        %v1971 = vunpack.c.h.s8.bf16 %v971
        %v1972 = vunpack.c.h.s8.bf16 %v972
        %v1973 = vunpack.c.h.s8.bf16 %v973
        %v1974 = vunpack.c.h.s8.bf16 %v974
        %v1975 = vunpack.c.h.s8.bf16 %v975
        %v1976 = vunpack.c.h.s8.bf16 %v976
        %v1977 = vunpack.c.h.s8.bf16 %v977
        %v1978 = vunpack.c.h.s8.bf16 %v978
        %v1979 = vunpack.c.h.s8.bf16 %v979
        %v1980 = vunpack.c.h.s8.bf16 %v980
        %v1981 = vunpack.c.h.s8.bf16 %v981
        %v1982 = vunpack.c.h.s8.bf16 %v982
        %v1983 = vunpack.c.h.s8.bf16 %v983
        %v1984 = vunpack.c.h.s8.bf16 %v984
        %v1985 = vunpack.c.h.s8.bf16 %v985
        %v1986 = vunpack.c.h.s8.bf16 %v986
        %v1987 = vunpack.c.h.s8.bf16 %v987
        %v1988 = vunpack.c.h.s8.bf16 %v988
        %v1989 = vunpack.c.h.s8.bf16 %v989
        %v1990 = vunpack.c.l.s8.bf16 %v990
        %v1991 = vunpack.c.l.s8.bf16 %v991
        %v1992 = vunpack.c.l.s8.bf16 %v992
        %v1993 = vunpack.c.l.s8.bf16 %v993
        %v1994 = vunpack.c.l.s8.bf16 %v994
        %v1995 = vunpack.c.l.s8.bf16 %v995
        %v1996 = vunpack.c.l.s8.bf16 %v996
        %v1997 = vunpack.c.l.s8.bf16 %v997
        %v1998 = vunpack.c.l.s8.bf16 %v998
        %v1999 = vunpack.c.l.s8.bf16 %v999
        %v2000 = vunpack.c.l.s8.bf16 %v1000
        %v2001 = vunpack.c.l.s8.bf16 %v1001
        %v2002 = vunpack.c.l.s8.bf16 %v1002
        %v2003 = vunpack.c.l.s8.bf16 %v1003
        %v2004 = vunpack.c.l.s8.bf16 %v1004
        %v2005 = vunpack.c.l.s8.bf16 %v1005
        %v2006 = vunpack.c.l.s8.bf16 %v1006
        %v2007 = vunpack.c.l.s8.bf16 %v1007
        %v2008 = vunpack.c.l.s8.bf16 %v1008
        %v2009 = vunpack.c.l.s8.bf16 %v1009
        %v2010 = vunpack.c.l.s8.bf16 %v1010
        %v2011 = vunpack.c.l.s8.bf16 %v1011
        %v2012 = vunpack.c.l.s8.bf16 %v1012
        %v2013 = vunpack.c.l.s8.bf16 %v1013
        %v2014 = vunpack.c.l.s8.bf16 %v1014
        %v2015 = vunpack.c.l.s8.bf16 %v1015
        %v2016 = vunpack.c.l.s8.bf16 %v1016
        %v2017 = vunpack.c.l.s8.bf16 %v1017
        %v2018 = vunpack.c.l.s8.bf16 %v1018
        %v2019 = vunpack.c.l.s8.bf16 %v1019
        %v2020 = vunpack.c.l.s8.bf16 %v1020
        %v2021 = vunpack.c.l.s8.bf16 %v1021
        %v2022 = vunpack.c.l.s8.bf16 %v1022
        %v2023 = vunpack.c.l.s8.bf16 %v1023
        %v2024 = vunpack.c.l.s8.bf16 %v1024
        %v2025 = vunpack.c.l.s8.bf16 %v1025
        %v2026 = vunpack.c.l.s8.bf16 %v1026
        %v2027 = vunpack.c.l.s8.bf16 %v1027
        %v2028 = vunpack.c.l.s8.bf16 %v1028
        %v2029 = vunpack.c.l.s8.bf16 %v1029
        %v2030 = vunpack.c.h.s8.bf16 %v990
        %v2031 = vunpack.c.h.s8.bf16 %v991
        %v2032 = vunpack.c.h.s8.bf16 %v992
        %v2033 = vunpack.c.h.s8.bf16 %v993
        %v2034 = vunpack.c.h.s8.bf16 %v994
        %v2035 = vunpack.c.h.s8.bf16 %v995
        %v2036 = vunpack.c.h.s8.bf16 %v996
        %v2037 = vunpack.c.h.s8.bf16 %v997
        %v2038 = vunpack.c.h.s8.bf16 %v998
        %v2039 = vunpack.c.h.s8.bf16 %v999
        %v2040 = vunpack.c.h.s8.bf16 %v1000
        %v2041 = vunpack.c.h.s8.bf16 %v1001
        %v2042 = vunpack.c.h.s8.bf16 %v1002
        %v2043 = vunpack.c.h.s8.bf16 %v1003
        %v2044 = vunpack.c.h.s8.bf16 %v1004
        %v2045 = vunpack.c.h.s8.bf16 %v1005
        %v2046 = vunpack.c.h.s8.bf16 %v1006
        %v2047 = vunpack.c.h.s8.bf16 %v1007
        %v2048 = vunpack.c.h.s8.bf16 %v1008
        %v2049 = vunpack.c.h.s8.bf16 %v1009
        %v2050 = vunpack.c.h.s8.bf16 %v1010
        %v2051 = vunpack.c.h.s8.bf16 %v1011
        %v2052 = vunpack.c.h.s8.bf16 %v1012
        %v2053 = vunpack.c.h.s8.bf16 %v1013
        %v2054 = vunpack.c.h.s8.bf16 %v1014
        %v2055 = vunpack.c.h.s8.bf16 %v1015
        %v2056 = vunpack.c.h.s8.bf16 %v1016
        %v2057 = vunpack.c.h.s8.bf16 %v1017
        %v2058 = vunpack.c.h.s8.bf16 %v1018
        %v2059 = vunpack.c.h.s8.bf16 %v1019
        %v2060 = vunpack.c.h.s8.bf16 %v1020
        %v2061 = vunpack.c.h.s8.bf16 %v1021
        %v2062 = vunpack.c.h.s8.bf16 %v1022
        %v2063 = vunpack.c.h.s8.bf16 %v1023
        %v2064 = vunpack.c.h.s8.bf16 %v1024
        %v2065 = vunpack.c.h.s8.bf16 %v1025
        %v2066 = vunpack.c.h.s8.bf16 %v1026
        %v2067 = vunpack.c.h.s8.bf16 %v1027
        %v2068 = vunpack.c.h.s8.bf16 %v1028
        %v2069 = vunpack.c.h.s8.bf16 %v1029
        %v2070 = vunpack.c.l.s8.bf16 %v1030
        %v2071 = vunpack.c.l.s8.bf16 %v1031
        %v2072 = vunpack.c.l.s8.bf16 %v1032
        %v2073 = vunpack.c.l.s8.bf16 %v1033
        %v2074 = vunpack.c.l.s8.bf16 %v1034
        %v2075 = vunpack.c.l.s8.bf16 %v1035
        %v2076 = vunpack.c.l.s8.bf16 %v1036
        %v2077 = vunpack.c.l.s8.bf16 %v1037
        %v2078 = vunpack.c.l.s8.bf16 %v1038
        %v2079 = vunpack.c.l.s8.bf16 %v1039
        %v2080 = vunpack.c.l.s8.bf16 %v1040
        %v2081 = vunpack.c.l.s8.bf16 %v1041
        %v2082 = vunpack.c.l.s8.bf16 %v1042
        %v2083 = vunpack.c.l.s8.bf16 %v1043
        %v2084 = vunpack.c.l.s8.bf16 %v1044
        %v2085 = vunpack.c.l.s8.bf16 %v1045
        %v2086 = vunpack.c.l.s8.bf16 %v1046
        %v2087 = vunpack.c.l.s8.bf16 %v1047
        %v2088 = vunpack.c.l.s8.bf16 %v1048
        %v2089 = vunpack.c.l.s8.bf16 %v1049
        %v2090 = vunpack.c.l.s8.bf16 %v1050
        %v2091 = vunpack.c.l.s8.bf16 %v1051
        %v2092 = vunpack.c.l.s8.bf16 %v1052
        %v2093 = vunpack.c.l.s8.bf16 %v1053
        %v2094 = vunpack.c.l.s8.bf16 %v1054
        %v2095 = vunpack.c.l.s8.bf16 %v1055
        %v2096 = vunpack.c.l.s8.bf16 %v1056
        %v2097 = vunpack.c.l.s8.bf16 %v1057
        %v2098 = vunpack.c.l.s8.bf16 %v1058
        %v2099 = vunpack.c.l.s8.bf16 %v1059
        %v2100 = vunpack.c.l.s8.bf16 %v1060
        %v2101 = vunpack.c.l.s8.bf16 %v1061
        %v2102 = vunpack.c.l.s8.bf16 %v1062
        %v2103 = vunpack.c.l.s8.bf16 %v1063
        %v2104 = vunpack.c.l.s8.bf16 %v1064
        %v2105 = vunpack.c.l.s8.bf16 %v1065
        %v2106 = vunpack.c.l.s8.bf16 %v1066
        %v2107 = vunpack.c.l.s8.bf16 %v1067
        %v2108 = vunpack.c.l.s8.bf16 %v1068
        %v2109 = vunpack.c.l.s8.bf16 %v1069
        %v2110 = vunpack.c.h.s8.bf16 %v1030
        %v2111 = vunpack.c.h.s8.bf16 %v1031
        %v2112 = vunpack.c.h.s8.bf16 %v1032
        %v2113 = vunpack.c.h.s8.bf16 %v1033
        %v2114 = vunpack.c.h.s8.bf16 %v1034
        %v2115 = vunpack.c.h.s8.bf16 %v1035
        %v2116 = vunpack.c.h.s8.bf16 %v1036
        %v2117 = vunpack.c.h.s8.bf16 %v1037
        %v2118 = vunpack.c.h.s8.bf16 %v1038
        %v2119 = vunpack.c.h.s8.bf16 %v1039
        %v2120 = vunpack.c.h.s8.bf16 %v1040
        %v2121 = vunpack.c.h.s8.bf16 %v1041
        %v2122 = vunpack.c.h.s8.bf16 %v1042
        %v2123 = vunpack.c.h.s8.bf16 %v1043
        %v2124 = vunpack.c.h.s8.bf16 %v1044
        %v2125 = vunpack.c.h.s8.bf16 %v1045
        %v2126 = vunpack.c.h.s8.bf16 %v1046
        %v2127 = vunpack.c.h.s8.bf16 %v1047
        %v2128 = vunpack.c.h.s8.bf16 %v1048
        %v2129 = vunpack.c.h.s8.bf16 %v1049
        %v2130 = vunpack.c.h.s8.bf16 %v1050
        %v2131 = vunpack.c.h.s8.bf16 %v1051
        %v2132 = vunpack.c.h.s8.bf16 %v1052
        %v2133 = vunpack.c.h.s8.bf16 %v1053
        %v2134 = vunpack.c.h.s8.bf16 %v1054
        %v2135 = vunpack.c.h.s8.bf16 %v1055
        %v2136 = vunpack.c.h.s8.bf16 %v1056
        %v2137 = vunpack.c.h.s8.bf16 %v1057
        %v2138 = vunpack.c.h.s8.bf16 %v1058
        %v2139 = vunpack.c.h.s8.bf16 %v1059
        %v2140 = vunpack.c.h.s8.bf16 %v1060
        %v2141 = vunpack.c.h.s8.bf16 %v1061
        %v2142 = vunpack.c.h.s8.bf16 %v1062
        %v2143 = vunpack.c.h.s8.bf16 %v1063
        %v2144 = vunpack.c.h.s8.bf16 %v1064
        %v2145 = vunpack.c.h.s8.bf16 %v1065
        %v2146 = vunpack.c.h.s8.bf16 %v1066
        %v2147 = vunpack.c.h.s8.bf16 %v1067
        %v2148 = vunpack.c.h.s8.bf16 %v1068
        %v2149 = vunpack.c.h.s8.bf16 %v1069
        %v2150 = vunpack.c.l.s8.bf16 %v1070
        %v2151 = vunpack.c.l.s8.bf16 %v1071
        %v2152 = vunpack.c.l.s8.bf16 %v1072
        %v2153 = vunpack.c.l.s8.bf16 %v1073
        %v2154 = vunpack.c.l.s8.bf16 %v1074
        %v2155 = vunpack.c.l.s8.bf16 %v1075
        %v2156 = vunpack.c.l.s8.bf16 %v1076
        %v2157 = vunpack.c.l.s8.bf16 %v1077
        %v2158 = vunpack.c.l.s8.bf16 %v1078
        %v2159 = vunpack.c.l.s8.bf16 %v1079
        %v2160 = vunpack.c.l.s8.bf16 %v1080
        %v2161 = vunpack.c.l.s8.bf16 %v1081
        %v2162 = vunpack.c.l.s8.bf16 %v1082
        %v2163 = vunpack.c.l.s8.bf16 %v1083
        %v2164 = vunpack.c.l.s8.bf16 %v1084
        %v2165 = vunpack.c.l.s8.bf16 %v1085
        %v2166 = vunpack.c.l.s8.bf16 %v1086
        %v2167 = vunpack.c.l.s8.bf16 %v1087
        %v2168 = vunpack.c.l.s8.bf16 %v1088
        %v2169 = vunpack.c.l.s8.bf16 %v1089
        %v2170 = vunpack.c.l.s8.bf16 %v1090
        %v2171 = vunpack.c.l.s8.bf16 %v1091
        %v2172 = vunpack.c.l.s8.bf16 %v1092
        %v2173 = vunpack.c.l.s8.bf16 %v1093
        %v2174 = vunpack.c.l.s8.bf16 %v1094
        %v2175 = vunpack.c.l.s8.bf16 %v1095
        %v2176 = vunpack.c.l.s8.bf16 %v1096
        %v2177 = vunpack.c.l.s8.bf16 %v1097
        %v2178 = vunpack.c.l.s8.bf16 %v1098
        %v2179 = vunpack.c.l.s8.bf16 %v1099
        %v2180 = vunpack.c.l.s8.bf16 %v1100
        %v2181 = vunpack.c.l.s8.bf16 %v1101
        %v2182 = vunpack.c.l.s8.bf16 %v1102
        %v2183 = vunpack.c.l.s8.bf16 %v1103
        %v2184 = vunpack.c.l.s8.bf16 %v1104
        %v2185 = vunpack.c.l.s8.bf16 %v1105
        %v2186 = vunpack.c.l.s8.bf16 %v1106
        %v2187 = vunpack.c.l.s8.bf16 %v1107
        %v2188 = vunpack.c.l.s8.bf16 %v1108
        %v2189 = vunpack.c.l.s8.bf16 %v1109
        %v2190 = vunpack.c.h.s8.bf16 %v1070
        %v2191 = vunpack.c.h.s8.bf16 %v1071
        %v2192 = vunpack.c.h.s8.bf16 %v1072
        %v2193 = vunpack.c.h.s8.bf16 %v1073
        %v2194 = vunpack.c.h.s8.bf16 %v1074
        %v2195 = vunpack.c.h.s8.bf16 %v1075
        %v2196 = vunpack.c.h.s8.bf16 %v1076
        %v2197 = vunpack.c.h.s8.bf16 %v1077
        %v2198 = vunpack.c.h.s8.bf16 %v1078
        %v2199 = vunpack.c.h.s8.bf16 %v1079
        %v2200 = vunpack.c.h.s8.bf16 %v1080
        %v2201 = vunpack.c.h.s8.bf16 %v1081
        %v2202 = vunpack.c.h.s8.bf16 %v1082
        %v2203 = vunpack.c.h.s8.bf16 %v1083
        %v2204 = vunpack.c.h.s8.bf16 %v1084
        %v2205 = vunpack.c.h.s8.bf16 %v1085
        %v2206 = vunpack.c.h.s8.bf16 %v1086
        %v2207 = vunpack.c.h.s8.bf16 %v1087
        %v2208 = vunpack.c.h.s8.bf16 %v1088
        %v2209 = vunpack.c.h.s8.bf16 %v1089
        %v2210 = vunpack.c.h.s8.bf16 %v1090
        %v2211 = vunpack.c.h.s8.bf16 %v1091
        %v2212 = vunpack.c.h.s8.bf16 %v1092
        %v2213 = vunpack.c.h.s8.bf16 %v1093
        %v2214 = vunpack.c.h.s8.bf16 %v1094
        %v2215 = vunpack.c.h.s8.bf16 %v1095
        %v2216 = vunpack.c.h.s8.bf16 %v1096
        %v2217 = vunpack.c.h.s8.bf16 %v1097
        %v2218 = vunpack.c.h.s8.bf16 %v1098
        %v2219 = vunpack.c.h.s8.bf16 %v1099
        %v2220 = vunpack.c.h.s8.bf16 %v1100
        %v2221 = vunpack.c.h.s8.bf16 %v1101
        %v2222 = vunpack.c.h.s8.bf16 %v1102
        %v2223 = vunpack.c.h.s8.bf16 %v1103
        %v2224 = vunpack.c.h.s8.bf16 %v1104
        %v2225 = vunpack.c.h.s8.bf16 %v1105
        %v2226 = vunpack.c.h.s8.bf16 %v1106
        %v2227 = vunpack.c.h.s8.bf16 %v1107
        %v2228 = vunpack.c.h.s8.bf16 %v1108
        %v2229 = vunpack.c.h.s8.bf16 %v1109
        %v2230 = vunpack.c.l.s8.bf16 %v1110
        %v2231 = vunpack.c.l.s8.bf16 %v1111
        %v2232 = vunpack.c.l.s8.bf16 %v1112
        %v2233 = vunpack.c.l.s8.bf16 %v1113
        %v2234 = vunpack.c.l.s8.bf16 %v1114
        %v2235 = vunpack.c.l.s8.bf16 %v1115
        %v2236 = vunpack.c.l.s8.bf16 %v1116
        %v2237 = vunpack.c.l.s8.bf16 %v1117
        %v2238 = vunpack.c.l.s8.bf16 %v1118
        %v2239 = vunpack.c.l.s8.bf16 %v1119
        %v2240 = vunpack.c.l.s8.bf16 %v1120
        %v2241 = vunpack.c.l.s8.bf16 %v1121
        %v2242 = vunpack.c.l.s8.bf16 %v1122
        %v2243 = vunpack.c.l.s8.bf16 %v1123
        %v2244 = vunpack.c.l.s8.bf16 %v1124
        %v2245 = vunpack.c.l.s8.bf16 %v1125
        %v2246 = vunpack.c.l.s8.bf16 %v1126
        %v2247 = vunpack.c.l.s8.bf16 %v1127
        %v2248 = vunpack.c.l.s8.bf16 %v1128
        %v2249 = vunpack.c.l.s8.bf16 %v1129
        %v2250 = vunpack.c.l.s8.bf16 %v1130
        %v2251 = vunpack.c.l.s8.bf16 %v1131
        %v2252 = vunpack.c.l.s8.bf16 %v1132
        %v2253 = vunpack.c.l.s8.bf16 %v1133
        %v2254 = vunpack.c.l.s8.bf16 %v1134
        %v2255 = vunpack.c.l.s8.bf16 %v1135
        %v2256 = vunpack.c.l.s8.bf16 %v1136
        %v2257 = vunpack.c.l.s8.bf16 %v1137
        %v2258 = vunpack.c.l.s8.bf16 %v1138
        %v2259 = vunpack.c.l.s8.bf16 %v1139
        %v2260 = vunpack.c.l.s8.bf16 %v1140
        %v2261 = vunpack.c.l.s8.bf16 %v1141
        %v2262 = vunpack.c.l.s8.bf16 %v1142
        %v2263 = vunpack.c.l.s8.bf16 %v1143
        %v2264 = vunpack.c.l.s8.bf16 %v1144
        %v2265 = vunpack.c.l.s8.bf16 %v1145
        %v2266 = vunpack.c.l.s8.bf16 %v1146
        %v2267 = vunpack.c.l.s8.bf16 %v1147
        %v2268 = vunpack.c.l.s8.bf16 %v1148
        %v2269 = vunpack.c.l.s8.bf16 %v1149
        %v2270 = vunpack.c.h.s8.bf16 %v1110
        %v2271 = vunpack.c.h.s8.bf16 %v1111
        %v2272 = vunpack.c.h.s8.bf16 %v1112
        %v2273 = vunpack.c.h.s8.bf16 %v1113
        %v2274 = vunpack.c.h.s8.bf16 %v1114
        %v2275 = vunpack.c.h.s8.bf16 %v1115
        %v2276 = vunpack.c.h.s8.bf16 %v1116
        %v2277 = vunpack.c.h.s8.bf16 %v1117
        %v2278 = vunpack.c.h.s8.bf16 %v1118
        %v2279 = vunpack.c.h.s8.bf16 %v1119
        %v2280 = vunpack.c.h.s8.bf16 %v1120
        %v2281 = vunpack.c.h.s8.bf16 %v1121
        %v2282 = vunpack.c.h.s8.bf16 %v1122
        %v2283 = vunpack.c.h.s8.bf16 %v1123
        %v2284 = vunpack.c.h.s8.bf16 %v1124
        %v2285 = vunpack.c.h.s8.bf16 %v1125
        %v2286 = vunpack.c.h.s8.bf16 %v1126
        %v2287 = vunpack.c.h.s8.bf16 %v1127
        %v2288 = vunpack.c.h.s8.bf16 %v1128
        %v2289 = vunpack.c.h.s8.bf16 %v1129
        %v2290 = vunpack.c.h.s8.bf16 %v1130
        %v2291 = vunpack.c.h.s8.bf16 %v1131
        %v2292 = vunpack.c.h.s8.bf16 %v1132
        %v2293 = vunpack.c.h.s8.bf16 %v1133
        %v2294 = vunpack.c.h.s8.bf16 %v1134
        %v2295 = vunpack.c.h.s8.bf16 %v1135
        %v2296 = vunpack.c.h.s8.bf16 %v1136
        %v2297 = vunpack.c.h.s8.bf16 %v1137
        %v2298 = vunpack.c.h.s8.bf16 %v1138
        %v2299 = vunpack.c.h.s8.bf16 %v1139
        %v2300 = vunpack.c.h.s8.bf16 %v1140
        %v2301 = vunpack.c.h.s8.bf16 %v1141
        %v2302 = vunpack.c.h.s8.bf16 %v1142
        %v2303 = vunpack.c.h.s8.bf16 %v1143
        %v2304 = vunpack.c.h.s8.bf16 %v1144
        %v2305 = vunpack.c.h.s8.bf16 %v1145
        %v2306 = vunpack.c.h.s8.bf16 %v1146
        %v2307 = vunpack.c.h.s8.bf16 %v1147
        %v2308 = vunpack.c.h.s8.bf16 %v1148
        %v2309 = vunpack.c.h.s8.bf16 %v1149
        %v2310 = vunpack.c.l.s8.bf16 %v1150
        %v2311 = vunpack.c.l.s8.bf16 %v1151
        %v2312 = vunpack.c.l.s8.bf16 %v1152
        %v2313 = vunpack.c.l.s8.bf16 %v1153
        %v2314 = vunpack.c.l.s8.bf16 %v1154
        %v2315 = vunpack.c.l.s8.bf16 %v1155
        %v2316 = vunpack.c.l.s8.bf16 %v1156
        %v2317 = vunpack.c.l.s8.bf16 %v1157
        %v2318 = vunpack.c.l.s8.bf16 %v1158
        %v2319 = vunpack.c.l.s8.bf16 %v1159
        %v2320 = vunpack.c.l.s8.bf16 %v1160
        %v2321 = vunpack.c.l.s8.bf16 %v1161
        %v2322 = vunpack.c.l.s8.bf16 %v1162
        %v2323 = vunpack.c.l.s8.bf16 %v1163
        %v2324 = vunpack.c.l.s8.bf16 %v1164
        %v2325 = vunpack.c.l.s8.bf16 %v1165
        %v2326 = vunpack.c.l.s8.bf16 %v1166
        %v2327 = vunpack.c.l.s8.bf16 %v1167
        %v2328 = vunpack.c.l.s8.bf16 %v1168
        %v2329 = vunpack.c.l.s8.bf16 %v1169
        %v2330 = vunpack.c.l.s8.bf16 %v1170
        %v2331 = vunpack.c.l.s8.bf16 %v1171
        %v2332 = vunpack.c.l.s8.bf16 %v1172
        %v2333 = vunpack.c.l.s8.bf16 %v1173
        %v2334 = vunpack.c.l.s8.bf16 %v1174
        %v2335 = vunpack.c.l.s8.bf16 %v1175
        %v2336 = vunpack.c.l.s8.bf16 %v1176
        %v2337 = vunpack.c.l.s8.bf16 %v1177
        %v2338 = vunpack.c.l.s8.bf16 %v1178
        %v2339 = vunpack.c.l.s8.bf16 %v1179
        %v2340 = vunpack.c.l.s8.bf16 %v1180
        %v2341 = vunpack.c.l.s8.bf16 %v1181
        %v2342 = vunpack.c.l.s8.bf16 %v1182
        %v2343 = vunpack.c.l.s8.bf16 %v1183
        %v2344 = vunpack.c.l.s8.bf16 %v1184
        %v2345 = vunpack.c.l.s8.bf16 %v1185
        %v2346 = vunpack.c.l.s8.bf16 %v1186
        %v2347 = vunpack.c.l.s8.bf16 %v1187
        %v2348 = vunpack.c.l.s8.bf16 %v1188
        %v2349 = vunpack.c.l.s8.bf16 %v1189
        %v2350 = vunpack.c.h.s8.bf16 %v1150
        %v2351 = vunpack.c.h.s8.bf16 %v1151
        %v2352 = vunpack.c.h.s8.bf16 %v1152
        %v2353 = vunpack.c.h.s8.bf16 %v1153
        %v2354 = vunpack.c.h.s8.bf16 %v1154
        %v2355 = vunpack.c.h.s8.bf16 %v1155
        %v2356 = vunpack.c.h.s8.bf16 %v1156
        %v2357 = vunpack.c.h.s8.bf16 %v1157
        %v2358 = vunpack.c.h.s8.bf16 %v1158
        %v2359 = vunpack.c.h.s8.bf16 %v1159
        %v2360 = vunpack.c.h.s8.bf16 %v1160
        %v2361 = vunpack.c.h.s8.bf16 %v1161
        %v2362 = vunpack.c.h.s8.bf16 %v1162
        %v2363 = vunpack.c.h.s8.bf16 %v1163
        %v2364 = vunpack.c.h.s8.bf16 %v1164
        %v2365 = vunpack.c.h.s8.bf16 %v1165
        %v2366 = vunpack.c.h.s8.bf16 %v1166
        %v2367 = vunpack.c.h.s8.bf16 %v1167
        %v2368 = vunpack.c.h.s8.bf16 %v1168
        %v2369 = vunpack.c.h.s8.bf16 %v1169
        %v2370 = vunpack.c.h.s8.bf16 %v1170
        %v2371 = vunpack.c.h.s8.bf16 %v1171
        %v2372 = vunpack.c.h.s8.bf16 %v1172
        %v2373 = vunpack.c.h.s8.bf16 %v1173
        %v2374 = vunpack.c.h.s8.bf16 %v1174
        %v2375 = vunpack.c.h.s8.bf16 %v1175
        %v2376 = vunpack.c.h.s8.bf16 %v1176
        %v2377 = vunpack.c.h.s8.bf16 %v1177
        %v2378 = vunpack.c.h.s8.bf16 %v1178
        %v2379 = vunpack.c.h.s8.bf16 %v1179
        %v2380 = vunpack.c.h.s8.bf16 %v1180
        %v2381 = vunpack.c.h.s8.bf16 %v1181
        %v2382 = vunpack.c.h.s8.bf16 %v1182
        %v2383 = vunpack.c.h.s8.bf16 %v1183
        %v2384 = vunpack.c.h.s8.bf16 %v1184
        %v2385 = vunpack.c.h.s8.bf16 %v1185
        %v2386 = vunpack.c.h.s8.bf16 %v1186
        %v2387 = vunpack.c.h.s8.bf16 %v1187
        %v2388 = vunpack.c.h.s8.bf16 %v1188
        %v2389 = vunpack.c.h.s8.bf16 %v1189
        %v2390 = vunpack.c.l.s8.bf16 %v1190
        %v2391 = vunpack.c.l.s8.bf16 %v1191
        %v2392 = vunpack.c.l.s8.bf16 %v1192
        %v2393 = vunpack.c.l.s8.bf16 %v1193
        %v2394 = vunpack.c.l.s8.bf16 %v1194
        %v2395 = vunpack.c.l.s8.bf16 %v1195
        %v2396 = vunpack.c.l.s8.bf16 %v1196
        %v2397 = vunpack.c.l.s8.bf16 %v1197
        %v2398 = vunpack.c.l.s8.bf16 %v1198
        %v2399 = vunpack.c.l.s8.bf16 %v1199
        %v2400 = vunpack.c.l.s8.bf16 %v1200
        %v2401 = vunpack.c.l.s8.bf16 %v1201
        %v2402 = vunpack.c.l.s8.bf16 %v1202
        %v2403 = vunpack.c.l.s8.bf16 %v1203
        %v2404 = vunpack.c.l.s8.bf16 %v1204
        %v2405 = vunpack.c.l.s8.bf16 %v1205
        %v2406 = vunpack.c.l.s8.bf16 %v1206
        %v2407 = vunpack.c.l.s8.bf16 %v1207
        %v2408 = vunpack.c.l.s8.bf16 %v1208
        %v2409 = vunpack.c.l.s8.bf16 %v1209
        %v2410 = vunpack.c.l.s8.bf16 %v1210
        %v2411 = vunpack.c.l.s8.bf16 %v1211
        %v2412 = vunpack.c.l.s8.bf16 %v1212
        %v2413 = vunpack.c.l.s8.bf16 %v1213
        %v2414 = vunpack.c.l.s8.bf16 %v1214
        %v2415 = vunpack.c.l.s8.bf16 %v1215
        %v2416 = vunpack.c.l.s8.bf16 %v1216
        %v2417 = vunpack.c.l.s8.bf16 %v1217
        %v2418 = vunpack.c.l.s8.bf16 %v1218
        %v2419 = vunpack.c.l.s8.bf16 %v1219
        %v2420 = vunpack.c.l.s8.bf16 %v1220
        %v2421 = vunpack.c.l.s8.bf16 %v1221
        %v2422 = vunpack.c.l.s8.bf16 %v1222
        %v2423 = vunpack.c.l.s8.bf16 %v1223
        %v2424 = vunpack.c.l.s8.bf16 %v1224
        %v2425 = vunpack.c.l.s8.bf16 %v1225
        %v2426 = vunpack.c.l.s8.bf16 %v1226
        %v2427 = vunpack.c.l.s8.bf16 %v1227
        %v2428 = vunpack.c.l.s8.bf16 %v1228
        %v2429 = vunpack.c.l.s8.bf16 %v1229
        %v2430 = vunpack.c.h.s8.bf16 %v1190
        %v2431 = vunpack.c.h.s8.bf16 %v1191
        %v2432 = vunpack.c.h.s8.bf16 %v1192
        %v2433 = vunpack.c.h.s8.bf16 %v1193
        %v2434 = vunpack.c.h.s8.bf16 %v1194
        %v2435 = vunpack.c.h.s8.bf16 %v1195
        %v2436 = vunpack.c.h.s8.bf16 %v1196
        %v2437 = vunpack.c.h.s8.bf16 %v1197
        %v2438 = vunpack.c.h.s8.bf16 %v1198
        %v2439 = vunpack.c.h.s8.bf16 %v1199
        %v2440 = vunpack.c.h.s8.bf16 %v1200
        %v2441 = vunpack.c.h.s8.bf16 %v1201
        %v2442 = vunpack.c.h.s8.bf16 %v1202
        %v2443 = vunpack.c.h.s8.bf16 %v1203
        %v2444 = vunpack.c.h.s8.bf16 %v1204
        %v2445 = vunpack.c.h.s8.bf16 %v1205
        %v2446 = vunpack.c.h.s8.bf16 %v1206
        %v2447 = vunpack.c.h.s8.bf16 %v1207
        %v2448 = vunpack.c.h.s8.bf16 %v1208
        %v2449 = vunpack.c.h.s8.bf16 %v1209
        %v2450 = vunpack.c.h.s8.bf16 %v1210
        %v2451 = vunpack.c.h.s8.bf16 %v1211
        %v2452 = vunpack.c.h.s8.bf16 %v1212
        %v2453 = vunpack.c.h.s8.bf16 %v1213
        %v2454 = vunpack.c.h.s8.bf16 %v1214
        %v2455 = vunpack.c.h.s8.bf16 %v1215
        %v2456 = vunpack.c.h.s8.bf16 %v1216
        %v2457 = vunpack.c.h.s8.bf16 %v1217
        %v2458 = vunpack.c.h.s8.bf16 %v1218
        %v2459 = vunpack.c.h.s8.bf16 %v1219
        %v2460 = vunpack.c.h.s8.bf16 %v1220
        %v2461 = vunpack.c.h.s8.bf16 %v1221
        %v2462 = vunpack.c.h.s8.bf16 %v1222
        %v2463 = vunpack.c.h.s8.bf16 %v1223
        %v2464 = vunpack.c.h.s8.bf16 %v1224
        %v2465 = vunpack.c.h.s8.bf16 %v1225
        %v2466 = vunpack.c.h.s8.bf16 %v1226
        %v2467 = vunpack.c.h.s8.bf16 %v1227
        %v2468 = vunpack.c.h.s8.bf16 %v1228
        %v2469 = vunpack.c.h.s8.bf16 %v1229
        %v2470 = vunpack.c.l.s8.bf16 %v1230
        %v2471 = vunpack.c.l.s8.bf16 %v1231
        %v2472 = vunpack.c.l.s8.bf16 %v1232
        %v2473 = vunpack.c.l.s8.bf16 %v1233
        %v2474 = vunpack.c.l.s8.bf16 %v1234
        %v2475 = vunpack.c.l.s8.bf16 %v1235
        %v2476 = vunpack.c.l.s8.bf16 %v1236
        %v2477 = vunpack.c.l.s8.bf16 %v1237
        %v2478 = vunpack.c.l.s8.bf16 %v1238
        %v2479 = vunpack.c.l.s8.bf16 %v1239
        %v2480 = vunpack.c.l.s8.bf16 %v1240
        %v2481 = vunpack.c.l.s8.bf16 %v1241
        %v2482 = vunpack.c.l.s8.bf16 %v1242
        %v2483 = vunpack.c.l.s8.bf16 %v1243
        %v2484 = vunpack.c.l.s8.bf16 %v1244
        %v2485 = vunpack.c.l.s8.bf16 %v1245
        %v2486 = vunpack.c.l.s8.bf16 %v1246
        %v2487 = vunpack.c.l.s8.bf16 %v1247
        %v2488 = vunpack.c.l.s8.bf16 %v1248
        %v2489 = vunpack.c.l.s8.bf16 %v1249
        %v2490 = vunpack.c.l.s8.bf16 %v1250
        %v2491 = vunpack.c.l.s8.bf16 %v1251
        %v2492 = vunpack.c.l.s8.bf16 %v1252
        %v2493 = vunpack.c.l.s8.bf16 %v1253
        %v2494 = vunpack.c.l.s8.bf16 %v1254
        %v2495 = vunpack.c.l.s8.bf16 %v1255
        %v2496 = vunpack.c.l.s8.bf16 %v1256
        %v2497 = vunpack.c.l.s8.bf16 %v1257
        %v2498 = vunpack.c.l.s8.bf16 %v1258
        %v2499 = vunpack.c.l.s8.bf16 %v1259
        %v2500 = vunpack.c.l.s8.bf16 %v1260
        %v2501 = vunpack.c.l.s8.bf16 %v1261
        %v2502 = vunpack.c.l.s8.bf16 %v1262
        %v2503 = vunpack.c.l.s8.bf16 %v1263
        %v2504 = vunpack.c.l.s8.bf16 %v1264
        %v2505 = vunpack.c.l.s8.bf16 %v1265
        %v2506 = vunpack.c.l.s8.bf16 %v1266
        %v2507 = vunpack.c.l.s8.bf16 %v1267
        %v2508 = vunpack.c.l.s8.bf16 %v1268
        %v2509 = vunpack.c.l.s8.bf16 %v1269
        %v2510 = vunpack.c.h.s8.bf16 %v1230
        %v2511 = vunpack.c.h.s8.bf16 %v1231
        %v2512 = vunpack.c.h.s8.bf16 %v1232
        %v2513 = vunpack.c.h.s8.bf16 %v1233
        %v2514 = vunpack.c.h.s8.bf16 %v1234
        %v2515 = vunpack.c.h.s8.bf16 %v1235
        %v2516 = vunpack.c.h.s8.bf16 %v1236
        %v2517 = vunpack.c.h.s8.bf16 %v1237
        %v2518 = vunpack.c.h.s8.bf16 %v1238
        %v2519 = vunpack.c.h.s8.bf16 %v1239
        %v2520 = vunpack.c.h.s8.bf16 %v1240
        %v2521 = vunpack.c.h.s8.bf16 %v1241
        %v2522 = vunpack.c.h.s8.bf16 %v1242
        %v2523 = vunpack.c.h.s8.bf16 %v1243
        %v2524 = vunpack.c.h.s8.bf16 %v1244
        %v2525 = vunpack.c.h.s8.bf16 %v1245
        %v2526 = vunpack.c.h.s8.bf16 %v1246
        %v2527 = vunpack.c.h.s8.bf16 %v1247
        %v2528 = vunpack.c.h.s8.bf16 %v1248
        %v2529 = vunpack.c.h.s8.bf16 %v1249
        %v2530 = vunpack.c.h.s8.bf16 %v1250
        %v2531 = vunpack.c.h.s8.bf16 %v1251
        %v2532 = vunpack.c.h.s8.bf16 %v1252
        %v2533 = vunpack.c.h.s8.bf16 %v1253
        %v2534 = vunpack.c.h.s8.bf16 %v1254
        %v2535 = vunpack.c.h.s8.bf16 %v1255
        %v2536 = vunpack.c.h.s8.bf16 %v1256
        %v2537 = vunpack.c.h.s8.bf16 %v1257
        %v2538 = vunpack.c.h.s8.bf16 %v1258
        %v2539 = vunpack.c.h.s8.bf16 %v1259
        %v2540 = vunpack.c.h.s8.bf16 %v1260
        %v2541 = vunpack.c.h.s8.bf16 %v1261
        %v2542 = vunpack.c.h.s8.bf16 %v1262
        %v2543 = vunpack.c.h.s8.bf16 %v1263
        %v2544 = vunpack.c.h.s8.bf16 %v1264
        %v2545 = vunpack.c.h.s8.bf16 %v1265
        %v2546 = vunpack.c.h.s8.bf16 %v1266
        %v2547 = vunpack.c.h.s8.bf16 %v1267
        %v2548 = vunpack.c.h.s8.bf16 %v1268
        %v2549 = vunpack.c.h.s8.bf16 %v1269
        %v2550 = vpack.c.bf16 %v626, %v622
        %v2551 = vpack.c.bf16 %v627, %v623
        %v2552 = vpack.c.bf16 %v628, %v624
        %v2553 = vpack.c.bf16 %v629, %v625
        %2554 = vmatprep.subr.bf16.mxu0 %v1271
        %2555 = vmatpush1.bf16.msra.mxu0 %v1270
        %2556 = vmatprep.subr.bf16.mxu0 %v1311
        %2557 = vmatpush1.bf16.msra.mxu0 %v1310
        %2558 = vmatprep.subr.bf16.mxu0 %v1351
        %2559 = vmatpush1.bf16.msra.mxu0 %v1350
        %2560 = vmatprep.subr.bf16.mxu0 %v1391
        %2561 = vmatpush1.bf16.msra.mxu0 %v1390
        %2562 = vmatprep.subr.bf16.mxu0 %v1431
        %2563 = vmatpush1.bf16.msra.mxu0 %v1430
        %2564 = vmatprep.subr.bf16.mxu0 %v1471
        %2565 = vmatpush1.bf16.msra.mxu0 %v1470
        %2566 = vmatprep.subr.bf16.mxu0 %v1511
        %2567 = vmatpush1.bf16.msra.mxu0 %v1510
        %2568 = vmatprep.subr.bf16.mxu0 %v1551
        %2569 = vmatpush1.bf16.msra.mxu0 %v1550
        %2570 = vmatprep.subr.bf16.mxu0 %v1591
        %2571 = vmatpush1.bf16.msra.mxu0 %v1590
        %2572 = vmatprep.subr.bf16.mxu0 %v1631
        %2573 = vmatpush1.bf16.msra.mxu0 %v1630
        %2574 = vmatprep.subr.bf16.mxu0 %v1671
        %2575 = vmatpush1.bf16.msra.mxu0 %v1670
        %2576 = vmatprep.subr.bf16.mxu0 %v1711
        %2577 = vmatpush1.bf16.msra.mxu0 %v1710
        %2578 = vmatprep.subr.bf16.mxu0 %v1751
        %2579 = vmatpush1.bf16.msra.mxu0 %v1750
        %2580 = vmatprep.subr.bf16.mxu0 %v1791
        %2581 = vmatpush1.bf16.msra.mxu0 %v1790
        %2582 = vmatprep.subr.bf16.mxu0 %v1831
        %2583 = vmatpush1.bf16.msra.mxu0 %v1830
        %2584 = vmatprep.subr.bf16.mxu0 %v1871
        %2585 = vmatpush1.bf16.msra.mxu0 %v1870
        %2586 = vmatprep.mubr.bf16.mxu0 %v2551
        %2587 = vmatmul.mubr.bf16.gmra.mrb[0].mxu0 %v2550
        %v2588 = vpop.f32.mrb[0].mxu0
        %v2589 = vadd.f32 0.0, %v2588
        %v2590 = vpop.f32.mrb[0].mxu0
        %v2591 = vadd.f32 0.0, %v2590
        %v2592 = vpop.f32.mrb[0].mxu0
        %v2593 = vadd.f32 0.0, %v2592
        %v2594 = vpop.f32.mrb[0].mxu0
        %v2595 = vadd.f32 0.0, %v2594
        %2596 = vdwg.mxu0
        %2597 = vmatprep.subr.bf16.mxu0 %v1911
        %2598 = vmatpush1.bf16.msra.mxu0 %v1910
        %2599 = vmatprep.subr.bf16.mxu0 %v1951
        %2600 = vmatpush1.bf16.msra.mxu0 %v1950
        %2601 = vmatprep.subr.bf16.mxu0 %v1991
        %2602 = vmatpush1.bf16.msra.mxu0 %v1990
        %2603 = vmatprep.subr.bf16.mxu0 %v2031
        %2604 = vmatpush1.bf16.msra.mxu0 %v2030
        %2605 = vmatprep.subr.bf16.mxu0 %v2071
        %2606 = vmatpush1.bf16.msra.mxu0 %v2070
        %2607 = vmatprep.subr.bf16.mxu0 %v2111
        %2608 = vmatpush1.bf16.msra.mxu0 %v2110
        %2609 = vmatprep.subr.bf16.mxu0 %v2151
        %2610 = vmatpush1.bf16.msra.mxu0 %v2150
        %2611 = vmatprep.subr.bf16.mxu0 %v2191
        %2612 = vmatpush1.bf16.msra.mxu0 %v2190
        %2613 = vmatprep.subr.bf16.mxu0 %v2231
        %2614 = vmatpush1.bf16.msra.mxu0 %v2230
        %2615 = vmatprep.subr.bf16.mxu0 %v2271
        %2616 = vmatpush1.bf16.msra.mxu0 %v2270
        %2617 = vmatprep.subr.bf16.mxu0 %v2311
        %2618 = vmatpush1.bf16.msra.mxu0 %v2310
        %2619 = vmatprep.subr.bf16.mxu0 %v2351
        %2620 = vmatpush1.bf16.msra.mxu0 %v2350
        %2621 = vmatprep.subr.bf16.mxu0 %v2391
        %2622 = vmatpush1.bf16.msra.mxu0 %v2390
        %2623 = vmatprep.subr.bf16.mxu0 %v2431
        %2624 = vmatpush1.bf16.msra.mxu0 %v2430
        %2625 = vmatprep.subr.bf16.mxu0 %v2471
        %2626 = vmatpush1.bf16.msra.mxu0 %v2470
        %2627 = vmatprep.subr.bf16.mxu0 %v2511
        %2628 = vmatpush1.bf16.msra.mxu0 %v2510
        %2629 = vmatprep.mubr.bf16.mxu0 %v2553
        %2630 = vmatmul.mubr.bf16.gmra.mrb[0].mxu0 %v2552
        %v2631 = vpop.f32.mrb[0].mxu0
        %v2632 = vadd.f32 %v2589, %v2631
        %v2633 = vpop.f32.mrb[0].mxu0
        %v2634 = vadd.f32 %v2591, %v2633
        %v2635 = vpop.f32.mrb[0].mxu0
        %v2636 = vadd.f32 %v2593, %v2635
        %v2637 = vpop.f32.mrb[0].mxu0
        %v2638 = vadd.f32 %v2595, %v2637
        %2639 = vdwg.mxu0
        %2640 = vmatprep.subr.bf16.mxu0 %v1273
        %2641 = vmatpush1.bf16.msra.mxu0 %v1272
        %2642 = vmatprep.subr.bf16.mxu0 %v1313
        %2643 = vmatpush1.bf16.msra.mxu0 %v1312
        %2644 = vmatprep.subr.bf16.mxu0 %v1353
        %2645 = vmatpush1.bf16.msra.mxu0 %v1352
        %2646 = vmatprep.subr.bf16.mxu0 %v1393
        %2647 = vmatpush1.bf16.msra.mxu0 %v1392
        %2648 = vmatprep.subr.bf16.mxu0 %v1433
        %2649 = vmatpush1.bf16.msra.mxu0 %v1432
        %2650 = vmatprep.subr.bf16.mxu0 %v1473
        %2651 = vmatpush1.bf16.msra.mxu0 %v1472
        %2652 = vmatprep.subr.bf16.mxu0 %v1513
        %2653 = vmatpush1.bf16.msra.mxu0 %v1512
        %2654 = vmatprep.subr.bf16.mxu0 %v1553
        %2655 = vmatpush1.bf16.msra.mxu0 %v1552
        %2656 = vmatprep.subr.bf16.mxu0 %v1593
        %2657 = vmatpush1.bf16.msra.mxu0 %v1592
        %2658 = vmatprep.subr.bf16.mxu0 %v1633
        %2659 = vmatpush1.bf16.msra.mxu0 %v1632
        %2660 = vmatprep.subr.bf16.mxu0 %v1673
        %2661 = vmatpush1.bf16.msra.mxu0 %v1672
        %2662 = vmatprep.subr.bf16.mxu0 %v1713
        %2663 = vmatpush1.bf16.msra.mxu0 %v1712
        %2664 = vmatprep.subr.bf16.mxu0 %v1753
        %2665 = vmatpush1.bf16.msra.mxu0 %v1752
        %2666 = vmatprep.subr.bf16.mxu0 %v1793
        %2667 = vmatpush1.bf16.msra.mxu0 %v1792
        %2668 = vmatprep.subr.bf16.mxu0 %v1833
        %2669 = vmatpush1.bf16.msra.mxu0 %v1832
        %2670 = vmatprep.subr.bf16.mxu0 %v1873
        %2671 = vmatpush1.bf16.msra.mxu0 %v1872
        %2672 = vmatprep.mubr.bf16.mxu0 %v2551
        %2673 = vmatmul.mubr.bf16.gmra.mrb[0].mxu0 %v2550
        %v2674 = vpop.f32.mrb[0].mxu0
        %v2675 = vadd.f32 0.0, %v2674
        %v2676 = vpop.f32.mrb[0].mxu0
        %v2677 = vadd.f32 0.0, %v2676
        %v2678 = vpop.f32.mrb[0].mxu0
        %v2679 = vadd.f32 0.0, %v2678
        %v2680 = vpop.f32.mrb[0].mxu0
        %v2681 = vadd.f32 0.0, %v2680
        %2682 = vdwg.mxu0
        %2683 = vmatprep.subr.bf16.mxu0 %v1913
        %2684 = vmatpush1.bf16.msra.mxu0 %v1912
        %2685 = vmatprep.subr.bf16.mxu0 %v1953
        %2686 = vmatpush1.bf16.msra.mxu0 %v1952
        %2687 = vmatprep.subr.bf16.mxu0 %v1993
        %2688 = vmatpush1.bf16.msra.mxu0 %v1992
        %2689 = vmatprep.subr.bf16.mxu0 %v2033
        %2690 = vmatpush1.bf16.msra.mxu0 %v2032
        %2691 = vmatprep.subr.bf16.mxu0 %v2073
        %2692 = vmatpush1.bf16.msra.mxu0 %v2072
        %2693 = vmatprep.subr.bf16.mxu0 %v2113
        %2694 = vmatpush1.bf16.msra.mxu0 %v2112
        %2695 = vmatprep.subr.bf16.mxu0 %v2153
        %2696 = vmatpush1.bf16.msra.mxu0 %v2152
        %2697 = vmatprep.subr.bf16.mxu0 %v2193
        %2698 = vmatpush1.bf16.msra.mxu0 %v2192
        %2699 = vmatprep.subr.bf16.mxu0 %v2233
        %2700 = vmatpush1.bf16.msra.mxu0 %v2232
        %2701 = vmatprep.subr.bf16.mxu0 %v2273
        %2702 = vmatpush1.bf16.msra.mxu0 %v2272
        %2703 = vmatprep.subr.bf16.mxu0 %v2313
        %2704 = vmatpush1.bf16.msra.mxu0 %v2312
        %2705 = vmatprep.subr.bf16.mxu0 %v2353
        %2706 = vmatpush1.bf16.msra.mxu0 %v2352
        %2707 = vmatprep.subr.bf16.mxu0 %v2393
        %2708 = vmatpush1.bf16.msra.mxu0 %v2392
        %2709 = vmatprep.subr.bf16.mxu0 %v2433
        %2710 = vmatpush1.bf16.msra.mxu0 %v2432
        %2711 = vmatprep.subr.bf16.mxu0 %v2473
        %2712 = vmatpush1.bf16.msra.mxu0 %v2472
        %2713 = vmatprep.subr.bf16.mxu0 %v2513
        %2714 = vmatpush1.bf16.msra.mxu0 %v2512
        %2715 = vmatprep.mubr.bf16.mxu0 %v2553
        %2716 = vmatmul.mubr.bf16.gmra.mrb[0].mxu0 %v2552
        %v2717 = vpop.f32.mrb[0].mxu0
        %v2718 = vadd.f32 %v2675, %v2717
        %v2719 = vpop.f32.mrb[0].mxu0
        %v2720 = vadd.f32 %v2677, %v2719
        %v2721 = vpop.f32.mrb[0].mxu0
        %v2722 = vadd.f32 %v2679, %v2721
        %v2723 = vpop.f32.mrb[0].mxu0
        %v2724 = vadd.f32 %v2681, %v2723
        %2725 = vdwg.mxu0
        %2726 = vmatprep.subr.bf16.mxu0 %v1275
        %2727 = vmatpush1.bf16.msra.mxu0 %v1274
        %2728 = vmatprep.subr.bf16.mxu0 %v1315
        %2729 = vmatpush1.bf16.msra.mxu0 %v1314
        %2730 = vmatprep.subr.bf16.mxu0 %v1355
        %2731 = vmatpush1.bf16.msra.mxu0 %v1354
        %2732 = vmatprep.subr.bf16.mxu0 %v1395
        %2733 = vmatpush1.bf16.msra.mxu0 %v1394
        %2734 = vmatprep.subr.bf16.mxu0 %v1435
        %2735 = vmatpush1.bf16.msra.mxu0 %v1434
        %2736 = vmatprep.subr.bf16.mxu0 %v1475
        %2737 = vmatpush1.bf16.msra.mxu0 %v1474
        %2738 = vmatprep.subr.bf16.mxu0 %v1515
        %2739 = vmatpush1.bf16.msra.mxu0 %v1514
        %2740 = vmatprep.subr.bf16.mxu0 %v1555
        %2741 = vmatpush1.bf16.msra.mxu0 %v1554
        %2742 = vmatprep.subr.bf16.mxu0 %v1595
        %2743 = vmatpush1.bf16.msra.mxu0 %v1594
        %2744 = vmatprep.subr.bf16.mxu0 %v1635
        %2745 = vmatpush1.bf16.msra.mxu0 %v1634
        %2746 = vmatprep.subr.bf16.mxu0 %v1675
        %2747 = vmatpush1.bf16.msra.mxu0 %v1674
        %2748 = vmatprep.subr.bf16.mxu0 %v1715
        %2749 = vmatpush1.bf16.msra.mxu0 %v1714
        %2750 = vmatprep.subr.bf16.mxu0 %v1755
        %2751 = vmatpush1.bf16.msra.mxu0 %v1754
        %2752 = vmatprep.subr.bf16.mxu0 %v1795
        %2753 = vmatpush1.bf16.msra.mxu0 %v1794
        %2754 = vmatprep.subr.bf16.mxu0 %v1835
        %2755 = vmatpush1.bf16.msra.mxu0 %v1834
        %2756 = vmatprep.subr.bf16.mxu0 %v1875
        %2757 = vmatpush1.bf16.msra.mxu0 %v1874
        %2758 = vmatprep.mubr.bf16.mxu0 %v2551
        %2759 = vmatmul.mubr.bf16.gmra.mrb[0].mxu0 %v2550
        %v2760 = vpop.f32.mrb[0].mxu0
        %v2761 = vadd.f32 0.0, %v2760
        %v2762 = vpop.f32.mrb[0].mxu0
        %v2763 = vadd.f32 0.0, %v2762
        %v2764 = vpop.f32.mrb[0].mxu0
        %v2765 = vadd.f32 0.0, %v2764
        %v2766 = vpop.f32.mrb[0].mxu0
        %v2767 = vadd.f32 0.0, %v2766
        %2768 = vdwg.mxu0
        %2769 = vmatprep.subr.bf16.mxu0 %v1915
        %2770 = vmatpush1.bf16.msra.mxu0 %v1914
        %2771 = vmatprep.subr.bf16.mxu0 %v1955
        %2772 = vmatpush1.bf16.msra.mxu0 %v1954
        %2773 = vmatprep.subr.bf16.mxu0 %v1995
        %2774 = vmatpush1.bf16.msra.mxu0 %v1994
        %2775 = vmatprep.subr.bf16.mxu0 %v2035
        %2776 = vmatpush1.bf16.msra.mxu0 %v2034
        %2777 = vmatprep.subr.bf16.mxu0 %v2075
        %2778 = vmatpush1.bf16.msra.mxu0 %v2074
        %2779 = vmatprep.subr.bf16.mxu0 %v2115
        %2780 = vmatpush1.bf16.msra.mxu0 %v2114
        %2781 = vmatprep.subr.bf16.mxu0 %v2155
        %2782 = vmatpush1.bf16.msra.mxu0 %v2154
        %2783 = vmatprep.subr.bf16.mxu0 %v2195
        %2784 = vmatpush1.bf16.msra.mxu0 %v2194
        %2785 = vmatprep.subr.bf16.mxu0 %v2235
        %2786 = vmatpush1.bf16.msra.mxu0 %v2234
        %2787 = vmatprep.subr.bf16.mxu0 %v2275
        %2788 = vmatpush1.bf16.msra.mxu0 %v2274
        %2789 = vmatprep.subr.bf16.mxu0 %v2315
        %2790 = vmatpush1.bf16.msra.mxu0 %v2314
        %2791 = vmatprep.subr.bf16.mxu0 %v2355
        %2792 = vmatpush1.bf16.msra.mxu0 %v2354
        %2793 = vmatprep.subr.bf16.mxu0 %v2395
        %2794 = vmatpush1.bf16.msra.mxu0 %v2394
        %2795 = vmatprep.subr.bf16.mxu0 %v2435
        %2796 = vmatpush1.bf16.msra.mxu0 %v2434
        %2797 = vmatprep.subr.bf16.mxu0 %v2475
        %2798 = vmatpush1.bf16.msra.mxu0 %v2474
        %2799 = vmatprep.subr.bf16.mxu0 %v2515
        %2800 = vmatpush1.bf16.msra.mxu0 %v2514
        %2801 = vmatprep.mubr.bf16.mxu0 %v2553
        %2802 = vmatmul.mubr.bf16.gmra.mrb[0].mxu0 %v2552
        %v2803 = vpop.f32.mrb[0].mxu0
        %v2804 = vadd.f32 %v2761, %v2803
        %v2805 = vpop.f32.mrb[0].mxu0
        %v2806 = vadd.f32 %v2763, %v2805
        %v2807 = vpop.f32.mrb[0].mxu0
        %v2808 = vadd.f32 %v2765, %v2807
        %v2809 = vpop.f32.mrb[0].mxu0
        %v2810 = vadd.f32 %v2767, %v2809
        %2811 = vdwg.mxu0
        %2812 = vmatprep.subr.bf16.mxu0 %v1277
        %2813 = vmatpush1.bf16.msra.mxu0 %v1276
        %2814 = vmatprep.subr.bf16.mxu0 %v1317
        %2815 = vmatpush1.bf16.msra.mxu0 %v1316
        %2816 = vmatprep.subr.bf16.mxu0 %v1357
        %2817 = vmatpush1.bf16.msra.mxu0 %v1356
        %2818 = vmatprep.subr.bf16.mxu0 %v1397
        %2819 = vmatpush1.bf16.msra.mxu0 %v1396
        %2820 = vmatprep.subr.bf16.mxu0 %v1437
        %2821 = vmatpush1.bf16.msra.mxu0 %v1436
        %2822 = vmatprep.subr.bf16.mxu0 %v1477
        %2823 = vmatpush1.bf16.msra.mxu0 %v1476
        %2824 = vmatprep.subr.bf16.mxu0 %v1517
        %2825 = vmatpush1.bf16.msra.mxu0 %v1516
        %2826 = vmatprep.subr.bf16.mxu0 %v1557
        %2827 = vmatpush1.bf16.msra.mxu0 %v1556
        %2828 = vmatprep.subr.bf16.mxu0 %v1597
        %2829 = vmatpush1.bf16.msra.mxu0 %v1596
        %2830 = vmatprep.subr.bf16.mxu0 %v1637
        %2831 = vmatpush1.bf16.msra.mxu0 %v1636
        %2832 = vmatprep.subr.bf16.mxu0 %v1677
        %2833 = vmatpush1.bf16.msra.mxu0 %v1676
        %2834 = vmatprep.subr.bf16.mxu0 %v1717
        %2835 = vmatpush1.bf16.msra.mxu0 %v1716
        %2836 = vmatprep.subr.bf16.mxu0 %v1757
        %2837 = vmatpush1.bf16.msra.mxu0 %v1756
        %2838 = vmatprep.subr.bf16.mxu0 %v1797
        %2839 = vmatpush1.bf16.msra.mxu0 %v1796
        %2840 = vmatprep.subr.bf16.mxu0 %v1837
        %2841 = vmatpush1.bf16.msra.mxu0 %v1836
        %2842 = vmatprep.subr.bf16.mxu0 %v1877
        %2843 = vmatpush1.bf16.msra.mxu0 %v1876
        %2844 = vmatprep.mubr.bf16.mxu0 %v2551
        %2845 = vmatmul.mubr.bf16.gmra.mrb[0].mxu0 %v2550
        %v2846 = vpop.f32.mrb[0].mxu0
        %v2847 = vadd.f32 0.0, %v2846
        %v2848 = vpop.f32.mrb[0].mxu0
        %v2849 = vadd.f32 0.0, %v2848
        %v2850 = vpop.f32.mrb[0].mxu0
        %v2851 = vadd.f32 0.0, %v2850
        %v2852 = vpop.f32.mrb[0].mxu0
        %v2853 = vadd.f32 0.0, %v2852
        %2854 = vdwg.mxu0
        %2855 = vmatprep.subr.bf16.mxu0 %v1917
        %2856 = vmatpush1.bf16.msra.mxu0 %v1916
        %2857 = vmatprep.subr.bf16.mxu0 %v1957
        %2858 = vmatpush1.bf16.msra.mxu0 %v1956
        %2859 = vmatprep.subr.bf16.mxu0 %v1997
        %2860 = vmatpush1.bf16.msra.mxu0 %v1996
        %2861 = vmatprep.subr.bf16.mxu0 %v2037
        %2862 = vmatpush1.bf16.msra.mxu0 %v2036
        %2863 = vmatprep.subr.bf16.mxu0 %v2077
        %2864 = vmatpush1.bf16.msra.mxu0 %v2076
        %2865 = vmatprep.subr.bf16.mxu0 %v2117
        %2866 = vmatpush1.bf16.msra.mxu0 %v2116
        %2867 = vmatprep.subr.bf16.mxu0 %v2157
        %2868 = vmatpush1.bf16.msra.mxu0 %v2156
        %2869 = vmatprep.subr.bf16.mxu0 %v2197
        %2870 = vmatpush1.bf16.msra.mxu0 %v2196
        %2871 = vmatprep.subr.bf16.mxu0 %v2237
        %2872 = vmatpush1.bf16.msra.mxu0 %v2236
        %2873 = vmatprep.subr.bf16.mxu0 %v2277
        %2874 = vmatpush1.bf16.msra.mxu0 %v2276
        %2875 = vmatprep.subr.bf16.mxu0 %v2317
        %2876 = vmatpush1.bf16.msra.mxu0 %v2316
        %2877 = vmatprep.subr.bf16.mxu0 %v2357
        %2878 = vmatpush1.bf16.msra.mxu0 %v2356
        %2879 = vmatprep.subr.bf16.mxu0 %v2397
        %2880 = vmatpush1.bf16.msra.mxu0 %v2396
        %2881 = vmatprep.subr.bf16.mxu0 %v2437
        %2882 = vmatpush1.bf16.msra.mxu0 %v2436
        %2883 = vmatprep.subr.bf16.mxu0 %v2477
        %2884 = vmatpush1.bf16.msra.mxu0 %v2476
        %2885 = vmatprep.subr.bf16.mxu0 %v2517
        %2886 = vmatpush1.bf16.msra.mxu0 %v2516
        %2887 = vmatprep.mubr.bf16.mxu0 %v2553
        %2888 = vmatmul.mubr.bf16.gmra.mrb[0].mxu0 %v2552
        %v2889 = vpop.f32.mrb[0].mxu0
        %v2890 = vadd.f32 %v2847, %v2889
        %v2891 = vpop.f32.mrb[0].mxu0
        %v2892 = vadd.f32 %v2849, %v2891
        %v2893 = vpop.f32.mrb[0].mxu0
        %v2894 = vadd.f32 %v2851, %v2893
        %v2895 = vpop.f32.mrb[0].mxu0
        %v2896 = vadd.f32 %v2853, %v2895
        %2897 = vdwg.mxu0
        %2898 = vmatprep.subr.bf16.mxu0 %v1279
        %2899 = vmatpush1.bf16.msra.mxu0 %v1278
        %2900 = vmatprep.subr.bf16.mxu0 %v1319
        %2901 = vmatpush1.bf16.msra.mxu0 %v1318
        %2902 = vmatprep.subr.bf16.mxu0 %v1359
        %2903 = vmatpush1.bf16.msra.mxu0 %v1358
        %2904 = vmatprep.subr.bf16.mxu0 %v1399
        %2905 = vmatpush1.bf16.msra.mxu0 %v1398
        %2906 = vmatprep.subr.bf16.mxu0 %v1439
        %2907 = vmatpush1.bf16.msra.mxu0 %v1438
        %2908 = vmatprep.subr.bf16.mxu0 %v1479
        %2909 = vmatpush1.bf16.msra.mxu0 %v1478
        %2910 = vmatprep.subr.bf16.mxu0 %v1519
        %2911 = vmatpush1.bf16.msra.mxu0 %v1518
        %2912 = vmatprep.subr.bf16.mxu0 %v1559
        %2913 = vmatpush1.bf16.msra.mxu0 %v1558
        %2914 = vmatprep.subr.bf16.mxu0 %v1599
        %2915 = vmatpush1.bf16.msra.mxu0 %v1598
        %2916 = vmatprep.subr.bf16.mxu0 %v1639
        %2917 = vmatpush1.bf16.msra.mxu0 %v1638
        %2918 = vmatprep.subr.bf16.mxu0 %v1679
        %2919 = vmatpush1.bf16.msra.mxu0 %v1678
        %2920 = vmatprep.subr.bf16.mxu0 %v1719
        %2921 = vmatpush1.bf16.msra.mxu0 %v1718
        %2922 = vmatprep.subr.bf16.mxu0 %v1759
        %2923 = vmatpush1.bf16.msra.mxu0 %v1758
        %2924 = vmatprep.subr.bf16.mxu0 %v1799
        %2925 = vmatpush1.bf16.msra.mxu0 %v1798
        %2926 = vmatprep.subr.bf16.mxu0 %v1839
        %2927 = vmatpush1.bf16.msra.mxu0 %v1838
        %2928 = vmatprep.subr.bf16.mxu0 %v1879
        %2929 = vmatpush1.bf16.msra.mxu0 %v1878
        %2930 = vmatprep.mubr.bf16.mxu0 %v2551
        %2931 = vmatmul.mubr.bf16.gmra.mrb[0].mxu0 %v2550
        %v2932 = vpop.f32.mrb[0].mxu0
        %v2933 = vadd.f32 0.0, %v2932
        %v2934 = vpop.f32.mrb[0].mxu0
        %v2935 = vadd.f32 0.0, %v2934
        %v2936 = vpop.f32.mrb[0].mxu0
        %v2937 = vadd.f32 0.0, %v2936
        %v2938 = vpop.f32.mrb[0].mxu0
        %v2939 = vadd.f32 0.0, %v2938
        %2940 = vdwg.mxu0
        %2941 = vmatprep.subr.bf16.mxu0 %v1919
        %2942 = vmatpush1.bf16.msra.mxu0 %v1918
        %2943 = vmatprep.subr.bf16.mxu0 %v1959
        %2944 = vmatpush1.bf16.msra.mxu0 %v1958
        %2945 = vmatprep.subr.bf16.mxu0 %v1999
        %2946 = vmatpush1.bf16.msra.mxu0 %v1998
        %2947 = vmatprep.subr.bf16.mxu0 %v2039
        %2948 = vmatpush1.bf16.msra.mxu0 %v2038
        %2949 = vmatprep.subr.bf16.mxu0 %v2079
        %2950 = vmatpush1.bf16.msra.mxu0 %v2078
        %2951 = vmatprep.subr.bf16.mxu0 %v2119
        %2952 = vmatpush1.bf16.msra.mxu0 %v2118
        %2953 = vmatprep.subr.bf16.mxu0 %v2159
        %2954 = vmatpush1.bf16.msra.mxu0 %v2158
        %2955 = vmatprep.subr.bf16.mxu0 %v2199
        %2956 = vmatpush1.bf16.msra.mxu0 %v2198
        %2957 = vmatprep.subr.bf16.mxu0 %v2239
        %2958 = vmatpush1.bf16.msra.mxu0 %v2238
        %2959 = vmatprep.subr.bf16.mxu0 %v2279
        %2960 = vmatpush1.bf16.msra.mxu0 %v2278
        %2961 = vmatprep.subr.bf16.mxu0 %v2319
        %2962 = vmatpush1.bf16.msra.mxu0 %v2318
        %2963 = vmatprep.subr.bf16.mxu0 %v2359
        %2964 = vmatpush1.bf16.msra.mxu0 %v2358
        %2965 = vmatprep.subr.bf16.mxu0 %v2399
        %2966 = vmatpush1.bf16.msra.mxu0 %v2398
        %2967 = vmatprep.subr.bf16.mxu0 %v2439
        %2968 = vmatpush1.bf16.msra.mxu0 %v2438
        %2969 = vmatprep.subr.bf16.mxu0 %v2479
        %2970 = vmatpush1.bf16.msra.mxu0 %v2478
        %2971 = vmatprep.subr.bf16.mxu0 %v2519
        %2972 = vmatpush1.bf16.msra.mxu0 %v2518
        %2973 = vmatprep.mubr.bf16.mxu0 %v2553
        %2974 = vmatmul.mubr.bf16.gmra.mrb[0].mxu0 %v2552
        %v2975 = vpop.f32.mrb[0].mxu0
        %v2976 = vadd.f32 %v2933, %v2975
        %v2977 = vpop.f32.mrb[0].mxu0
        %v2978 = vadd.f32 %v2935, %v2977
        %v2979 = vpop.f32.mrb[0].mxu0
        %v2980 = vadd.f32 %v2937, %v2979
        %v2981 = vpop.f32.mrb[0].mxu0
        %v2982 = vadd.f32 %v2939, %v2981
        %2983 = vdwg.mxu0
        %2984 = vmatprep.subr.bf16.mxu0 %v1281
        %2985 = vmatpush1.bf16.msra.mxu0 %v1280
        %2986 = vmatprep.subr.bf16.mxu0 %v1321
        %2987 = vmatpush1.bf16.msra.mxu0 %v1320
        %2988 = vmatprep.subr.bf16.mxu0 %v1361
        %2989 = vmatpush1.bf16.msra.mxu0 %v1360
        %2990 = vmatprep.subr.bf16.mxu0 %v1401
        %2991 = vmatpush1.bf16.msra.mxu0 %v1400
        %2992 = vmatprep.subr.bf16.mxu0 %v1441
        %2993 = vmatpush1.bf16.msra.mxu0 %v1440
        %2994 = vmatprep.subr.bf16.mxu0 %v1481
        %2995 = vmatpush1.bf16.msra.mxu0 %v1480
        %2996 = vmatprep.subr.bf16.mxu0 %v1521
        %2997 = vmatpush1.bf16.msra.mxu0 %v1520
        %2998 = vmatprep.subr.bf16.mxu0 %v1561
        %2999 = vmatpush1.bf16.msra.mxu0 %v1560
        %3000 = vmatprep.subr.bf16.mxu0 %v1601
        %3001 = vmatpush1.bf16.msra.mxu0 %v1600
        %3002 = vmatprep.subr.bf16.mxu0 %v1641
        %3003 = vmatpush1.bf16.msra.mxu0 %v1640
        %3004 = vmatprep.subr.bf16.mxu0 %v1681
        %3005 = vmatpush1.bf16.msra.mxu0 %v1680
        %3006 = vmatprep.subr.bf16.mxu0 %v1721
        %3007 = vmatpush1.bf16.msra.mxu0 %v1720
        %3008 = vmatprep.subr.bf16.mxu0 %v1761
        %3009 = vmatpush1.bf16.msra.mxu0 %v1760
        %3010 = vmatprep.subr.bf16.mxu0 %v1801
        %3011 = vmatpush1.bf16.msra.mxu0 %v1800
        %3012 = vmatprep.subr.bf16.mxu0 %v1841
        %3013 = vmatpush1.bf16.msra.mxu0 %v1840
        %3014 = vmatprep.subr.bf16.mxu0 %v1881
        %3015 = vmatpush1.bf16.msra.mxu0 %v1880
        %3016 = vmatprep.mubr.bf16.mxu0 %v2551
        %3017 = vmatmul.mubr.bf16.gmra.mrb[0].mxu0 %v2550
        %v3018 = vpop.f32.mrb[0].mxu0
        %v3019 = vadd.f32 0.0, %v3018
        %v3020 = vpop.f32.mrb[0].mxu0
        %v3021 = vadd.f32 0.0, %v3020
        %v3022 = vpop.f32.mrb[0].mxu0
        %v3023 = vadd.f32 0.0, %v3022
        %v3024 = vpop.f32.mrb[0].mxu0
        %v3025 = vadd.f32 0.0, %v3024
        %3026 = vdwg.mxu0
        %3027 = vmatprep.subr.bf16.mxu0 %v1921
        %3028 = vmatpush1.bf16.msra.mxu0 %v1920
        %3029 = vmatprep.subr.bf16.mxu0 %v1961
        %3030 = vmatpush1.bf16.msra.mxu0 %v1960
        %3031 = vmatprep.subr.bf16.mxu0 %v2001
        %3032 = vmatpush1.bf16.msra.mxu0 %v2000
        %3033 = vmatprep.subr.bf16.mxu0 %v2041
        %3034 = vmatpush1.bf16.msra.mxu0 %v2040
        %3035 = vmatprep.subr.bf16.mxu0 %v2081
        %3036 = vmatpush1.bf16.msra.mxu0 %v2080
        %3037 = vmatprep.subr.bf16.mxu0 %v2121
        %3038 = vmatpush1.bf16.msra.mxu0 %v2120
        %3039 = vmatprep.subr.bf16.mxu0 %v2161
        %3040 = vmatpush1.bf16.msra.mxu0 %v2160
        %3041 = vmatprep.subr.bf16.mxu0 %v2201
        %3042 = vmatpush1.bf16.msra.mxu0 %v2200
        %3043 = vmatprep.subr.bf16.mxu0 %v2241
        %3044 = vmatpush1.bf16.msra.mxu0 %v2240
        %3045 = vmatprep.subr.bf16.mxu0 %v2281
        %3046 = vmatpush1.bf16.msra.mxu0 %v2280
        %3047 = vmatprep.subr.bf16.mxu0 %v2321
        %3048 = vmatpush1.bf16.msra.mxu0 %v2320
        %3049 = vmatprep.subr.bf16.mxu0 %v2361
        %3050 = vmatpush1.bf16.msra.mxu0 %v2360
        %3051 = vmatprep.subr.bf16.mxu0 %v2401
        %3052 = vmatpush1.bf16.msra.mxu0 %v2400
        %3053 = vmatprep.subr.bf16.mxu0 %v2441
        %3054 = vmatpush1.bf16.msra.mxu0 %v2440
        %3055 = vmatprep.subr.bf16.mxu0 %v2481
        %3056 = vmatpush1.bf16.msra.mxu0 %v2480
        %3057 = vmatprep.subr.bf16.mxu0 %v2521
        %3058 = vmatpush1.bf16.msra.mxu0 %v2520
        %3059 = vmatprep.mubr.bf16.mxu0 %v2553
        %3060 = vmatmul.mubr.bf16.gmra.mrb[0].mxu0 %v2552
        %v3061 = vpop.f32.mrb[0].mxu0
        %v3062 = vadd.f32 %v3019, %v3061
        %v3063 = vpop.f32.mrb[0].mxu0
        %v3064 = vadd.f32 %v3021, %v3063
        %v3065 = vpop.f32.mrb[0].mxu0
        %v3066 = vadd.f32 %v3023, %v3065
        %v3067 = vpop.f32.mrb[0].mxu0
        %v3068 = vadd.f32 %v3025, %v3067
        %3069 = vdwg.mxu0
        %3070 = vmatprep.subr.bf16.mxu0 %v1283
        %3071 = vmatpush1.bf16.msra.mxu0 %v1282
        %3072 = vmatprep.subr.bf16.mxu0 %v1323
        %3073 = vmatpush1.bf16.msra.mxu0 %v1322
        %3074 = vmatprep.subr.bf16.mxu0 %v1363
        %3075 = vmatpush1.bf16.msra.mxu0 %v1362
        %3076 = vmatprep.subr.bf16.mxu0 %v1403
        %3077 = vmatpush1.bf16.msra.mxu0 %v1402
        %3078 = vmatprep.subr.bf16.mxu0 %v1443
        %3079 = vmatpush1.bf16.msra.mxu0 %v1442
        %3080 = vmatprep.subr.bf16.mxu0 %v1483
        %3081 = vmatpush1.bf16.msra.mxu0 %v1482
        %3082 = vmatprep.subr.bf16.mxu0 %v1523
        %3083 = vmatpush1.bf16.msra.mxu0 %v1522
        %3084 = vmatprep.subr.bf16.mxu0 %v1563
        %3085 = vmatpush1.bf16.msra.mxu0 %v1562
        %3086 = vmatprep.subr.bf16.mxu0 %v1603
        %3087 = vmatpush1.bf16.msra.mxu0 %v1602
        %3088 = vmatprep.subr.bf16.mxu0 %v1643
        %3089 = vmatpush1.bf16.msra.mxu0 %v1642
        %3090 = vmatprep.subr.bf16.mxu0 %v1683
        %3091 = vmatpush1.bf16.msra.mxu0 %v1682
        %3092 = vmatprep.subr.bf16.mxu0 %v1723
        %3093 = vmatpush1.bf16.msra.mxu0 %v1722
        %3094 = vmatprep.subr.bf16.mxu0 %v1763
        %3095 = vmatpush1.bf16.msra.mxu0 %v1762
        %3096 = vmatprep.subr.bf16.mxu0 %v1803
        %3097 = vmatpush1.bf16.msra.mxu0 %v1802
        %3098 = vmatprep.subr.bf16.mxu0 %v1843
        %3099 = vmatpush1.bf16.msra.mxu0 %v1842
        %3100 = vmatprep.subr.bf16.mxu0 %v1883
        %3101 = vmatpush1.bf16.msra.mxu0 %v1882
        %3102 = vmatprep.mubr.bf16.mxu0 %v2551
        %3103 = vmatmul.mubr.bf16.gmra.mrb[0].mxu0 %v2550
        %v3104 = vpop.f32.mrb[0].mxu0
        %v3105 = vadd.f32 0.0, %v3104
        %v3106 = vpop.f32.mrb[0].mxu0
        %v3107 = vadd.f32 0.0, %v3106
        %v3108 = vpop.f32.mrb[0].mxu0
        %v3109 = vadd.f32 0.0, %v3108
        %v3110 = vpop.f32.mrb[0].mxu0
        %v3111 = vadd.f32 0.0, %v3110
        %3112 = vdwg.mxu0
        %3113 = vmatprep.subr.bf16.mxu0 %v1923
        %3114 = vmatpush1.bf16.msra.mxu0 %v1922
        %3115 = vmatprep.subr.bf16.mxu0 %v1963
        %3116 = vmatpush1.bf16.msra.mxu0 %v1962
        %3117 = vmatprep.subr.bf16.mxu0 %v2003
        %3118 = vmatpush1.bf16.msra.mxu0 %v2002
        %3119 = vmatprep.subr.bf16.mxu0 %v2043
        %3120 = vmatpush1.bf16.msra.mxu0 %v2042
        %3121 = vmatprep.subr.bf16.mxu0 %v2083
        %3122 = vmatpush1.bf16.msra.mxu0 %v2082
        %3123 = vmatprep.subr.bf16.mxu0 %v2123
        %3124 = vmatpush1.bf16.msra.mxu0 %v2122
        %3125 = vmatprep.subr.bf16.mxu0 %v2163
        %3126 = vmatpush1.bf16.msra.mxu0 %v2162
        %3127 = vmatprep.subr.bf16.mxu0 %v2203
        %3128 = vmatpush1.bf16.msra.mxu0 %v2202
        %3129 = vmatprep.subr.bf16.mxu0 %v2243
        %3130 = vmatpush1.bf16.msra.mxu0 %v2242
        %3131 = vmatprep.subr.bf16.mxu0 %v2283
        %3132 = vmatpush1.bf16.msra.mxu0 %v2282
        %3133 = vmatprep.subr.bf16.mxu0 %v2323
        %3134 = vmatpush1.bf16.msra.mxu0 %v2322
        %3135 = vmatprep.subr.bf16.mxu0 %v2363
        %3136 = vmatpush1.bf16.msra.mxu0 %v2362
        %3137 = vmatprep.subr.bf16.mxu0 %v2403
        %3138 = vmatpush1.bf16.msra.mxu0 %v2402
        %3139 = vmatprep.subr.bf16.mxu0 %v2443
        %3140 = vmatpush1.bf16.msra.mxu0 %v2442
        %3141 = vmatprep.subr.bf16.mxu0 %v2483
        %3142 = vmatpush1.bf16.msra.mxu0 %v2482
        %3143 = vmatprep.subr.bf16.mxu0 %v2523
        %3144 = vmatpush1.bf16.msra.mxu0 %v2522
        %3145 = vmatprep.mubr.bf16.mxu0 %v2553
        %3146 = vmatmul.mubr.bf16.gmra.mrb[0].mxu0 %v2552
        %v3147 = vpop.f32.mrb[0].mxu0
        %v3148 = vadd.f32 %v3105, %v3147
        %v3149 = vpop.f32.mrb[0].mxu0
        %v3150 = vadd.f32 %v3107, %v3149
        %v3151 = vpop.f32.mrb[0].mxu0
        %v3152 = vadd.f32 %v3109, %v3151
        %v3153 = vpop.f32.mrb[0].mxu0
        %v3154 = vadd.f32 %v3111, %v3153
        %3155 = vdwg.mxu0
        %3156 = vmatprep.subr.bf16.mxu0 %v1285
        %3157 = vmatpush1.bf16.msra.mxu0 %v1284
        %3158 = vmatprep.subr.bf16.mxu0 %v1325
        %3159 = vmatpush1.bf16.msra.mxu0 %v1324
        %3160 = vmatprep.subr.bf16.mxu0 %v1365
        %3161 = vmatpush1.bf16.msra.mxu0 %v1364
        %3162 = vmatprep.subr.bf16.mxu0 %v1405
        %3163 = vmatpush1.bf16.msra.mxu0 %v1404
        %3164 = vmatprep.subr.bf16.mxu0 %v1445
        %3165 = vmatpush1.bf16.msra.mxu0 %v1444
        %3166 = vmatprep.subr.bf16.mxu0 %v1485
        %3167 = vmatpush1.bf16.msra.mxu0 %v1484
        %3168 = vmatprep.subr.bf16.mxu0 %v1525
        %3169 = vmatpush1.bf16.msra.mxu0 %v1524
        %3170 = vmatprep.subr.bf16.mxu0 %v1565
        %3171 = vmatpush1.bf16.msra.mxu0 %v1564
        %3172 = vmatprep.subr.bf16.mxu0 %v1605
        %3173 = vmatpush1.bf16.msra.mxu0 %v1604
        %3174 = vmatprep.subr.bf16.mxu0 %v1645
        %3175 = vmatpush1.bf16.msra.mxu0 %v1644
        %3176 = vmatprep.subr.bf16.mxu0 %v1685
        %3177 = vmatpush1.bf16.msra.mxu0 %v1684
        %3178 = vmatprep.subr.bf16.mxu0 %v1725
        %3179 = vmatpush1.bf16.msra.mxu0 %v1724
        %3180 = vmatprep.subr.bf16.mxu0 %v1765
        %3181 = vmatpush1.bf16.msra.mxu0 %v1764
        %3182 = vmatprep.subr.bf16.mxu0 %v1805
        %3183 = vmatpush1.bf16.msra.mxu0 %v1804
        %3184 = vmatprep.subr.bf16.mxu0 %v1845
        %3185 = vmatpush1.bf16.msra.mxu0 %v1844
        %3186 = vmatprep.subr.bf16.mxu0 %v1885
        %3187 = vmatpush1.bf16.msra.mxu0 %v1884
        %3188 = vmatprep.mubr.bf16.mxu0 %v2551
        %3189 = vmatmul.mubr.bf16.gmra.mrb[0].mxu0 %v2550
        %v3190 = vpop.f32.mrb[0].mxu0
        %v3191 = vadd.f32 0.0, %v3190
        %v3192 = vpop.f32.mrb[0].mxu0
        %v3193 = vadd.f32 0.0, %v3192
        %v3194 = vpop.f32.mrb[0].mxu0
        %v3195 = vadd.f32 0.0, %v3194
        %v3196 = vpop.f32.mrb[0].mxu0
        %v3197 = vadd.f32 0.0, %v3196
        %3198 = vdwg.mxu0
        %3199 = vmatprep.subr.bf16.mxu0 %v1925
        %3200 = vmatpush1.bf16.msra.mxu0 %v1924
        %3201 = vmatprep.subr.bf16.mxu0 %v1965
        %3202 = vmatpush1.bf16.msra.mxu0 %v1964
        %3203 = vmatprep.subr.bf16.mxu0 %v2005
        %3204 = vmatpush1.bf16.msra.mxu0 %v2004
        %3205 = vmatprep.subr.bf16.mxu0 %v2045
        %3206 = vmatpush1.bf16.msra.mxu0 %v2044
        %3207 = vmatprep.subr.bf16.mxu0 %v2085
        %3208 = vmatpush1.bf16.msra.mxu0 %v2084
        %3209 = vmatprep.subr.bf16.mxu0 %v2125
        %3210 = vmatpush1.bf16.msra.mxu0 %v2124
        %3211 = vmatprep.subr.bf16.mxu0 %v2165
        %3212 = vmatpush1.bf16.msra.mxu0 %v2164
        %3213 = vmatprep.subr.bf16.mxu0 %v2205
        %3214 = vmatpush1.bf16.msra.mxu0 %v2204
        %3215 = vmatprep.subr.bf16.mxu0 %v2245
        %3216 = vmatpush1.bf16.msra.mxu0 %v2244
        %3217 = vmatprep.subr.bf16.mxu0 %v2285
        %3218 = vmatpush1.bf16.msra.mxu0 %v2284
        %3219 = vmatprep.subr.bf16.mxu0 %v2325
        %3220 = vmatpush1.bf16.msra.mxu0 %v2324
        %3221 = vmatprep.subr.bf16.mxu0 %v2365
        %3222 = vmatpush1.bf16.msra.mxu0 %v2364
        %3223 = vmatprep.subr.bf16.mxu0 %v2405
        %3224 = vmatpush1.bf16.msra.mxu0 %v2404
        %3225 = vmatprep.subr.bf16.mxu0 %v2445
        %3226 = vmatpush1.bf16.msra.mxu0 %v2444
        %3227 = vmatprep.subr.bf16.mxu0 %v2485
        %3228 = vmatpush1.bf16.msra.mxu0 %v2484
        %3229 = vmatprep.subr.bf16.mxu0 %v2525
        %3230 = vmatpush1.bf16.msra.mxu0 %v2524
        %3231 = vmatprep.mubr.bf16.mxu0 %v2553
        %3232 = vmatmul.mubr.bf16.gmra.mrb[0].mxu0 %v2552
        %v3233 = vpop.f32.mrb[0].mxu0
        %v3234 = vadd.f32 %v3191, %v3233
        %v3235 = vpop.f32.mrb[0].mxu0
        %v3236 = vadd.f32 %v3193, %v3235
        %v3237 = vpop.f32.mrb[0].mxu0
        %v3238 = vadd.f32 %v3195, %v3237
        %v3239 = vpop.f32.mrb[0].mxu0
        %v3240 = vadd.f32 %v3197, %v3239
        %3241 = vdwg.mxu0
        %3242 = vmatprep.subr.bf16.mxu0 %v1287
        %3243 = vmatpush1.bf16.msra.mxu0 %v1286
        %3244 = vmatprep.subr.bf16.mxu0 %v1327
        %3245 = vmatpush1.bf16.msra.mxu0 %v1326
        %3246 = vmatprep.subr.bf16.mxu0 %v1367
        %3247 = vmatpush1.bf16.msra.mxu0 %v1366
        %3248 = vmatprep.subr.bf16.mxu0 %v1407
        %3249 = vmatpush1.bf16.msra.mxu0 %v1406
        %3250 = vmatprep.subr.bf16.mxu0 %v1447
        %3251 = vmatpush1.bf16.msra.mxu0 %v1446
        %3252 = vmatprep.subr.bf16.mxu0 %v1487
        %3253 = vmatpush1.bf16.msra.mxu0 %v1486
        %3254 = vmatprep.subr.bf16.mxu0 %v1527
        %3255 = vmatpush1.bf16.msra.mxu0 %v1526
        %3256 = vmatprep.subr.bf16.mxu0 %v1567
        %3257 = vmatpush1.bf16.msra.mxu0 %v1566
        %3258 = vmatprep.subr.bf16.mxu0 %v1607
        %3259 = vmatpush1.bf16.msra.mxu0 %v1606
        %3260 = vmatprep.subr.bf16.mxu0 %v1647
        %3261 = vmatpush1.bf16.msra.mxu0 %v1646
        %3262 = vmatprep.subr.bf16.mxu0 %v1687
        %3263 = vmatpush1.bf16.msra.mxu0 %v1686
        %3264 = vmatprep.subr.bf16.mxu0 %v1727
        %3265 = vmatpush1.bf16.msra.mxu0 %v1726
        %3266 = vmatprep.subr.bf16.mxu0 %v1767
        %3267 = vmatpush1.bf16.msra.mxu0 %v1766
        %3268 = vmatprep.subr.bf16.mxu0 %v1807
        %3269 = vmatpush1.bf16.msra.mxu0 %v1806
        %3270 = vmatprep.subr.bf16.mxu0 %v1847
        %3271 = vmatpush1.bf16.msra.mxu0 %v1846
        %3272 = vmatprep.subr.bf16.mxu0 %v1887
        %3273 = vmatpush1.bf16.msra.mxu0 %v1886
        %3274 = vmatprep.mubr.bf16.mxu0 %v2551
        %3275 = vmatmul.mubr.bf16.gmra.mrb[0].mxu0 %v2550
        %v3276 = vpop.f32.mrb[0].mxu0
        %v3277 = vadd.f32 0.0, %v3276
        %v3278 = vpop.f32.mrb[0].mxu0
        %v3279 = vadd.f32 0.0, %v3278
        %v3280 = vpop.f32.mrb[0].mxu0
        %v3281 = vadd.f32 0.0, %v3280
        %v3282 = vpop.f32.mrb[0].mxu0
        %v3283 = vadd.f32 0.0, %v3282
        %3284 = vdwg.mxu0
        %3285 = vmatprep.subr.bf16.mxu0 %v1927
        %3286 = vmatpush1.bf16.msra.mxu0 %v1926
        %3287 = vmatprep.subr.bf16.mxu0 %v1967
        %3288 = vmatpush1.bf16.msra.mxu0 %v1966
        %3289 = vmatprep.subr.bf16.mxu0 %v2007
        %3290 = vmatpush1.bf16.msra.mxu0 %v2006
        %3291 = vmatprep.subr.bf16.mxu0 %v2047
        %3292 = vmatpush1.bf16.msra.mxu0 %v2046
        %3293 = vmatprep.subr.bf16.mxu0 %v2087
        %3294 = vmatpush1.bf16.msra.mxu0 %v2086
        %3295 = vmatprep.subr.bf16.mxu0 %v2127
        %3296 = vmatpush1.bf16.msra.mxu0 %v2126
        %3297 = vmatprep.subr.bf16.mxu0 %v2167
        %3298 = vmatpush1.bf16.msra.mxu0 %v2166
        %3299 = vmatprep.subr.bf16.mxu0 %v2207
        %3300 = vmatpush1.bf16.msra.mxu0 %v2206
        %3301 = vmatprep.subr.bf16.mxu0 %v2247
        %3302 = vmatpush1.bf16.msra.mxu0 %v2246
        %3303 = vmatprep.subr.bf16.mxu0 %v2287
        %3304 = vmatpush1.bf16.msra.mxu0 %v2286
        %3305 = vmatprep.subr.bf16.mxu0 %v2327
        %3306 = vmatpush1.bf16.msra.mxu0 %v2326
        %3307 = vmatprep.subr.bf16.mxu0 %v2367
        %3308 = vmatpush1.bf16.msra.mxu0 %v2366
        %3309 = vmatprep.subr.bf16.mxu0 %v2407
        %3310 = vmatpush1.bf16.msra.mxu0 %v2406
        %3311 = vmatprep.subr.bf16.mxu0 %v2447
        %3312 = vmatpush1.bf16.msra.mxu0 %v2446
        %3313 = vmatprep.subr.bf16.mxu0 %v2487
        %3314 = vmatpush1.bf16.msra.mxu0 %v2486
        %3315 = vmatprep.subr.bf16.mxu0 %v2527
        %3316 = vmatpush1.bf16.msra.mxu0 %v2526
        %3317 = vmatprep.mubr.bf16.mxu0 %v2553
        %3318 = vmatmul.mubr.bf16.gmra.mrb[0].mxu0 %v2552
        %v3319 = vpop.f32.mrb[0].mxu0
        %v3320 = vadd.f32 %v3277, %v3319
        %v3321 = vpop.f32.mrb[0].mxu0
        %v3322 = vadd.f32 %v3279, %v3321
        %v3323 = vpop.f32.mrb[0].mxu0
        %v3324 = vadd.f32 %v3281, %v3323
        %v3325 = vpop.f32.mrb[0].mxu0
        %v3326 = vadd.f32 %v3283, %v3325
        %3327 = vdwg.mxu0
        %3328 = vmatprep.subr.bf16.mxu0 %v1289
        %3329 = vmatpush1.bf16.msra.mxu0 %v1288
        %3330 = vmatprep.subr.bf16.mxu0 %v1329
        %3331 = vmatpush1.bf16.msra.mxu0 %v1328
        %3332 = vmatprep.subr.bf16.mxu0 %v1369
        %3333 = vmatpush1.bf16.msra.mxu0 %v1368
        %3334 = vmatprep.subr.bf16.mxu0 %v1409
        %3335 = vmatpush1.bf16.msra.mxu0 %v1408
        %3336 = vmatprep.subr.bf16.mxu0 %v1449
        %3337 = vmatpush1.bf16.msra.mxu0 %v1448
        %3338 = vmatprep.subr.bf16.mxu0 %v1489
        %3339 = vmatpush1.bf16.msra.mxu0 %v1488
        %3340 = vmatprep.subr.bf16.mxu0 %v1529
        %3341 = vmatpush1.bf16.msra.mxu0 %v1528
        %3342 = vmatprep.subr.bf16.mxu0 %v1569
        %3343 = vmatpush1.bf16.msra.mxu0 %v1568
        %3344 = vmatprep.subr.bf16.mxu0 %v1609
        %3345 = vmatpush1.bf16.msra.mxu0 %v1608
        %3346 = vmatprep.subr.bf16.mxu0 %v1649
        %3347 = vmatpush1.bf16.msra.mxu0 %v1648
        %3348 = vmatprep.subr.bf16.mxu0 %v1689
        %3349 = vmatpush1.bf16.msra.mxu0 %v1688
        %3350 = vmatprep.subr.bf16.mxu0 %v1729
        %3351 = vmatpush1.bf16.msra.mxu0 %v1728
        %3352 = vmatprep.subr.bf16.mxu0 %v1769
        %3353 = vmatpush1.bf16.msra.mxu0 %v1768
        %3354 = vmatprep.subr.bf16.mxu0 %v1809
        %3355 = vmatpush1.bf16.msra.mxu0 %v1808
        %3356 = vmatprep.subr.bf16.mxu0 %v1849
        %3357 = vmatpush1.bf16.msra.mxu0 %v1848
        %3358 = vmatprep.subr.bf16.mxu0 %v1889
        %3359 = vmatpush1.bf16.msra.mxu0 %v1888
        %3360 = vmatprep.mubr.bf16.mxu0 %v2551
        %3361 = vmatmul.mubr.bf16.gmra.mrb[0].mxu0 %v2550
        %v3362 = vpop.f32.mrb[0].mxu0
        %v3363 = vadd.f32 0.0, %v3362
        %v3364 = vpop.f32.mrb[0].mxu0
        %v3365 = vadd.f32 0.0, %v3364
        %v3366 = vpop.f32.mrb[0].mxu0
        %v3367 = vadd.f32 0.0, %v3366
        %v3368 = vpop.f32.mrb[0].mxu0
        %v3369 = vadd.f32 0.0, %v3368
        %3370 = vdwg.mxu0
        %3371 = vmatprep.subr.bf16.mxu0 %v1929
        %3372 = vmatpush1.bf16.msra.mxu0 %v1928
        %3373 = vmatprep.subr.bf16.mxu0 %v1969
        %3374 = vmatpush1.bf16.msra.mxu0 %v1968
        %3375 = vmatprep.subr.bf16.mxu0 %v2009
        %3376 = vmatpush1.bf16.msra.mxu0 %v2008
        %3377 = vmatprep.subr.bf16.mxu0 %v2049
        %3378 = vmatpush1.bf16.msra.mxu0 %v2048
        %3379 = vmatprep.subr.bf16.mxu0 %v2089
        %3380 = vmatpush1.bf16.msra.mxu0 %v2088
        %3381 = vmatprep.subr.bf16.mxu0 %v2129
        %3382 = vmatpush1.bf16.msra.mxu0 %v2128
        %3383 = vmatprep.subr.bf16.mxu0 %v2169
        %3384 = vmatpush1.bf16.msra.mxu0 %v2168
        %3385 = vmatprep.subr.bf16.mxu0 %v2209
        %3386 = vmatpush1.bf16.msra.mxu0 %v2208
        %3387 = vmatprep.subr.bf16.mxu0 %v2249
        %3388 = vmatpush1.bf16.msra.mxu0 %v2248
        %3389 = vmatprep.subr.bf16.mxu0 %v2289
        %3390 = vmatpush1.bf16.msra.mxu0 %v2288
        %3391 = vmatprep.subr.bf16.mxu0 %v2329
        %3392 = vmatpush1.bf16.msra.mxu0 %v2328
        %3393 = vmatprep.subr.bf16.mxu0 %v2369
        %3394 = vmatpush1.bf16.msra.mxu0 %v2368
        %3395 = vmatprep.subr.bf16.mxu0 %v2409
        %3396 = vmatpush1.bf16.msra.mxu0 %v2408
        %3397 = vmatprep.subr.bf16.mxu0 %v2449
        %3398 = vmatpush1.bf16.msra.mxu0 %v2448
        %3399 = vmatprep.subr.bf16.mxu0 %v2489
        %3400 = vmatpush1.bf16.msra.mxu0 %v2488
        %3401 = vmatprep.subr.bf16.mxu0 %v2529
        %3402 = vmatpush1.bf16.msra.mxu0 %v2528
        %3403 = vmatprep.mubr.bf16.mxu0 %v2553
        %3404 = vmatmul.mubr.bf16.gmra.mrb[0].mxu0 %v2552
        %v3405 = vpop.f32.mrb[0].mxu0
        %v3406 = vadd.f32 %v3363, %v3405
        %v3407 = vpop.f32.mrb[0].mxu0
        %v3408 = vadd.f32 %v3365, %v3407
        %v3409 = vpop.f32.mrb[0].mxu0
        %v3410 = vadd.f32 %v3367, %v3409
        %v3411 = vpop.f32.mrb[0].mxu0
        %v3412 = vadd.f32 %v3369, %v3411
        %3413 = vdwg.mxu0
        %3414 = vmatprep.subr.bf16.mxu0 %v1291
        %3415 = vmatpush1.bf16.msra.mxu0 %v1290
        %3416 = vmatprep.subr.bf16.mxu0 %v1331
        %3417 = vmatpush1.bf16.msra.mxu0 %v1330
        %3418 = vmatprep.subr.bf16.mxu0 %v1371
        %3419 = vmatpush1.bf16.msra.mxu0 %v1370
        %3420 = vmatprep.subr.bf16.mxu0 %v1411
        %3421 = vmatpush1.bf16.msra.mxu0 %v1410
        %3422 = vmatprep.subr.bf16.mxu0 %v1451
        %3423 = vmatpush1.bf16.msra.mxu0 %v1450
        %3424 = vmatprep.subr.bf16.mxu0 %v1491
        %3425 = vmatpush1.bf16.msra.mxu0 %v1490
        %3426 = vmatprep.subr.bf16.mxu0 %v1531
        %3427 = vmatpush1.bf16.msra.mxu0 %v1530
        %3428 = vmatprep.subr.bf16.mxu0 %v1571
        %3429 = vmatpush1.bf16.msra.mxu0 %v1570
        %3430 = vmatprep.subr.bf16.mxu0 %v1611
        %3431 = vmatpush1.bf16.msra.mxu0 %v1610
        %3432 = vmatprep.subr.bf16.mxu0 %v1651
        %3433 = vmatpush1.bf16.msra.mxu0 %v1650
        %3434 = vmatprep.subr.bf16.mxu0 %v1691
        %3435 = vmatpush1.bf16.msra.mxu0 %v1690
        %3436 = vmatprep.subr.bf16.mxu0 %v1731
        %3437 = vmatpush1.bf16.msra.mxu0 %v1730
        %3438 = vmatprep.subr.bf16.mxu0 %v1771
        %3439 = vmatpush1.bf16.msra.mxu0 %v1770
        %3440 = vmatprep.subr.bf16.mxu0 %v1811
        %3441 = vmatpush1.bf16.msra.mxu0 %v1810
        %3442 = vmatprep.subr.bf16.mxu0 %v1851
        %3443 = vmatpush1.bf16.msra.mxu0 %v1850
        %3444 = vmatprep.subr.bf16.mxu0 %v1891
        %3445 = vmatpush1.bf16.msra.mxu0 %v1890
        %3446 = vmatprep.mubr.bf16.mxu0 %v2551
        %3447 = vmatmul.mubr.bf16.gmra.mrb[0].mxu0 %v2550
        %v3448 = vpop.f32.mrb[0].mxu0
        %v3449 = vadd.f32 0.0, %v3448
        %v3450 = vpop.f32.mrb[0].mxu0
        %v3451 = vadd.f32 0.0, %v3450
        %v3452 = vpop.f32.mrb[0].mxu0
        %v3453 = vadd.f32 0.0, %v3452
        %v3454 = vpop.f32.mrb[0].mxu0
        %v3455 = vadd.f32 0.0, %v3454
        %3456 = vdwg.mxu0
        %3457 = vmatprep.subr.bf16.mxu0 %v1931
        %3458 = vmatpush1.bf16.msra.mxu0 %v1930
        %3459 = vmatprep.subr.bf16.mxu0 %v1971
        %3460 = vmatpush1.bf16.msra.mxu0 %v1970
        %3461 = vmatprep.subr.bf16.mxu0 %v2011
        %3462 = vmatpush1.bf16.msra.mxu0 %v2010
        %3463 = vmatprep.subr.bf16.mxu0 %v2051
        %3464 = vmatpush1.bf16.msra.mxu0 %v2050
        %3465 = vmatprep.subr.bf16.mxu0 %v2091
        %3466 = vmatpush1.bf16.msra.mxu0 %v2090
        %3467 = vmatprep.subr.bf16.mxu0 %v2131
        %3468 = vmatpush1.bf16.msra.mxu0 %v2130
        %3469 = vmatprep.subr.bf16.mxu0 %v2171
        %3470 = vmatpush1.bf16.msra.mxu0 %v2170
        %3471 = vmatprep.subr.bf16.mxu0 %v2211
        %3472 = vmatpush1.bf16.msra.mxu0 %v2210
        %3473 = vmatprep.subr.bf16.mxu0 %v2251
        %3474 = vmatpush1.bf16.msra.mxu0 %v2250
        %3475 = vmatprep.subr.bf16.mxu0 %v2291
        %3476 = vmatpush1.bf16.msra.mxu0 %v2290
        %3477 = vmatprep.subr.bf16.mxu0 %v2331
        %3478 = vmatpush1.bf16.msra.mxu0 %v2330
        %3479 = vmatprep.subr.bf16.mxu0 %v2371
        %3480 = vmatpush1.bf16.msra.mxu0 %v2370
        %3481 = vmatprep.subr.bf16.mxu0 %v2411
        %3482 = vmatpush1.bf16.msra.mxu0 %v2410
        %3483 = vmatprep.subr.bf16.mxu0 %v2451
        %3484 = vmatpush1.bf16.msra.mxu0 %v2450
        %3485 = vmatprep.subr.bf16.mxu0 %v2491
        %3486 = vmatpush1.bf16.msra.mxu0 %v2490
        %3487 = vmatprep.subr.bf16.mxu0 %v2531
        %3488 = vmatpush1.bf16.msra.mxu0 %v2530
        %3489 = vmatprep.mubr.bf16.mxu0 %v2553
        %3490 = vmatmul.mubr.bf16.gmra.mrb[0].mxu0 %v2552
        %v3491 = vpop.f32.mrb[0].mxu0
        %v3492 = vadd.f32 %v3449, %v3491
        %v3493 = vpop.f32.mrb[0].mxu0
        %v3494 = vadd.f32 %v3451, %v3493
        %v3495 = vpop.f32.mrb[0].mxu0
        %v3496 = vadd.f32 %v3453, %v3495
        %v3497 = vpop.f32.mrb[0].mxu0
        %v3498 = vadd.f32 %v3455, %v3497
        %3499 = vdwg.mxu0
        %3500 = vmatprep.subr.bf16.mxu0 %v1293
        %3501 = vmatpush1.bf16.msra.mxu0 %v1292
        %3502 = vmatprep.subr.bf16.mxu0 %v1333
        %3503 = vmatpush1.bf16.msra.mxu0 %v1332
        %3504 = vmatprep.subr.bf16.mxu0 %v1373
        %3505 = vmatpush1.bf16.msra.mxu0 %v1372
        %3506 = vmatprep.subr.bf16.mxu0 %v1413
        %3507 = vmatpush1.bf16.msra.mxu0 %v1412
        %3508 = vmatprep.subr.bf16.mxu0 %v1453
        %3509 = vmatpush1.bf16.msra.mxu0 %v1452
        %3510 = vmatprep.subr.bf16.mxu0 %v1493
        %3511 = vmatpush1.bf16.msra.mxu0 %v1492
        %3512 = vmatprep.subr.bf16.mxu0 %v1533
        %3513 = vmatpush1.bf16.msra.mxu0 %v1532
        %3514 = vmatprep.subr.bf16.mxu0 %v1573
        %3515 = vmatpush1.bf16.msra.mxu0 %v1572
        %3516 = vmatprep.subr.bf16.mxu0 %v1613
        %3517 = vmatpush1.bf16.msra.mxu0 %v1612
        %3518 = vmatprep.subr.bf16.mxu0 %v1653
        %3519 = vmatpush1.bf16.msra.mxu0 %v1652
        %3520 = vmatprep.subr.bf16.mxu0 %v1693
        %3521 = vmatpush1.bf16.msra.mxu0 %v1692
        %3522 = vmatprep.subr.bf16.mxu0 %v1733
        %3523 = vmatpush1.bf16.msra.mxu0 %v1732
        %3524 = vmatprep.subr.bf16.mxu0 %v1773
        %3525 = vmatpush1.bf16.msra.mxu0 %v1772
        %3526 = vmatprep.subr.bf16.mxu0 %v1813
        %3527 = vmatpush1.bf16.msra.mxu0 %v1812
        %3528 = vmatprep.subr.bf16.mxu0 %v1853
        %3529 = vmatpush1.bf16.msra.mxu0 %v1852
        %3530 = vmatprep.subr.bf16.mxu0 %v1893
        %3531 = vmatpush1.bf16.msra.mxu0 %v1892
        %3532 = vmatprep.mubr.bf16.mxu0 %v2551
        %3533 = vmatmul.mubr.bf16.gmra.mrb[0].mxu0 %v2550
        %v3534 = vpop.f32.mrb[0].mxu0
        %v3535 = vadd.f32 0.0, %v3534
        %v3536 = vpop.f32.mrb[0].mxu0
        %v3537 = vadd.f32 0.0, %v3536
        %v3538 = vpop.f32.mrb[0].mxu0
        %v3539 = vadd.f32 0.0, %v3538
        %v3540 = vpop.f32.mrb[0].mxu0
        %v3541 = vadd.f32 0.0, %v3540
        %3542 = vdwg.mxu0
        %3543 = vmatprep.subr.bf16.mxu0 %v1933
        %3544 = vmatpush1.bf16.msra.mxu0 %v1932
        %3545 = vmatprep.subr.bf16.mxu0 %v1973
        %3546 = vmatpush1.bf16.msra.mxu0 %v1972
        %3547 = vmatprep.subr.bf16.mxu0 %v2013
        %3548 = vmatpush1.bf16.msra.mxu0 %v2012
        %3549 = vmatprep.subr.bf16.mxu0 %v2053
        %3550 = vmatpush1.bf16.msra.mxu0 %v2052
        %3551 = vmatprep.subr.bf16.mxu0 %v2093
        %3552 = vmatpush1.bf16.msra.mxu0 %v2092
        %3553 = vmatprep.subr.bf16.mxu0 %v2133
        %3554 = vmatpush1.bf16.msra.mxu0 %v2132
        %3555 = vmatprep.subr.bf16.mxu0 %v2173
        %3556 = vmatpush1.bf16.msra.mxu0 %v2172
        %3557 = vmatprep.subr.bf16.mxu0 %v2213
        %3558 = vmatpush1.bf16.msra.mxu0 %v2212
        %3559 = vmatprep.subr.bf16.mxu0 %v2253
        %3560 = vmatpush1.bf16.msra.mxu0 %v2252
        %3561 = vmatprep.subr.bf16.mxu0 %v2293
        %3562 = vmatpush1.bf16.msra.mxu0 %v2292
        %3563 = vmatprep.subr.bf16.mxu0 %v2333
        %3564 = vmatpush1.bf16.msra.mxu0 %v2332
        %3565 = vmatprep.subr.bf16.mxu0 %v2373
        %3566 = vmatpush1.bf16.msra.mxu0 %v2372
        %3567 = vmatprep.subr.bf16.mxu0 %v2413
        %3568 = vmatpush1.bf16.msra.mxu0 %v2412
        %3569 = vmatprep.subr.bf16.mxu0 %v2453
        %3570 = vmatpush1.bf16.msra.mxu0 %v2452
        %3571 = vmatprep.subr.bf16.mxu0 %v2493
        %3572 = vmatpush1.bf16.msra.mxu0 %v2492
        %3573 = vmatprep.subr.bf16.mxu0 %v2533
        %3574 = vmatpush1.bf16.msra.mxu0 %v2532
        %3575 = vmatprep.mubr.bf16.mxu0 %v2553
        %3576 = vmatmul.mubr.bf16.gmra.mrb[0].mxu0 %v2552
        %v3577 = vpop.f32.mrb[0].mxu0
        %v3578 = vadd.f32 %v3535, %v3577
        %v3579 = vpop.f32.mrb[0].mxu0
        %v3580 = vadd.f32 %v3537, %v3579
        %v3581 = vpop.f32.mrb[0].mxu0
        %v3582 = vadd.f32 %v3539, %v3581
        %v3583 = vpop.f32.mrb[0].mxu0
        %v3584 = vadd.f32 %v3541, %v3583
        %3585 = vdwg.mxu0
        %3586 = vmatprep.subr.bf16.mxu0 %v1295
        %3587 = vmatpush1.bf16.msra.mxu0 %v1294
        %3588 = vmatprep.subr.bf16.mxu0 %v1335
        %3589 = vmatpush1.bf16.msra.mxu0 %v1334
        %3590 = vmatprep.subr.bf16.mxu0 %v1375
        %3591 = vmatpush1.bf16.msra.mxu0 %v1374
        %3592 = vmatprep.subr.bf16.mxu0 %v1415
        %3593 = vmatpush1.bf16.msra.mxu0 %v1414
        %3594 = vmatprep.subr.bf16.mxu0 %v1455
        %3595 = vmatpush1.bf16.msra.mxu0 %v1454
        %3596 = vmatprep.subr.bf16.mxu0 %v1495
        %3597 = vmatpush1.bf16.msra.mxu0 %v1494
        %3598 = vmatprep.subr.bf16.mxu0 %v1535
        %3599 = vmatpush1.bf16.msra.mxu0 %v1534
        %3600 = vmatprep.subr.bf16.mxu0 %v1575
        %3601 = vmatpush1.bf16.msra.mxu0 %v1574
        %3602 = vmatprep.subr.bf16.mxu0 %v1615
        %3603 = vmatpush1.bf16.msra.mxu0 %v1614
        %3604 = vmatprep.subr.bf16.mxu0 %v1655
        %3605 = vmatpush1.bf16.msra.mxu0 %v1654
        %3606 = vmatprep.subr.bf16.mxu0 %v1695
        %3607 = vmatpush1.bf16.msra.mxu0 %v1694
        %3608 = vmatprep.subr.bf16.mxu0 %v1735
        %3609 = vmatpush1.bf16.msra.mxu0 %v1734
        %3610 = vmatprep.subr.bf16.mxu0 %v1775
        %3611 = vmatpush1.bf16.msra.mxu0 %v1774
        %3612 = vmatprep.subr.bf16.mxu0 %v1815
        %3613 = vmatpush1.bf16.msra.mxu0 %v1814
        %3614 = vmatprep.subr.bf16.mxu0 %v1855
        %3615 = vmatpush1.bf16.msra.mxu0 %v1854
        %3616 = vmatprep.subr.bf16.mxu0 %v1895
        %3617 = vmatpush1.bf16.msra.mxu0 %v1894
        %3618 = vmatprep.mubr.bf16.mxu0 %v2551
        %3619 = vmatmul.mubr.bf16.gmra.mrb[0].mxu0 %v2550
        %v3620 = vpop.f32.mrb[0].mxu0
        %v3621 = vadd.f32 0.0, %v3620
        %v3622 = vpop.f32.mrb[0].mxu0
        %v3623 = vadd.f32 0.0, %v3622
        %v3624 = vpop.f32.mrb[0].mxu0
        %v3625 = vadd.f32 0.0, %v3624
        %v3626 = vpop.f32.mrb[0].mxu0
        %v3627 = vadd.f32 0.0, %v3626
        %3628 = vdwg.mxu0
        %3629 = vmatprep.subr.bf16.mxu0 %v1935
        %3630 = vmatpush1.bf16.msra.mxu0 %v1934
        %3631 = vmatprep.subr.bf16.mxu0 %v1975
        %3632 = vmatpush1.bf16.msra.mxu0 %v1974
        %3633 = vmatprep.subr.bf16.mxu0 %v2015
        %3634 = vmatpush1.bf16.msra.mxu0 %v2014
        %3635 = vmatprep.subr.bf16.mxu0 %v2055
        %3636 = vmatpush1.bf16.msra.mxu0 %v2054
        %3637 = vmatprep.subr.bf16.mxu0 %v2095
        %3638 = vmatpush1.bf16.msra.mxu0 %v2094
        %3639 = vmatprep.subr.bf16.mxu0 %v2135
        %3640 = vmatpush1.bf16.msra.mxu0 %v2134
        %3641 = vmatprep.subr.bf16.mxu0 %v2175
        %3642 = vmatpush1.bf16.msra.mxu0 %v2174
        %3643 = vmatprep.subr.bf16.mxu0 %v2215
        %3644 = vmatpush1.bf16.msra.mxu0 %v2214
        %3645 = vmatprep.subr.bf16.mxu0 %v2255
        %3646 = vmatpush1.bf16.msra.mxu0 %v2254
        %3647 = vmatprep.subr.bf16.mxu0 %v2295
        %3648 = vmatpush1.bf16.msra.mxu0 %v2294
        %3649 = vmatprep.subr.bf16.mxu0 %v2335
        %3650 = vmatpush1.bf16.msra.mxu0 %v2334
        %3651 = vmatprep.subr.bf16.mxu0 %v2375
        %3652 = vmatpush1.bf16.msra.mxu0 %v2374
        %3653 = vmatprep.subr.bf16.mxu0 %v2415
        %3654 = vmatpush1.bf16.msra.mxu0 %v2414
        %3655 = vmatprep.subr.bf16.mxu0 %v2455
        %3656 = vmatpush1.bf16.msra.mxu0 %v2454
        %3657 = vmatprep.subr.bf16.mxu0 %v2495
        %3658 = vmatpush1.bf16.msra.mxu0 %v2494
        %3659 = vmatprep.subr.bf16.mxu0 %v2535
        %3660 = vmatpush1.bf16.msra.mxu0 %v2534
        %3661 = vmatprep.mubr.bf16.mxu0 %v2553
        %3662 = vmatmul.mubr.bf16.gmra.mrb[0].mxu0 %v2552
        %v3663 = vpop.f32.mrb[0].mxu0
        %v3664 = vadd.f32 %v3621, %v3663
        %v3665 = vpop.f32.mrb[0].mxu0
        %v3666 = vadd.f32 %v3623, %v3665
        %v3667 = vpop.f32.mrb[0].mxu0
        %v3668 = vadd.f32 %v3625, %v3667
        %v3669 = vpop.f32.mrb[0].mxu0
        %v3670 = vadd.f32 %v3627, %v3669
        %3671 = vdwg.mxu0
        %3672 = vmatprep.subr.bf16.mxu0 %v1297
        %3673 = vmatpush1.bf16.msra.mxu0 %v1296
        %3674 = vmatprep.subr.bf16.mxu0 %v1337
        %3675 = vmatpush1.bf16.msra.mxu0 %v1336
        %3676 = vmatprep.subr.bf16.mxu0 %v1377
        %3677 = vmatpush1.bf16.msra.mxu0 %v1376
        %3678 = vmatprep.subr.bf16.mxu0 %v1417
        %3679 = vmatpush1.bf16.msra.mxu0 %v1416
        %3680 = vmatprep.subr.bf16.mxu0 %v1457
        %3681 = vmatpush1.bf16.msra.mxu0 %v1456
        %3682 = vmatprep.subr.bf16.mxu0 %v1497
        %3683 = vmatpush1.bf16.msra.mxu0 %v1496
        %3684 = vmatprep.subr.bf16.mxu0 %v1537
        %3685 = vmatpush1.bf16.msra.mxu0 %v1536
        %3686 = vmatprep.subr.bf16.mxu0 %v1577
        %3687 = vmatpush1.bf16.msra.mxu0 %v1576
        %3688 = vmatprep.subr.bf16.mxu0 %v1617
        %3689 = vmatpush1.bf16.msra.mxu0 %v1616
        %3690 = vmatprep.subr.bf16.mxu0 %v1657
        %3691 = vmatpush1.bf16.msra.mxu0 %v1656
        %3692 = vmatprep.subr.bf16.mxu0 %v1697
        %3693 = vmatpush1.bf16.msra.mxu0 %v1696
        %3694 = vmatprep.subr.bf16.mxu0 %v1737
        %3695 = vmatpush1.bf16.msra.mxu0 %v1736
        %3696 = vmatprep.subr.bf16.mxu0 %v1777
        %3697 = vmatpush1.bf16.msra.mxu0 %v1776
        %3698 = vmatprep.subr.bf16.mxu0 %v1817
        %3699 = vmatpush1.bf16.msra.mxu0 %v1816
        %3700 = vmatprep.subr.bf16.mxu0 %v1857
        %3701 = vmatpush1.bf16.msra.mxu0 %v1856
        %3702 = vmatprep.subr.bf16.mxu0 %v1897
        %3703 = vmatpush1.bf16.msra.mxu0 %v1896
        %3704 = vmatprep.mubr.bf16.mxu0 %v2551
        %3705 = vmatmul.mubr.bf16.gmra.mrb[0].mxu0 %v2550
        %v3706 = vpop.f32.mrb[0].mxu0
        %v3707 = vadd.f32 0.0, %v3706
        %v3708 = vpop.f32.mrb[0].mxu0
        %v3709 = vadd.f32 0.0, %v3708
        %v3710 = vpop.f32.mrb[0].mxu0
        %v3711 = vadd.f32 0.0, %v3710
        %v3712 = vpop.f32.mrb[0].mxu0
        %v3713 = vadd.f32 0.0, %v3712
        %3714 = vdwg.mxu0
        %3715 = vmatprep.subr.bf16.mxu0 %v1937
        %3716 = vmatpush1.bf16.msra.mxu0 %v1936
        %3717 = vmatprep.subr.bf16.mxu0 %v1977
        %3718 = vmatpush1.bf16.msra.mxu0 %v1976
        %3719 = vmatprep.subr.bf16.mxu0 %v2017
        %3720 = vmatpush1.bf16.msra.mxu0 %v2016
        %3721 = vmatprep.subr.bf16.mxu0 %v2057
        %3722 = vmatpush1.bf16.msra.mxu0 %v2056
        %3723 = vmatprep.subr.bf16.mxu0 %v2097
        %3724 = vmatpush1.bf16.msra.mxu0 %v2096
        %3725 = vmatprep.subr.bf16.mxu0 %v2137
        %3726 = vmatpush1.bf16.msra.mxu0 %v2136
        %3727 = vmatprep.subr.bf16.mxu0 %v2177
        %3728 = vmatpush1.bf16.msra.mxu0 %v2176
        %3729 = vmatprep.subr.bf16.mxu0 %v2217
        %3730 = vmatpush1.bf16.msra.mxu0 %v2216
        %3731 = vmatprep.subr.bf16.mxu0 %v2257
        %3732 = vmatpush1.bf16.msra.mxu0 %v2256
        %3733 = vmatprep.subr.bf16.mxu0 %v2297
        %3734 = vmatpush1.bf16.msra.mxu0 %v2296
        %3735 = vmatprep.subr.bf16.mxu0 %v2337
        %3736 = vmatpush1.bf16.msra.mxu0 %v2336
        %3737 = vmatprep.subr.bf16.mxu0 %v2377
        %3738 = vmatpush1.bf16.msra.mxu0 %v2376
        %3739 = vmatprep.subr.bf16.mxu0 %v2417
        %3740 = vmatpush1.bf16.msra.mxu0 %v2416
        %3741 = vmatprep.subr.bf16.mxu0 %v2457
        %3742 = vmatpush1.bf16.msra.mxu0 %v2456
        %3743 = vmatprep.subr.bf16.mxu0 %v2497
        %3744 = vmatpush1.bf16.msra.mxu0 %v2496
        %3745 = vmatprep.subr.bf16.mxu0 %v2537
        %3746 = vmatpush1.bf16.msra.mxu0 %v2536
        %3747 = vmatprep.mubr.bf16.mxu0 %v2553
        %3748 = vmatmul.mubr.bf16.gmra.mrb[0].mxu0 %v2552
        %v3749 = vpop.f32.mrb[0].mxu0
        %v3750 = vadd.f32 %v3707, %v3749
        %v3751 = vpop.f32.mrb[0].mxu0
        %v3752 = vadd.f32 %v3709, %v3751
        %v3753 = vpop.f32.mrb[0].mxu0
        %v3754 = vadd.f32 %v3711, %v3753
        %v3755 = vpop.f32.mrb[0].mxu0
        %v3756 = vadd.f32 %v3713, %v3755
        %3757 = vdwg.mxu0
        %3758 = vmatprep.subr.bf16.mxu0 %v1299
        %3759 = vmatpush1.bf16.msra.mxu0 %v1298
        %3760 = vmatprep.subr.bf16.mxu0 %v1339
        %3761 = vmatpush1.bf16.msra.mxu0 %v1338
        %3762 = vmatprep.subr.bf16.mxu0 %v1379
        %3763 = vmatpush1.bf16.msra.mxu0 %v1378
        %3764 = vmatprep.subr.bf16.mxu0 %v1419
        %3765 = vmatpush1.bf16.msra.mxu0 %v1418
        %3766 = vmatprep.subr.bf16.mxu0 %v1459
        %3767 = vmatpush1.bf16.msra.mxu0 %v1458
        %3768 = vmatprep.subr.bf16.mxu0 %v1499
        %3769 = vmatpush1.bf16.msra.mxu0 %v1498
        %3770 = vmatprep.subr.bf16.mxu0 %v1539
        %3771 = vmatpush1.bf16.msra.mxu0 %v1538
        %3772 = vmatprep.subr.bf16.mxu0 %v1579
        %3773 = vmatpush1.bf16.msra.mxu0 %v1578
        %3774 = vmatprep.subr.bf16.mxu0 %v1619
        %3775 = vmatpush1.bf16.msra.mxu0 %v1618
        %3776 = vmatprep.subr.bf16.mxu0 %v1659
        %3777 = vmatpush1.bf16.msra.mxu0 %v1658
        %3778 = vmatprep.subr.bf16.mxu0 %v1699
        %3779 = vmatpush1.bf16.msra.mxu0 %v1698
        %3780 = vmatprep.subr.bf16.mxu0 %v1739
        %3781 = vmatpush1.bf16.msra.mxu0 %v1738
        %3782 = vmatprep.subr.bf16.mxu0 %v1779
        %3783 = vmatpush1.bf16.msra.mxu0 %v1778
        %3784 = vmatprep.subr.bf16.mxu0 %v1819
        %3785 = vmatpush1.bf16.msra.mxu0 %v1818
        %3786 = vmatprep.subr.bf16.mxu0 %v1859
        %3787 = vmatpush1.bf16.msra.mxu0 %v1858
        %3788 = vmatprep.subr.bf16.mxu0 %v1899
        %3789 = vmatpush1.bf16.msra.mxu0 %v1898
        %3790 = vmatprep.mubr.bf16.mxu0 %v2551
        %3791 = vmatmul.mubr.bf16.gmra.mrb[0].mxu0 %v2550
        %v3792 = vpop.f32.mrb[0].mxu0
        %v3793 = vadd.f32 0.0, %v3792
        %v3794 = vpop.f32.mrb[0].mxu0
        %v3795 = vadd.f32 0.0, %v3794
        %v3796 = vpop.f32.mrb[0].mxu0
        %v3797 = vadd.f32 0.0, %v3796
        %v3798 = vpop.f32.mrb[0].mxu0
        %v3799 = vadd.f32 0.0, %v3798
        %3800 = vdwg.mxu0
        %3801 = vmatprep.subr.bf16.mxu0 %v1939
        %3802 = vmatpush1.bf16.msra.mxu0 %v1938
        %3803 = vmatprep.subr.bf16.mxu0 %v1979
        %3804 = vmatpush1.bf16.msra.mxu0 %v1978
        %3805 = vmatprep.subr.bf16.mxu0 %v2019
        %3806 = vmatpush1.bf16.msra.mxu0 %v2018
        %3807 = vmatprep.subr.bf16.mxu0 %v2059
        %3808 = vmatpush1.bf16.msra.mxu0 %v2058
        %3809 = vmatprep.subr.bf16.mxu0 %v2099
        %3810 = vmatpush1.bf16.msra.mxu0 %v2098
        %3811 = vmatprep.subr.bf16.mxu0 %v2139
        %3812 = vmatpush1.bf16.msra.mxu0 %v2138
        %3813 = vmatprep.subr.bf16.mxu0 %v2179
        %3814 = vmatpush1.bf16.msra.mxu0 %v2178
        %3815 = vmatprep.subr.bf16.mxu0 %v2219
        %3816 = vmatpush1.bf16.msra.mxu0 %v2218
        %3817 = vmatprep.subr.bf16.mxu0 %v2259
        %3818 = vmatpush1.bf16.msra.mxu0 %v2258
        %3819 = vmatprep.subr.bf16.mxu0 %v2299
        %3820 = vmatpush1.bf16.msra.mxu0 %v2298
        %3821 = vmatprep.subr.bf16.mxu0 %v2339
        %3822 = vmatpush1.bf16.msra.mxu0 %v2338
        %3823 = vmatprep.subr.bf16.mxu0 %v2379
        %3824 = vmatpush1.bf16.msra.mxu0 %v2378
        %3825 = vmatprep.subr.bf16.mxu0 %v2419
        %3826 = vmatpush1.bf16.msra.mxu0 %v2418
        %3827 = vmatprep.subr.bf16.mxu0 %v2459
        %3828 = vmatpush1.bf16.msra.mxu0 %v2458
        %3829 = vmatprep.subr.bf16.mxu0 %v2499
        %3830 = vmatpush1.bf16.msra.mxu0 %v2498
        %3831 = vmatprep.subr.bf16.mxu0 %v2539
        %3832 = vmatpush1.bf16.msra.mxu0 %v2538
        %3833 = vmatprep.mubr.bf16.mxu0 %v2553
        %3834 = vmatmul.mubr.bf16.gmra.mrb[0].mxu0 %v2552
        %v3835 = vpop.f32.mrb[0].mxu0
        %v3836 = vadd.f32 %v3793, %v3835
        %v3837 = vpop.f32.mrb[0].mxu0
        %v3838 = vadd.f32 %v3795, %v3837
        %v3839 = vpop.f32.mrb[0].mxu0
        %v3840 = vadd.f32 %v3797, %v3839
        %v3841 = vpop.f32.mrb[0].mxu0
        %v3842 = vadd.f32 %v3799, %v3841
        %3843 = vdwg.mxu0
        %3844 = vmatprep.subr.bf16.mxu0 %v1301
        %3845 = vmatpush1.bf16.msra.mxu0 %v1300
        %3846 = vmatprep.subr.bf16.mxu0 %v1341
        %3847 = vmatpush1.bf16.msra.mxu0 %v1340
        %3848 = vmatprep.subr.bf16.mxu0 %v1381
        %3849 = vmatpush1.bf16.msra.mxu0 %v1380
        %3850 = vmatprep.subr.bf16.mxu0 %v1421
        %3851 = vmatpush1.bf16.msra.mxu0 %v1420
        %3852 = vmatprep.subr.bf16.mxu0 %v1461
        %3853 = vmatpush1.bf16.msra.mxu0 %v1460
        %3854 = vmatprep.subr.bf16.mxu0 %v1501
        %3855 = vmatpush1.bf16.msra.mxu0 %v1500
        %3856 = vmatprep.subr.bf16.mxu0 %v1541
        %3857 = vmatpush1.bf16.msra.mxu0 %v1540
        %3858 = vmatprep.subr.bf16.mxu0 %v1581
        %3859 = vmatpush1.bf16.msra.mxu0 %v1580
        %3860 = vmatprep.subr.bf16.mxu0 %v1621
        %3861 = vmatpush1.bf16.msra.mxu0 %v1620
        %3862 = vmatprep.subr.bf16.mxu0 %v1661
        %3863 = vmatpush1.bf16.msra.mxu0 %v1660
        %3864 = vmatprep.subr.bf16.mxu0 %v1701
        %3865 = vmatpush1.bf16.msra.mxu0 %v1700
        %3866 = vmatprep.subr.bf16.mxu0 %v1741
        %3867 = vmatpush1.bf16.msra.mxu0 %v1740
        %3868 = vmatprep.subr.bf16.mxu0 %v1781
        %3869 = vmatpush1.bf16.msra.mxu0 %v1780
        %3870 = vmatprep.subr.bf16.mxu0 %v1821
        %3871 = vmatpush1.bf16.msra.mxu0 %v1820
        %3872 = vmatprep.subr.bf16.mxu0 %v1861
        %3873 = vmatpush1.bf16.msra.mxu0 %v1860
        %3874 = vmatprep.subr.bf16.mxu0 %v1901
        %3875 = vmatpush1.bf16.msra.mxu0 %v1900
        %3876 = vmatprep.mubr.bf16.mxu0 %v2551
        %3877 = vmatmul.mubr.bf16.gmra.mrb[0].mxu0 %v2550
        %v3878 = vpop.f32.mrb[0].mxu0
        %v3879 = vadd.f32 0.0, %v3878
        %v3880 = vpop.f32.mrb[0].mxu0
        %v3881 = vadd.f32 0.0, %v3880
        %v3882 = vpop.f32.mrb[0].mxu0
        %v3883 = vadd.f32 0.0, %v3882
        %v3884 = vpop.f32.mrb[0].mxu0
        %v3885 = vadd.f32 0.0, %v3884
        %3886 = vdwg.mxu0
        %3887 = vmatprep.subr.bf16.mxu0 %v1941
        %3888 = vmatpush1.bf16.msra.mxu0 %v1940
        %3889 = vmatprep.subr.bf16.mxu0 %v1981
        %3890 = vmatpush1.bf16.msra.mxu0 %v1980
        %3891 = vmatprep.subr.bf16.mxu0 %v2021
        %3892 = vmatpush1.bf16.msra.mxu0 %v2020
        %3893 = vmatprep.subr.bf16.mxu0 %v2061
        %3894 = vmatpush1.bf16.msra.mxu0 %v2060
        %3895 = vmatprep.subr.bf16.mxu0 %v2101
        %3896 = vmatpush1.bf16.msra.mxu0 %v2100
        %3897 = vmatprep.subr.bf16.mxu0 %v2141
        %3898 = vmatpush1.bf16.msra.mxu0 %v2140
        %3899 = vmatprep.subr.bf16.mxu0 %v2181
        %3900 = vmatpush1.bf16.msra.mxu0 %v2180
        %3901 = vmatprep.subr.bf16.mxu0 %v2221
        %3902 = vmatpush1.bf16.msra.mxu0 %v2220
        %3903 = vmatprep.subr.bf16.mxu0 %v2261
        %3904 = vmatpush1.bf16.msra.mxu0 %v2260
        %3905 = vmatprep.subr.bf16.mxu0 %v2301
        %3906 = vmatpush1.bf16.msra.mxu0 %v2300
        %3907 = vmatprep.subr.bf16.mxu0 %v2341
        %3908 = vmatpush1.bf16.msra.mxu0 %v2340
        %3909 = vmatprep.subr.bf16.mxu0 %v2381
        %3910 = vmatpush1.bf16.msra.mxu0 %v2380
        %3911 = vmatprep.subr.bf16.mxu0 %v2421
        %3912 = vmatpush1.bf16.msra.mxu0 %v2420
        %3913 = vmatprep.subr.bf16.mxu0 %v2461
        %3914 = vmatpush1.bf16.msra.mxu0 %v2460
        %3915 = vmatprep.subr.bf16.mxu0 %v2501
        %3916 = vmatpush1.bf16.msra.mxu0 %v2500
        %3917 = vmatprep.subr.bf16.mxu0 %v2541
        %3918 = vmatpush1.bf16.msra.mxu0 %v2540
        %3919 = vmatprep.mubr.bf16.mxu0 %v2553
        %3920 = vmatmul.mubr.bf16.gmra.mrb[0].mxu0 %v2552
        %v3921 = vpop.f32.mrb[0].mxu0
        %v3922 = vadd.f32 %v3879, %v3921
        %v3923 = vpop.f32.mrb[0].mxu0
        %v3924 = vadd.f32 %v3881, %v3923
        %v3925 = vpop.f32.mrb[0].mxu0
        %v3926 = vadd.f32 %v3883, %v3925
        %v3927 = vpop.f32.mrb[0].mxu0
        %v3928 = vadd.f32 %v3885, %v3927
        %3929 = vdwg.mxu0
        %3930 = vmatprep.subr.bf16.mxu0 %v1303
        %3931 = vmatpush1.bf16.msra.mxu0 %v1302
        %3932 = vmatprep.subr.bf16.mxu0 %v1343
        %3933 = vmatpush1.bf16.msra.mxu0 %v1342
        %3934 = vmatprep.subr.bf16.mxu0 %v1383
        %3935 = vmatpush1.bf16.msra.mxu0 %v1382
        %3936 = vmatprep.subr.bf16.mxu0 %v1423
        %3937 = vmatpush1.bf16.msra.mxu0 %v1422
        %3938 = vmatprep.subr.bf16.mxu0 %v1463
        %3939 = vmatpush1.bf16.msra.mxu0 %v1462
        %3940 = vmatprep.subr.bf16.mxu0 %v1503
        %3941 = vmatpush1.bf16.msra.mxu0 %v1502
        %3942 = vmatprep.subr.bf16.mxu0 %v1543
        %3943 = vmatpush1.bf16.msra.mxu0 %v1542
        %3944 = vmatprep.subr.bf16.mxu0 %v1583
        %3945 = vmatpush1.bf16.msra.mxu0 %v1582
        %3946 = vmatprep.subr.bf16.mxu0 %v1623
        %3947 = vmatpush1.bf16.msra.mxu0 %v1622
        %3948 = vmatprep.subr.bf16.mxu0 %v1663
        %3949 = vmatpush1.bf16.msra.mxu0 %v1662
        %3950 = vmatprep.subr.bf16.mxu0 %v1703
        %3951 = vmatpush1.bf16.msra.mxu0 %v1702
        %3952 = vmatprep.subr.bf16.mxu0 %v1743
        %3953 = vmatpush1.bf16.msra.mxu0 %v1742
        %3954 = vmatprep.subr.bf16.mxu0 %v1783
        %3955 = vmatpush1.bf16.msra.mxu0 %v1782
        %3956 = vmatprep.subr.bf16.mxu0 %v1823
        %3957 = vmatpush1.bf16.msra.mxu0 %v1822
        %3958 = vmatprep.subr.bf16.mxu0 %v1863
        %3959 = vmatpush1.bf16.msra.mxu0 %v1862
        %3960 = vmatprep.subr.bf16.mxu0 %v1903
        %3961 = vmatpush1.bf16.msra.mxu0 %v1902
        %3962 = vmatprep.mubr.bf16.mxu0 %v2551
        %3963 = vmatmul.mubr.bf16.gmra.mrb[0].mxu0 %v2550
        %v3964 = vpop.f32.mrb[0].mxu0
        %v3965 = vadd.f32 0.0, %v3964
        %v3966 = vpop.f32.mrb[0].mxu0
        %v3967 = vadd.f32 0.0, %v3966
        %v3968 = vpop.f32.mrb[0].mxu0
        %v3969 = vadd.f32 0.0, %v3968
        %v3970 = vpop.f32.mrb[0].mxu0
        %v3971 = vadd.f32 0.0, %v3970
        %3972 = vdwg.mxu0
        %3973 = vmatprep.subr.bf16.mxu0 %v1943
        %3974 = vmatpush1.bf16.msra.mxu0 %v1942
        %3975 = vmatprep.subr.bf16.mxu0 %v1983
        %3976 = vmatpush1.bf16.msra.mxu0 %v1982
        %3977 = vmatprep.subr.bf16.mxu0 %v2023
        %3978 = vmatpush1.bf16.msra.mxu0 %v2022
        %3979 = vmatprep.subr.bf16.mxu0 %v2063
        %3980 = vmatpush1.bf16.msra.mxu0 %v2062
        %3981 = vmatprep.subr.bf16.mxu0 %v2103
        %3982 = vmatpush1.bf16.msra.mxu0 %v2102
        %3983 = vmatprep.subr.bf16.mxu0 %v2143
        %3984 = vmatpush1.bf16.msra.mxu0 %v2142
        %3985 = vmatprep.subr.bf16.mxu0 %v2183
        %3986 = vmatpush1.bf16.msra.mxu0 %v2182
        %3987 = vmatprep.subr.bf16.mxu0 %v2223
        %3988 = vmatpush1.bf16.msra.mxu0 %v2222
        %3989 = vmatprep.subr.bf16.mxu0 %v2263
        %3990 = vmatpush1.bf16.msra.mxu0 %v2262
        %3991 = vmatprep.subr.bf16.mxu0 %v2303
        %3992 = vmatpush1.bf16.msra.mxu0 %v2302
        %3993 = vmatprep.subr.bf16.mxu0 %v2343
        %3994 = vmatpush1.bf16.msra.mxu0 %v2342
        %3995 = vmatprep.subr.bf16.mxu0 %v2383
        %3996 = vmatpush1.bf16.msra.mxu0 %v2382
        %3997 = vmatprep.subr.bf16.mxu0 %v2423
        %3998 = vmatpush1.bf16.msra.mxu0 %v2422
        %3999 = vmatprep.subr.bf16.mxu0 %v2463
        %4000 = vmatpush1.bf16.msra.mxu0 %v2462
        %4001 = vmatprep.subr.bf16.mxu0 %v2503
        %4002 = vmatpush1.bf16.msra.mxu0 %v2502
        %4003 = vmatprep.subr.bf16.mxu0 %v2543
        %4004 = vmatpush1.bf16.msra.mxu0 %v2542
        %4005 = vmatprep.mubr.bf16.mxu0 %v2553
        %4006 = vmatmul.mubr.bf16.gmra.mrb[0].mxu0 %v2552
        %v4007 = vpop.f32.mrb[0].mxu0
        %v4008 = vadd.f32 %v3965, %v4007
        %v4009 = vpop.f32.mrb[0].mxu0
        %v4010 = vadd.f32 %v3967, %v4009
        %v4011 = vpop.f32.mrb[0].mxu0
        %v4012 = vadd.f32 %v3969, %v4011
        %v4013 = vpop.f32.mrb[0].mxu0
        %v4014 = vadd.f32 %v3971, %v4013
        %4015 = vdwg.mxu0
        %4016 = vmatprep.subr.bf16.mxu0 %v1305
        %4017 = vmatpush1.bf16.msra.mxu0 %v1304
        %4018 = vmatprep.subr.bf16.mxu0 %v1345
        %4019 = vmatpush1.bf16.msra.mxu0 %v1344
        %4020 = vmatprep.subr.bf16.mxu0 %v1385
        %4021 = vmatpush1.bf16.msra.mxu0 %v1384
        %4022 = vmatprep.subr.bf16.mxu0 %v1425
        %4023 = vmatpush1.bf16.msra.mxu0 %v1424
        %4024 = vmatprep.subr.bf16.mxu0 %v1465
        %4025 = vmatpush1.bf16.msra.mxu0 %v1464
        %4026 = vmatprep.subr.bf16.mxu0 %v1505
        %4027 = vmatpush1.bf16.msra.mxu0 %v1504
        %4028 = vmatprep.subr.bf16.mxu0 %v1545
        %4029 = vmatpush1.bf16.msra.mxu0 %v1544
        %4030 = vmatprep.subr.bf16.mxu0 %v1585
        %4031 = vmatpush1.bf16.msra.mxu0 %v1584
        %4032 = vmatprep.subr.bf16.mxu0 %v1625
        %4033 = vmatpush1.bf16.msra.mxu0 %v1624
        %4034 = vmatprep.subr.bf16.mxu0 %v1665
        %4035 = vmatpush1.bf16.msra.mxu0 %v1664
        %4036 = vmatprep.subr.bf16.mxu0 %v1705
        %4037 = vmatpush1.bf16.msra.mxu0 %v1704
        %4038 = vmatprep.subr.bf16.mxu0 %v1745
        %4039 = vmatpush1.bf16.msra.mxu0 %v1744
        %4040 = vmatprep.subr.bf16.mxu0 %v1785
        %4041 = vmatpush1.bf16.msra.mxu0 %v1784
        %4042 = vmatprep.subr.bf16.mxu0 %v1825
        %4043 = vmatpush1.bf16.msra.mxu0 %v1824
        %4044 = vmatprep.subr.bf16.mxu0 %v1865
        %4045 = vmatpush1.bf16.msra.mxu0 %v1864
        %4046 = vmatprep.subr.bf16.mxu0 %v1905
        %4047 = vmatpush1.bf16.msra.mxu0 %v1904
        %4048 = vmatprep.mubr.bf16.mxu0 %v2551
        %4049 = vmatmul.mubr.bf16.gmra.mrb[0].mxu0 %v2550
        %v4050 = vpop.f32.mrb[0].mxu0
        %v4051 = vadd.f32 0.0, %v4050
        %v4052 = vpop.f32.mrb[0].mxu0
        %v4053 = vadd.f32 0.0, %v4052
        %v4054 = vpop.f32.mrb[0].mxu0
        %v4055 = vadd.f32 0.0, %v4054
        %v4056 = vpop.f32.mrb[0].mxu0
        %v4057 = vadd.f32 0.0, %v4056
        %4058 = vdwg.mxu0
        %4059 = vmatprep.subr.bf16.mxu0 %v1945
        %4060 = vmatpush1.bf16.msra.mxu0 %v1944
        %4061 = vmatprep.subr.bf16.mxu0 %v1985
        %4062 = vmatpush1.bf16.msra.mxu0 %v1984
        %4063 = vmatprep.subr.bf16.mxu0 %v2025
        %4064 = vmatpush1.bf16.msra.mxu0 %v2024
        %4065 = vmatprep.subr.bf16.mxu0 %v2065
        %4066 = vmatpush1.bf16.msra.mxu0 %v2064
        %4067 = vmatprep.subr.bf16.mxu0 %v2105
        %4068 = vmatpush1.bf16.msra.mxu0 %v2104
        %4069 = vmatprep.subr.bf16.mxu0 %v2145
        %4070 = vmatpush1.bf16.msra.mxu0 %v2144
        %4071 = vmatprep.subr.bf16.mxu0 %v2185
        %4072 = vmatpush1.bf16.msra.mxu0 %v2184
        %4073 = vmatprep.subr.bf16.mxu0 %v2225
        %4074 = vmatpush1.bf16.msra.mxu0 %v2224
        %4075 = vmatprep.subr.bf16.mxu0 %v2265
        %4076 = vmatpush1.bf16.msra.mxu0 %v2264
        %4077 = vmatprep.subr.bf16.mxu0 %v2305
        %4078 = vmatpush1.bf16.msra.mxu0 %v2304
        %4079 = vmatprep.subr.bf16.mxu0 %v2345
        %4080 = vmatpush1.bf16.msra.mxu0 %v2344
        %4081 = vmatprep.subr.bf16.mxu0 %v2385
        %4082 = vmatpush1.bf16.msra.mxu0 %v2384
        %4083 = vmatprep.subr.bf16.mxu0 %v2425
        %4084 = vmatpush1.bf16.msra.mxu0 %v2424
        %4085 = vmatprep.subr.bf16.mxu0 %v2465
        %4086 = vmatpush1.bf16.msra.mxu0 %v2464
        %4087 = vmatprep.subr.bf16.mxu0 %v2505
        %4088 = vmatpush1.bf16.msra.mxu0 %v2504
        %4089 = vmatprep.subr.bf16.mxu0 %v2545
        %4090 = vmatpush1.bf16.msra.mxu0 %v2544
        %4091 = vmatprep.mubr.bf16.mxu0 %v2553
        %4092 = vmatmul.mubr.bf16.gmra.mrb[0].mxu0 %v2552
        %v4093 = vpop.f32.mrb[0].mxu0
        %v4094 = vadd.f32 %v4051, %v4093
        %v4095 = vpop.f32.mrb[0].mxu0
        %v4096 = vadd.f32 %v4053, %v4095
        %v4097 = vpop.f32.mrb[0].mxu0
        %v4098 = vadd.f32 %v4055, %v4097
        %v4099 = vpop.f32.mrb[0].mxu0
        %v4100 = vadd.f32 %v4057, %v4099
        %4101 = vdwg.mxu0
        %4102 = vmatprep.subr.bf16.mxu0 %v1307
        %4103 = vmatpush1.bf16.msra.mxu0 %v1306
        %4104 = vmatprep.subr.bf16.mxu0 %v1347
        %4105 = vmatpush1.bf16.msra.mxu0 %v1346
        %4106 = vmatprep.subr.bf16.mxu0 %v1387
        %4107 = vmatpush1.bf16.msra.mxu0 %v1386
        %4108 = vmatprep.subr.bf16.mxu0 %v1427
        %4109 = vmatpush1.bf16.msra.mxu0 %v1426
        %4110 = vmatprep.subr.bf16.mxu0 %v1467
        %4111 = vmatpush1.bf16.msra.mxu0 %v1466
        %4112 = vmatprep.subr.bf16.mxu0 %v1507
        %4113 = vmatpush1.bf16.msra.mxu0 %v1506
        %4114 = vmatprep.subr.bf16.mxu0 %v1547
        %4115 = vmatpush1.bf16.msra.mxu0 %v1546
        %4116 = vmatprep.subr.bf16.mxu0 %v1587
        %4117 = vmatpush1.bf16.msra.mxu0 %v1586
        %4118 = vmatprep.subr.bf16.mxu0 %v1627
        %4119 = vmatpush1.bf16.msra.mxu0 %v1626
        %4120 = vmatprep.subr.bf16.mxu0 %v1667
        %4121 = vmatpush1.bf16.msra.mxu0 %v1666
        %4122 = vmatprep.subr.bf16.mxu0 %v1707
        %4123 = vmatpush1.bf16.msra.mxu0 %v1706
        %4124 = vmatprep.subr.bf16.mxu0 %v1747
        %4125 = vmatpush1.bf16.msra.mxu0 %v1746
        %4126 = vmatprep.subr.bf16.mxu0 %v1787
        %4127 = vmatpush1.bf16.msra.mxu0 %v1786
        %4128 = vmatprep.subr.bf16.mxu0 %v1827
        %4129 = vmatpush1.bf16.msra.mxu0 %v1826
        %4130 = vmatprep.subr.bf16.mxu0 %v1867
        %4131 = vmatpush1.bf16.msra.mxu0 %v1866
        %4132 = vmatprep.subr.bf16.mxu0 %v1907
        %4133 = vmatpush1.bf16.msra.mxu0 %v1906
        %4134 = vmatprep.mubr.bf16.mxu0 %v2551
        %4135 = vmatmul.mubr.bf16.gmra.mrb[0].mxu0 %v2550
        %v4136 = vpop.f32.mrb[0].mxu0
        %v4137 = vadd.f32 0.0, %v4136
        %v4138 = vpop.f32.mrb[0].mxu0
        %v4139 = vadd.f32 0.0, %v4138
        %v4140 = vpop.f32.mrb[0].mxu0
        %v4141 = vadd.f32 0.0, %v4140
        %v4142 = vpop.f32.mrb[0].mxu0
        %v4143 = vadd.f32 0.0, %v4142
        %4144 = vdwg.mxu0
        %4145 = vmatprep.subr.bf16.mxu0 %v1947
        %4146 = vmatpush1.bf16.msra.mxu0 %v1946
        %4147 = vmatprep.subr.bf16.mxu0 %v1987
        %4148 = vmatpush1.bf16.msra.mxu0 %v1986
        %4149 = vmatprep.subr.bf16.mxu0 %v2027
        %4150 = vmatpush1.bf16.msra.mxu0 %v2026
        %4151 = vmatprep.subr.bf16.mxu0 %v2067
        %4152 = vmatpush1.bf16.msra.mxu0 %v2066
        %4153 = vmatprep.subr.bf16.mxu0 %v2107
        %4154 = vmatpush1.bf16.msra.mxu0 %v2106
        %4155 = vmatprep.subr.bf16.mxu0 %v2147
        %4156 = vmatpush1.bf16.msra.mxu0 %v2146
        %4157 = vmatprep.subr.bf16.mxu0 %v2187
        %4158 = vmatpush1.bf16.msra.mxu0 %v2186
        %4159 = vmatprep.subr.bf16.mxu0 %v2227
        %4160 = vmatpush1.bf16.msra.mxu0 %v2226
        %4161 = vmatprep.subr.bf16.mxu0 %v2267
        %4162 = vmatpush1.bf16.msra.mxu0 %v2266
        %4163 = vmatprep.subr.bf16.mxu0 %v2307
        %4164 = vmatpush1.bf16.msra.mxu0 %v2306
        %4165 = vmatprep.subr.bf16.mxu0 %v2347
        %4166 = vmatpush1.bf16.msra.mxu0 %v2346
        %4167 = vmatprep.subr.bf16.mxu0 %v2387
        %4168 = vmatpush1.bf16.msra.mxu0 %v2386
        %4169 = vmatprep.subr.bf16.mxu0 %v2427
        %4170 = vmatpush1.bf16.msra.mxu0 %v2426
        %4171 = vmatprep.subr.bf16.mxu0 %v2467
        %4172 = vmatpush1.bf16.msra.mxu0 %v2466
        %4173 = vmatprep.subr.bf16.mxu0 %v2507
        %4174 = vmatpush1.bf16.msra.mxu0 %v2506
        %4175 = vmatprep.subr.bf16.mxu0 %v2547
        %4176 = vmatpush1.bf16.msra.mxu0 %v2546
        %4177 = vmatprep.mubr.bf16.mxu0 %v2553
        %4178 = vmatmul.mubr.bf16.gmra.mrb[0].mxu0 %v2552
        %v4179 = vpop.f32.mrb[0].mxu0
        %v4180 = vadd.f32 %v4137, %v4179
        %v4181 = vpop.f32.mrb[0].mxu0
        %v4182 = vadd.f32 %v4139, %v4181
        %v4183 = vpop.f32.mrb[0].mxu0
        %v4184 = vadd.f32 %v4141, %v4183
        %v4185 = vpop.f32.mrb[0].mxu0
        %v4186 = vadd.f32 %v4143, %v4185
        %4187 = vdwg.mxu0
        %4188 = vmatprep.subr.bf16.mxu0 %v1309
        %4189 = vmatpush1.bf16.msra.mxu0 %v1308
        %4190 = vmatprep.subr.bf16.mxu0 %v1349
        %4191 = vmatpush1.bf16.msra.mxu0 %v1348
        %4192 = vmatprep.subr.bf16.mxu0 %v1389
        %4193 = vmatpush1.bf16.msra.mxu0 %v1388
        %4194 = vmatprep.subr.bf16.mxu0 %v1429
        %4195 = vmatpush1.bf16.msra.mxu0 %v1428
        %4196 = vmatprep.subr.bf16.mxu0 %v1469
        %4197 = vmatpush1.bf16.msra.mxu0 %v1468
        %4198 = vmatprep.subr.bf16.mxu0 %v1509
        %4199 = vmatpush1.bf16.msra.mxu0 %v1508
        %4200 = vmatprep.subr.bf16.mxu0 %v1549
        %4201 = vmatpush1.bf16.msra.mxu0 %v1548
        %4202 = vmatprep.subr.bf16.mxu0 %v1589
        %4203 = vmatpush1.bf16.msra.mxu0 %v1588
        %4204 = vmatprep.subr.bf16.mxu0 %v1629
        %4205 = vmatpush1.bf16.msra.mxu0 %v1628
        %4206 = vmatprep.subr.bf16.mxu0 %v1669
        %4207 = vmatpush1.bf16.msra.mxu0 %v1668
        %4208 = vmatprep.subr.bf16.mxu0 %v1709
        %4209 = vmatpush1.bf16.msra.mxu0 %v1708
        %4210 = vmatprep.subr.bf16.mxu0 %v1749
        %4211 = vmatpush1.bf16.msra.mxu0 %v1748
        %4212 = vmatprep.subr.bf16.mxu0 %v1789
        %4213 = vmatpush1.bf16.msra.mxu0 %v1788
        %4214 = vmatprep.subr.bf16.mxu0 %v1829
        %4215 = vmatpush1.bf16.msra.mxu0 %v1828
        %4216 = vmatprep.subr.bf16.mxu0 %v1869
        %4217 = vmatpush1.bf16.msra.mxu0 %v1868
        %4218 = vmatprep.subr.bf16.mxu0 %v1909
        %4219 = vmatpush1.bf16.msra.mxu0 %v1908
        %4220 = vmatprep.mubr.bf16.mxu0 %v2551
        %4221 = vmatmul.mubr.bf16.gmra.mrb[0].mxu0 %v2550
        %v4222 = vpop.f32.mrb[0].mxu0
        %v4223 = vadd.f32 0.0, %v4222
        %v4224 = vpop.f32.mrb[0].mxu0
        %v4225 = vadd.f32 0.0, %v4224
        %v4226 = vpop.f32.mrb[0].mxu0
        %v4227 = vadd.f32 0.0, %v4226
        %v4228 = vpop.f32.mrb[0].mxu0
        %v4229 = vadd.f32 0.0, %v4228
        %4230 = vdwg.mxu0
        %4231 = vmatprep.subr.bf16.mxu0 %v1949
        %4232 = vmatpush1.bf16.msra.mxu0 %v1948
        %4233 = vmatprep.subr.bf16.mxu0 %v1989
        %4234 = vmatpush1.bf16.msra.mxu0 %v1988
        %4235 = vmatprep.subr.bf16.mxu0 %v2029
        %4236 = vmatpush1.bf16.msra.mxu0 %v2028
        %4237 = vmatprep.subr.bf16.mxu0 %v2069
        %4238 = vmatpush1.bf16.msra.mxu0 %v2068
        %4239 = vmatprep.subr.bf16.mxu0 %v2109
        %4240 = vmatpush1.bf16.msra.mxu0 %v2108
        %4241 = vmatprep.subr.bf16.mxu0 %v2149
        %4242 = vmatpush1.bf16.msra.mxu0 %v2148
        %4243 = vmatprep.subr.bf16.mxu0 %v2189
        %4244 = vmatpush1.bf16.msra.mxu0 %v2188
        %4245 = vmatprep.subr.bf16.mxu0 %v2229
        %4246 = vmatpush1.bf16.msra.mxu0 %v2228
        %4247 = vmatprep.subr.bf16.mxu0 %v2269
        %4248 = vmatpush1.bf16.msra.mxu0 %v2268
        %4249 = vmatprep.subr.bf16.mxu0 %v2309
        %4250 = vmatpush1.bf16.msra.mxu0 %v2308
        %4251 = vmatprep.subr.bf16.mxu0 %v2349
        %4252 = vmatpush1.bf16.msra.mxu0 %v2348
        %4253 = vmatprep.subr.bf16.mxu0 %v2389
        %4254 = vmatpush1.bf16.msra.mxu0 %v2388
        %4255 = vmatprep.subr.bf16.mxu0 %v2429
        %4256 = vmatpush1.bf16.msra.mxu0 %v2428
        %4257 = vmatprep.subr.bf16.mxu0 %v2469
        %4258 = vmatpush1.bf16.msra.mxu0 %v2468
        %4259 = vmatprep.subr.bf16.mxu0 %v2509
        %4260 = vmatpush1.bf16.msra.mxu0 %v2508
        %4261 = vmatprep.subr.bf16.mxu0 %v2549
        %4262 = vmatpush1.bf16.msra.mxu0 %v2548
        %4263 = vmatprep.mubr.bf16.mxu0 %v2553
        %4264 = vmatmul.mubr.bf16.gmra.mrb[0].mxu0 %v2552
        %v4265 = vpop.f32.mrb[0].mxu0
        %v4266 = vadd.f32 %v4223, %v4265
        %v4267 = vpop.f32.mrb[0].mxu0
        %v4268 = vadd.f32 %v4225, %v4267
        %v4269 = vpop.f32.mrb[0].mxu0
        %v4270 = vadd.f32 %v4227, %v4269
        %v4271 = vpop.f32.mrb[0].mxu0
        %v4272 = vadd.f32 %v4229, %v4271
        %4273 = vdwg.mxu0
        %v4274 = vld [vmem:[%s314] sm:$0xff]
        %v4275 = vld [vmem:[%s314 + $0x8] sm:$0xff]
        %v4276 = vld [vmem:[%s314 + $0x10] sm:$0xff]
        %v4277 = vld [vmem:[%s314 + $0x18] sm:$0xff]
        %v4278 = vld [vmem:[%s314 + $0x20] sm:$0xff]
        %v4284 = vlaneseq
        %v4285 = vshrl.u32 %v4284, 7
        %v4286 = vsub.s32 0, %v4285
        %v4287 = vrot.slane %v4274, %v4286
        %v4288 = vlaneseq
        %v4289 = vshrl.u32 %v4288, 7
        %v4290 = vsub.s32 1, %v4289
        %v4291 = vrot.slane %v4274, %v4290
        %v4292 = vlaneseq
        %v4293 = vshrl.u32 %v4292, 7
        %v4294 = vsub.s32 2, %v4293
        %v4295 = vrot.slane %v4274, %v4294
        %v4296 = vlaneseq
        %v4297 = vshrl.u32 %v4296, 7
        %v4298 = vsub.s32 3, %v4297
        %v4299 = vrot.slane %v4274, %v4298
        %v4300 = vlaneseq
        %v4301 = vshrl.u32 %v4300, 7
        %v4302 = vsub.s32 4, %v4301
        %v4303 = vrot.slane %v4274, %v4302
        %v4304 = vlaneseq
        %v4305 = vshrl.u32 %v4304, 7
        %v4306 = vsub.s32 5, %v4305
        %v4307 = vrot.slane %v4274, %v4306
        %v4308 = vlaneseq
        %v4309 = vshrl.u32 %v4308, 7
        %v4310 = vsub.s32 6, %v4309
        %v4311 = vrot.slane %v4274, %v4310
        %v4312 = vlaneseq
        %v4313 = vshrl.u32 %v4312, 7
        %v4314 = vsub.s32 7, %v4313
        %v4315 = vrot.slane %v4274, %v4314
        %v4316 = vlaneseq
        %v4317 = vshrl.u32 %v4316, 7
        %v4318 = vsub.s32 0, %v4317
        %v4319 = vrot.slane %v4275, %v4318
        %v4320 = vlaneseq
        %v4321 = vshrl.u32 %v4320, 7
        %v4322 = vsub.s32 1, %v4321
        %v4323 = vrot.slane %v4275, %v4322
        %v4324 = vlaneseq
        %v4325 = vshrl.u32 %v4324, 7
        %v4326 = vsub.s32 2, %v4325
        %v4327 = vrot.slane %v4275, %v4326
        %v4328 = vlaneseq
        %v4329 = vshrl.u32 %v4328, 7
        %v4330 = vsub.s32 3, %v4329
        %v4331 = vrot.slane %v4275, %v4330
        %v4332 = vlaneseq
        %v4333 = vshrl.u32 %v4332, 7
        %v4334 = vsub.s32 4, %v4333
        %v4335 = vrot.slane %v4275, %v4334
        %v4336 = vlaneseq
        %v4337 = vshrl.u32 %v4336, 7
        %v4338 = vsub.s32 5, %v4337
        %v4339 = vrot.slane %v4275, %v4338
        %v4340 = vlaneseq
        %v4341 = vshrl.u32 %v4340, 7
        %v4342 = vsub.s32 6, %v4341
        %v4343 = vrot.slane %v4275, %v4342
        %v4344 = vlaneseq
        %v4345 = vshrl.u32 %v4344, 7
        %v4346 = vsub.s32 7, %v4345
        %v4347 = vrot.slane %v4275, %v4346
        %v4348 = vlaneseq
        %v4349 = vshrl.u32 %v4348, 7
        %v4350 = vsub.s32 0, %v4349
        %v4351 = vrot.slane %v4276, %v4350
        %v4352 = vlaneseq
        %v4353 = vshrl.u32 %v4352, 7
        %v4354 = vsub.s32 1, %v4353
        %v4355 = vrot.slane %v4276, %v4354
        %v4356 = vlaneseq
        %v4357 = vshrl.u32 %v4356, 7
        %v4358 = vsub.s32 2, %v4357
        %v4359 = vrot.slane %v4276, %v4358
        %v4360 = vlaneseq
        %v4361 = vshrl.u32 %v4360, 7
        %v4362 = vsub.s32 3, %v4361
        %v4363 = vrot.slane %v4276, %v4362
        %v4364 = vlaneseq
        %v4365 = vshrl.u32 %v4364, 7
        %v4366 = vsub.s32 4, %v4365
        %v4367 = vrot.slane %v4276, %v4366
        %v4368 = vlaneseq
        %v4369 = vshrl.u32 %v4368, 7
        %v4370 = vsub.s32 5, %v4369
        %v4371 = vrot.slane %v4276, %v4370
        %v4372 = vlaneseq
        %v4373 = vshrl.u32 %v4372, 7
        %v4374 = vsub.s32 6, %v4373
        %v4375 = vrot.slane %v4276, %v4374
        %v4376 = vlaneseq
        %v4377 = vshrl.u32 %v4376, 7
        %v4378 = vsub.s32 7, %v4377
        %v4379 = vrot.slane %v4276, %v4378
        %v4380 = vlaneseq
        %v4381 = vshrl.u32 %v4380, 7
        %v4382 = vsub.s32 0, %v4381
        %v4383 = vrot.slane %v4277, %v4382
        %v4384 = vlaneseq
        %v4385 = vshrl.u32 %v4384, 7
        %v4386 = vsub.s32 1, %v4385
        %v4387 = vrot.slane %v4277, %v4386
        %v4388 = vlaneseq
        %v4389 = vshrl.u32 %v4388, 7
        %v4390 = vsub.s32 2, %v4389
        %v4391 = vrot.slane %v4277, %v4390
        %v4392 = vlaneseq
        %v4393 = vshrl.u32 %v4392, 7
        %v4394 = vsub.s32 3, %v4393
        %v4395 = vrot.slane %v4277, %v4394
        %v4396 = vlaneseq
        %v4397 = vshrl.u32 %v4396, 7
        %v4398 = vsub.s32 4, %v4397
        %v4399 = vrot.slane %v4277, %v4398
        %v4400 = vlaneseq
        %v4401 = vshrl.u32 %v4400, 7
        %v4402 = vsub.s32 5, %v4401
        %v4403 = vrot.slane %v4277, %v4402
        %v4404 = vlaneseq
        %v4405 = vshrl.u32 %v4404, 7
        %v4406 = vsub.s32 6, %v4405
        %v4407 = vrot.slane %v4277, %v4406
        %v4408 = vlaneseq
        %v4409 = vshrl.u32 %v4408, 7
        %v4410 = vsub.s32 7, %v4409
        %v4411 = vrot.slane %v4277, %v4410
        %v4412 = vlaneseq
        %v4413 = vshrl.u32 %v4412, 7
        %v4414 = vsub.s32 0, %v4413
        %v4415 = vrot.slane %v4278, %v4414
        %v4416 = vlaneseq
        %v4417 = vshrl.u32 %v4416, 7
        %v4418 = vsub.s32 1, %v4417
        %v4419 = vrot.slane %v4278, %v4418
        %v4420 = vlaneseq
        %v4421 = vshrl.u32 %v4420, 7
        %v4422 = vsub.s32 2, %v4421
        %v4423 = vrot.slane %v4278, %v4422
        %v4424 = vlaneseq
        %v4425 = vshrl.u32 %v4424, 7
        %v4426 = vsub.s32 3, %v4425
        %v4427 = vrot.slane %v4278, %v4426
        %v4428 = vlaneseq
        %v4429 = vshrl.u32 %v4428, 7
        %v4430 = vsub.s32 4, %v4429
        %v4431 = vrot.slane %v4278, %v4430
        %v4432 = vlaneseq
        %v4433 = vshrl.u32 %v4432, 7
        %v4434 = vsub.s32 5, %v4433
        %v4435 = vrot.slane %v4278, %v4434
        %v4436 = vlaneseq
        %v4437 = vshrl.u32 %v4436, 7
        %v4438 = vsub.s32 6, %v4437
        %v4439 = vrot.slane %v4278, %v4438
        %v4440 = vlaneseq
        %v4441 = vshrl.u32 %v4440, 7
        %v4442 = vsub.s32 7, %v4441
        %v4443 = vrot.slane %v4278, %v4442
        %v4484 = vmul.f32 %v2632, %v4287
        %v4485 = vmul.f32 %v2634, %v4291
        %v4486 = vmul.f32 %v2718, %v4295
        %v4487 = vmul.f32 %v2720, %v4299
        %v4488 = vmul.f32 %v2804, %v4303
        %v4489 = vmul.f32 %v2806, %v4307
        %v4490 = vmul.f32 %v2890, %v4311
        %v4491 = vmul.f32 %v2892, %v4315
        %v4492 = vmul.f32 %v2976, %v4319
        %v4493 = vmul.f32 %v2978, %v4323
        %v4494 = vmul.f32 %v3062, %v4327
        %v4495 = vmul.f32 %v3064, %v4331
        %v4496 = vmul.f32 %v3148, %v4335
        %v4497 = vmul.f32 %v3150, %v4339
        %v4498 = vmul.f32 %v3234, %v4343
        %v4499 = vmul.f32 %v3236, %v4347
        %v4500 = vmul.f32 %v3320, %v4351
        %v4501 = vmul.f32 %v3322, %v4355
        %v4502 = vmul.f32 %v3406, %v4359
        %v4503 = vmul.f32 %v3408, %v4363
        %v4504 = vmul.f32 %v3492, %v4367
        %v4505 = vmul.f32 %v3494, %v4371
        %v4506 = vmul.f32 %v3578, %v4375
        %v4507 = vmul.f32 %v3580, %v4379
        %v4508 = vmul.f32 %v3664, %v4383
        %v4509 = vmul.f32 %v3666, %v4387
        %v4510 = vmul.f32 %v3750, %v4391
        %v4511 = vmul.f32 %v3752, %v4395
        %v4512 = vmul.f32 %v3836, %v4399
        %v4513 = vmul.f32 %v3838, %v4403
        %v4514 = vmul.f32 %v3922, %v4407
        %v4515 = vmul.f32 %v3924, %v4411
        %v4516 = vmul.f32 %v4008, %v4415
        %v4517 = vmul.f32 %v4010, %v4419
        %v4518 = vmul.f32 %v4094, %v4423
        %v4519 = vmul.f32 %v4096, %v4427
        %v4520 = vmul.f32 %v4180, %v4431
        %v4521 = vmul.f32 %v4182, %v4435
        %v4522 = vmul.f32 %v4266, %v4439
        %v4523 = vmul.f32 %v4268, %v4443
        %v4524 = vmul.f32 %v2636, %v4287
        %v4525 = vmul.f32 %v2638, %v4291
        %v4526 = vmul.f32 %v2722, %v4295
        %v4527 = vmul.f32 %v2724, %v4299
        %v4528 = vmul.f32 %v2808, %v4303
        %v4529 = vmul.f32 %v2810, %v4307
        %v4530 = vmul.f32 %v2894, %v4311
        %v4531 = vmul.f32 %v2896, %v4315
        %v4532 = vmul.f32 %v2980, %v4319
        %v4533 = vmul.f32 %v2982, %v4323
        %v4534 = vmul.f32 %v3066, %v4327
        %v4535 = vmul.f32 %v3068, %v4331
        %v4536 = vmul.f32 %v3152, %v4335
        %v4537 = vmul.f32 %v3154, %v4339
        %v4538 = vmul.f32 %v3238, %v4343
        %v4539 = vmul.f32 %v3240, %v4347
        %v4540 = vmul.f32 %v3324, %v4351
        %v4541 = vmul.f32 %v3326, %v4355
        %v4542 = vmul.f32 %v3410, %v4359
        %v4543 = vmul.f32 %v3412, %v4363
        %v4544 = vmul.f32 %v3496, %v4367
        %v4545 = vmul.f32 %v3498, %v4371
        %v4546 = vmul.f32 %v3582, %v4375
        %v4547 = vmul.f32 %v3584, %v4379
        %v4548 = vmul.f32 %v3668, %v4383
        %v4549 = vmul.f32 %v3670, %v4387
        %v4550 = vmul.f32 %v3754, %v4391
        %v4551 = vmul.f32 %v3756, %v4395
        %v4552 = vmul.f32 %v3840, %v4399
        %v4553 = vmul.f32 %v3842, %v4403
        %v4554 = vmul.f32 %v3926, %v4407
        %v4555 = vmul.f32 %v3928, %v4411
        %v4556 = vmul.f32 %v4012, %v4415
        %v4557 = vmul.f32 %v4014, %v4419
        %v4558 = vmul.f32 %v4098, %v4423
        %v4559 = vmul.f32 %v4100, %v4427
        %v4560 = vmul.f32 %v4184, %v4431
        %v4561 = vmul.f32 %v4186, %v4435
        %v4562 = vmul.f32 %v4270, %v4439
        %v4563 = vmul.f32 %v4272, %v4443
        %v4564 = vld [vmem:[%s323] sm:$0xff]
        %v4565 = vld [vmem:[%s323 + $0x8] sm:$0xff]
        %v4566 = vld [vmem:[%s323 + $0x10] sm:$0xff]
        %v4567 = vld [vmem:[%s323 + $0x18] sm:$0xff]
        %v4568 = vld [vmem:[%s323 + $0x20] sm:$0xff]
        %v4574 = vlaneseq
        %v4575 = vshrl.u32 %v4574, 7
        %v4576 = vsub.s32 0, %v4575
        %v4577 = vrot.slane %v4564, %v4576
        %v4578 = vlaneseq
        %v4579 = vshrl.u32 %v4578, 7
        %v4580 = vsub.s32 1, %v4579
        %v4581 = vrot.slane %v4564, %v4580
        %v4582 = vlaneseq
        %v4583 = vshrl.u32 %v4582, 7
        %v4584 = vsub.s32 2, %v4583
        %v4585 = vrot.slane %v4564, %v4584
        %v4586 = vlaneseq
        %v4587 = vshrl.u32 %v4586, 7
        %v4588 = vsub.s32 3, %v4587
        %v4589 = vrot.slane %v4564, %v4588
        %v4590 = vlaneseq
        %v4591 = vshrl.u32 %v4590, 7
        %v4592 = vsub.s32 4, %v4591
        %v4593 = vrot.slane %v4564, %v4592
        %v4594 = vlaneseq
        %v4595 = vshrl.u32 %v4594, 7
        %v4596 = vsub.s32 5, %v4595
        %v4597 = vrot.slane %v4564, %v4596
        %v4598 = vlaneseq
        %v4599 = vshrl.u32 %v4598, 7
        %v4600 = vsub.s32 6, %v4599
        %v4601 = vrot.slane %v4564, %v4600
        %v4602 = vlaneseq
        %v4603 = vshrl.u32 %v4602, 7
        %v4604 = vsub.s32 7, %v4603
        %v4605 = vrot.slane %v4564, %v4604
        %v4606 = vlaneseq
        %v4607 = vshrl.u32 %v4606, 7
        %v4608 = vsub.s32 0, %v4607
        %v4609 = vrot.slane %v4565, %v4608
        %v4610 = vlaneseq
        %v4611 = vshrl.u32 %v4610, 7
        %v4612 = vsub.s32 1, %v4611
        %v4613 = vrot.slane %v4565, %v4612
        %v4614 = vlaneseq
        %v4615 = vshrl.u32 %v4614, 7
        %v4616 = vsub.s32 2, %v4615
        %v4617 = vrot.slane %v4565, %v4616
        %v4618 = vlaneseq
        %v4619 = vshrl.u32 %v4618, 7
        %v4620 = vsub.s32 3, %v4619
        %v4621 = vrot.slane %v4565, %v4620
        %v4622 = vlaneseq
        %v4623 = vshrl.u32 %v4622, 7
        %v4624 = vsub.s32 4, %v4623
        %v4625 = vrot.slane %v4565, %v4624
        %v4626 = vlaneseq
        %v4627 = vshrl.u32 %v4626, 7
        %v4628 = vsub.s32 5, %v4627
        %v4629 = vrot.slane %v4565, %v4628
        %v4630 = vlaneseq
        %v4631 = vshrl.u32 %v4630, 7
        %v4632 = vsub.s32 6, %v4631
        %v4633 = vrot.slane %v4565, %v4632
        %v4634 = vlaneseq
        %v4635 = vshrl.u32 %v4634, 7
        %v4636 = vsub.s32 7, %v4635
        %v4637 = vrot.slane %v4565, %v4636
        %v4638 = vlaneseq
        %v4639 = vshrl.u32 %v4638, 7
        %v4640 = vsub.s32 0, %v4639
        %v4641 = vrot.slane %v4566, %v4640
        %v4642 = vlaneseq
        %v4643 = vshrl.u32 %v4642, 7
        %v4644 = vsub.s32 1, %v4643
        %v4645 = vrot.slane %v4566, %v4644
        %v4646 = vlaneseq
        %v4647 = vshrl.u32 %v4646, 7
        %v4648 = vsub.s32 2, %v4647
        %v4649 = vrot.slane %v4566, %v4648
        %v4650 = vlaneseq
        %v4651 = vshrl.u32 %v4650, 7
        %v4652 = vsub.s32 3, %v4651
        %v4653 = vrot.slane %v4566, %v4652
        %v4654 = vlaneseq
        %v4655 = vshrl.u32 %v4654, 7
        %v4656 = vsub.s32 4, %v4655
        %v4657 = vrot.slane %v4566, %v4656
        %v4658 = vlaneseq
        %v4659 = vshrl.u32 %v4658, 7
        %v4660 = vsub.s32 5, %v4659
        %v4661 = vrot.slane %v4566, %v4660
        %v4662 = vlaneseq
        %v4663 = vshrl.u32 %v4662, 7
        %v4664 = vsub.s32 6, %v4663
        %v4665 = vrot.slane %v4566, %v4664
        %v4666 = vlaneseq
        %v4667 = vshrl.u32 %v4666, 7
        %v4668 = vsub.s32 7, %v4667
        %v4669 = vrot.slane %v4566, %v4668
        %v4670 = vlaneseq
        %v4671 = vshrl.u32 %v4670, 7
        %v4672 = vsub.s32 0, %v4671
        %v4673 = vrot.slane %v4567, %v4672
        %v4674 = vlaneseq
        %v4675 = vshrl.u32 %v4674, 7
        %v4676 = vsub.s32 1, %v4675
        %v4677 = vrot.slane %v4567, %v4676
        %v4678 = vlaneseq
        %v4679 = vshrl.u32 %v4678, 7
        %v4680 = vsub.s32 2, %v4679
        %v4681 = vrot.slane %v4567, %v4680
        %v4682 = vlaneseq
        %v4683 = vshrl.u32 %v4682, 7
        %v4684 = vsub.s32 3, %v4683
        %v4685 = vrot.slane %v4567, %v4684
        %v4686 = vlaneseq
        %v4687 = vshrl.u32 %v4686, 7
        %v4688 = vsub.s32 4, %v4687
        %v4689 = vrot.slane %v4567, %v4688
        %v4690 = vlaneseq
        %v4691 = vshrl.u32 %v4690, 7
        %v4692 = vsub.s32 5, %v4691
        %v4693 = vrot.slane %v4567, %v4692
        %v4694 = vlaneseq
        %v4695 = vshrl.u32 %v4694, 7
        %v4696 = vsub.s32 6, %v4695
        %v4697 = vrot.slane %v4567, %v4696
        %v4698 = vlaneseq
        %v4699 = vshrl.u32 %v4698, 7
        %v4700 = vsub.s32 7, %v4699
        %v4701 = vrot.slane %v4567, %v4700
        %v4702 = vlaneseq
        %v4703 = vshrl.u32 %v4702, 7
        %v4704 = vsub.s32 0, %v4703
        %v4705 = vrot.slane %v4568, %v4704
        %v4706 = vlaneseq
        %v4707 = vshrl.u32 %v4706, 7
        %v4708 = vsub.s32 1, %v4707
        %v4709 = vrot.slane %v4568, %v4708
        %v4710 = vlaneseq
        %v4711 = vshrl.u32 %v4710, 7
        %v4712 = vsub.s32 2, %v4711
        %v4713 = vrot.slane %v4568, %v4712
        %v4714 = vlaneseq
        %v4715 = vshrl.u32 %v4714, 7
        %v4716 = vsub.s32 3, %v4715
        %v4717 = vrot.slane %v4568, %v4716
        %v4718 = vlaneseq
        %v4719 = vshrl.u32 %v4718, 7
        %v4720 = vsub.s32 4, %v4719
        %v4721 = vrot.slane %v4568, %v4720
        %v4722 = vlaneseq
        %v4723 = vshrl.u32 %v4722, 7
        %v4724 = vsub.s32 5, %v4723
        %v4725 = vrot.slane %v4568, %v4724
        %v4726 = vlaneseq
        %v4727 = vshrl.u32 %v4726, 7
        %v4728 = vsub.s32 6, %v4727
        %v4729 = vrot.slane %v4568, %v4728
        %v4730 = vlaneseq
        %v4731 = vshrl.u32 %v4730, 7
        %v4732 = vsub.s32 7, %v4731
        %v4733 = vrot.slane %v4568, %v4732
        %v4774 = vadd.f32 %v4484, %v4577
        %v4775 = vadd.f32 %v4485, %v4581
        %v4776 = vadd.f32 %v4486, %v4585
        %v4777 = vadd.f32 %v4487, %v4589
        %v4778 = vadd.f32 %v4488, %v4593
        %v4779 = vadd.f32 %v4489, %v4597
        %v4780 = vadd.f32 %v4490, %v4601
        %v4781 = vadd.f32 %v4491, %v4605
        %v4782 = vadd.f32 %v4492, %v4609
        %v4783 = vadd.f32 %v4493, %v4613
        %v4784 = vadd.f32 %v4494, %v4617
        %v4785 = vadd.f32 %v4495, %v4621
        %v4786 = vadd.f32 %v4496, %v4625
        %v4787 = vadd.f32 %v4497, %v4629
        %v4788 = vadd.f32 %v4498, %v4633
        %v4789 = vadd.f32 %v4499, %v4637
        %v4790 = vadd.f32 %v4500, %v4641
        %v4791 = vadd.f32 %v4501, %v4645
        %v4792 = vadd.f32 %v4502, %v4649
        %v4793 = vadd.f32 %v4503, %v4653
        %v4794 = vadd.f32 %v4504, %v4657
        %v4795 = vadd.f32 %v4505, %v4661
        %v4796 = vadd.f32 %v4506, %v4665
        %v4797 = vadd.f32 %v4507, %v4669
        %v4798 = vadd.f32 %v4508, %v4673
        %v4799 = vadd.f32 %v4509, %v4677
        %v4800 = vadd.f32 %v4510, %v4681
        %v4801 = vadd.f32 %v4511, %v4685
        %v4802 = vadd.f32 %v4512, %v4689
        %v4803 = vadd.f32 %v4513, %v4693
        %v4804 = vadd.f32 %v4514, %v4697
        %v4805 = vadd.f32 %v4515, %v4701
        %v4806 = vadd.f32 %v4516, %v4705
        %v4807 = vadd.f32 %v4517, %v4709
        %v4808 = vadd.f32 %v4518, %v4713
        %v4809 = vadd.f32 %v4519, %v4717
        %v4810 = vadd.f32 %v4520, %v4721
        %v4811 = vadd.f32 %v4521, %v4725
        %v4812 = vadd.f32 %v4522, %v4729
        %v4813 = vadd.f32 %v4523, %v4733
        %v4814 = vadd.f32 %v4524, %v4577
        %v4815 = vadd.f32 %v4525, %v4581
        %v4816 = vadd.f32 %v4526, %v4585
        %v4817 = vadd.f32 %v4527, %v4589
        %v4818 = vadd.f32 %v4528, %v4593
        %v4819 = vadd.f32 %v4529, %v4597
        %v4820 = vadd.f32 %v4530, %v4601
        %v4821 = vadd.f32 %v4531, %v4605
        %v4822 = vadd.f32 %v4532, %v4609
        %v4823 = vadd.f32 %v4533, %v4613
        %v4824 = vadd.f32 %v4534, %v4617
        %v4825 = vadd.f32 %v4535, %v4621
        %v4826 = vadd.f32 %v4536, %v4625
        %v4827 = vadd.f32 %v4537, %v4629
        %v4828 = vadd.f32 %v4538, %v4633
        %v4829 = vadd.f32 %v4539, %v4637
        %v4830 = vadd.f32 %v4540, %v4641
        %v4831 = vadd.f32 %v4541, %v4645
        %v4832 = vadd.f32 %v4542, %v4649
        %v4833 = vadd.f32 %v4543, %v4653
        %v4834 = vadd.f32 %v4544, %v4657
        %v4835 = vadd.f32 %v4545, %v4661
        %v4836 = vadd.f32 %v4546, %v4665
        %v4837 = vadd.f32 %v4547, %v4669
        %v4838 = vadd.f32 %v4548, %v4673
        %v4839 = vadd.f32 %v4549, %v4677
        %v4840 = vadd.f32 %v4550, %v4681
        %v4841 = vadd.f32 %v4551, %v4685
        %v4842 = vadd.f32 %v4552, %v4689
        %v4843 = vadd.f32 %v4553, %v4693
        %v4844 = vadd.f32 %v4554, %v4697
        %v4845 = vadd.f32 %v4555, %v4701
        %v4846 = vadd.f32 %v4556, %v4705
        %v4847 = vadd.f32 %v4557, %v4709
        %v4848 = vadd.f32 %v4558, %v4713
        %v4849 = vadd.f32 %v4559, %v4717
        %v4850 = vadd.f32 %v4560, %v4721
        %v4851 = vadd.f32 %v4561, %v4725
        %v4852 = vadd.f32 %v4562, %v4729
        %v4853 = vadd.f32 %v4563, %v4733
        %v4854 = vsub.f32 0.0, %v4774
        %v4855 = vsub.f32 0.0, %v4775
        %v4856 = vsub.f32 0.0, %v4776
        %v4857 = vsub.f32 0.0, %v4777
        %v4858 = vsub.f32 0.0, %v4778
        %v4859 = vsub.f32 0.0, %v4779
        %v4860 = vsub.f32 0.0, %v4780
        %v4861 = vsub.f32 0.0, %v4781
        %v4862 = vsub.f32 0.0, %v4782
        %v4863 = vsub.f32 0.0, %v4783
        %v4864 = vsub.f32 0.0, %v4784
        %v4865 = vsub.f32 0.0, %v4785
        %v4866 = vsub.f32 0.0, %v4786
        %v4867 = vsub.f32 0.0, %v4787
        %v4868 = vsub.f32 0.0, %v4788
        %v4869 = vsub.f32 0.0, %v4789
        %v4870 = vsub.f32 0.0, %v4790
        %v4871 = vsub.f32 0.0, %v4791
        %v4872 = vsub.f32 0.0, %v4792
        %v4873 = vsub.f32 0.0, %v4793
        %v4874 = vsub.f32 0.0, %v4794
        %v4875 = vsub.f32 0.0, %v4795
        %v4876 = vsub.f32 0.0, %v4796
        %v4877 = vsub.f32 0.0, %v4797
        %v4878 = vsub.f32 0.0, %v4798
        %v4879 = vsub.f32 0.0, %v4799
        %v4880 = vsub.f32 0.0, %v4800
        %v4881 = vsub.f32 0.0, %v4801
        %v4882 = vsub.f32 0.0, %v4802
        %v4883 = vsub.f32 0.0, %v4803
        %v4884 = vsub.f32 0.0, %v4804
        %v4885 = vsub.f32 0.0, %v4805
        %v4886 = vsub.f32 0.0, %v4806
        %v4887 = vsub.f32 0.0, %v4807
        %v4888 = vsub.f32 0.0, %v4808
        %v4889 = vsub.f32 0.0, %v4809
        %v4890 = vsub.f32 0.0, %v4810
        %v4891 = vsub.f32 0.0, %v4811
        %v4892 = vsub.f32 0.0, %v4812
        %v4893 = vsub.f32 0.0, %v4813
        %v4894 = vsub.f32 0.0, %v4814
        %v4895 = vsub.f32 0.0, %v4815
        %v4896 = vsub.f32 0.0, %v4816
        %v4897 = vsub.f32 0.0, %v4817
        %v4898 = vsub.f32 0.0, %v4818
        %v4899 = vsub.f32 0.0, %v4819
        %v4900 = vsub.f32 0.0, %v4820
        %v4901 = vsub.f32 0.0, %v4821
        %v4902 = vsub.f32 0.0, %v4822
        %v4903 = vsub.f32 0.0, %v4823
        %v4904 = vsub.f32 0.0, %v4824
        %v4905 = vsub.f32 0.0, %v4825
        %v4906 = vsub.f32 0.0, %v4826
        %v4907 = vsub.f32 0.0, %v4827
        %v4908 = vsub.f32 0.0, %v4828
        %v4909 = vsub.f32 0.0, %v4829
        %v4910 = vsub.f32 0.0, %v4830
        %v4911 = vsub.f32 0.0, %v4831
        %v4912 = vsub.f32 0.0, %v4832
        %v4913 = vsub.f32 0.0, %v4833
        %v4914 = vsub.f32 0.0, %v4834
        %v4915 = vsub.f32 0.0, %v4835
        %v4916 = vsub.f32 0.0, %v4836
        %v4917 = vsub.f32 0.0, %v4837
        %v4918 = vsub.f32 0.0, %v4838
        %v4919 = vsub.f32 0.0, %v4839
        %v4920 = vsub.f32 0.0, %v4840
        %v4921 = vsub.f32 0.0, %v4841
        %v4922 = vsub.f32 0.0, %v4842
        %v4923 = vsub.f32 0.0, %v4843
        %v4924 = vsub.f32 0.0, %v4844
        %v4925 = vsub.f32 0.0, %v4845
        %v4926 = vsub.f32 0.0, %v4846
        %v4927 = vsub.f32 0.0, %v4847
        %v4928 = vsub.f32 0.0, %v4848
        %v4929 = vsub.f32 0.0, %v4849
        %v4930 = vsub.f32 0.0, %v4850
        %v4931 = vsub.f32 0.0, %v4851
        %v4932 = vsub.f32 0.0, %v4852
        %v4933 = vsub.f32 0.0, %v4853
        %v4934 = vmul.f32 %v4854, 1.442695
        %v4935 = vpow.pop %v4934
        %v4936 = vmul.f32 %v4855, 1.442695
        %v4937 = vpow.pop %v4936
        %v4938 = vmul.f32 %v4856, 1.442695
        %v4939 = vpow.pop %v4938
        %v4940 = vmul.f32 %v4857, 1.442695
        %v4941 = vpow.pop %v4940
        %v4942 = vmul.f32 %v4858, 1.442695
        %v4943 = vpow.pop %v4942
        %v4944 = vmul.f32 %v4859, 1.442695
        %v4945 = vpow.pop %v4944
        %v4946 = vmul.f32 %v4860, 1.442695
        %v4947 = vpow.pop %v4946
        %v4948 = vmul.f32 %v4861, 1.442695
        %v4949 = vpow.pop %v4948
        %v4950 = vmul.f32 %v4862, 1.442695
        %v4951 = vpow.pop %v4950
        %v4952 = vmul.f32 %v4863, 1.442695
        %v4953 = vpow.pop %v4952
        %v4954 = vmul.f32 %v4864, 1.442695
        %v4955 = vpow.pop %v4954
        %v4956 = vmul.f32 %v4865, 1.442695
        %v4957 = vpow.pop %v4956
        %v4958 = vmul.f32 %v4866, 1.442695
        %v4959 = vpow.pop %v4958
        %v4960 = vmul.f32 %v4867, 1.442695
        %v4961 = vpow.pop %v4960
        %v4962 = vmul.f32 %v4868, 1.442695
        %v4963 = vpow.pop %v4962
        %v4964 = vmul.f32 %v4869, 1.442695
        %v4965 = vpow.pop %v4964
        %v4966 = vmul.f32 %v4870, 1.442695
        %v4967 = vpow.pop %v4966
        %v4968 = vmul.f32 %v4871, 1.442695
        %v4969 = vpow.pop %v4968
        %v4970 = vmul.f32 %v4872, 1.442695
        %v4971 = vpow.pop %v4970
        %v4972 = vmul.f32 %v4873, 1.442695
        %v4973 = vpow.pop %v4972
        %v4974 = vmul.f32 %v4874, 1.442695
        %v4975 = vpow.pop %v4974
        %v4976 = vmul.f32 %v4875, 1.442695
        %v4977 = vpow.pop %v4976
        %v4978 = vmul.f32 %v4876, 1.442695
        %v4979 = vpow.pop %v4978
        %v4980 = vmul.f32 %v4877, 1.442695
        %v4981 = vpow.pop %v4980
        %v4982 = vmul.f32 %v4878, 1.442695
        %v4983 = vpow.pop %v4982
        %v4984 = vmul.f32 %v4879, 1.442695
        %v4985 = vpow.pop %v4984
        %v4986 = vmul.f32 %v4880, 1.442695
        %v4987 = vpow.pop %v4986
        %v4988 = vmul.f32 %v4881, 1.442695
        %v4989 = vpow.pop %v4988
        %v4990 = vmul.f32 %v4882, 1.442695
        %v4991 = vpow.pop %v4990
        %v4992 = vmul.f32 %v4883, 1.442695
        %v4993 = vpow.pop %v4992
        %v4994 = vmul.f32 %v4884, 1.442695
        %v4995 = vpow.pop %v4994
        %v4996 = vmul.f32 %v4885, 1.442695
        %v4997 = vpow.pop %v4996
        %v4998 = vmul.f32 %v4886, 1.442695
        %v4999 = vpow.pop %v4998
        %v5000 = vmul.f32 %v4887, 1.442695
        %v5001 = vpow.pop %v5000
        %v5002 = vmul.f32 %v4888, 1.442695
        %v5003 = vpow.pop %v5002
        %v5004 = vmul.f32 %v4889, 1.442695
        %v5005 = vpow.pop %v5004
        %v5006 = vmul.f32 %v4890, 1.442695
        %v5007 = vpow.pop %v5006
        %v5008 = vmul.f32 %v4891, 1.442695
        %v5009 = vpow.pop %v5008
        %v5010 = vmul.f32 %v4892, 1.442695
        %v5011 = vpow.pop %v5010
        %v5012 = vmul.f32 %v4893, 1.442695
        %v5013 = vpow.pop %v5012
        %v5014 = vmul.f32 %v4894, 1.442695
        %v5015 = vpow.pop %v5014
        %v5016 = vmul.f32 %v4895, 1.442695
        %v5017 = vpow.pop %v5016
        %v5018 = vmul.f32 %v4896, 1.442695
        %v5019 = vpow.pop %v5018
        %v5020 = vmul.f32 %v4897, 1.442695
        %v5021 = vpow.pop %v5020
        %v5022 = vmul.f32 %v4898, 1.442695
        %v5023 = vpow.pop %v5022
        %v5024 = vmul.f32 %v4899, 1.442695
        %v5025 = vpow.pop %v5024
        %v5026 = vmul.f32 %v4900, 1.442695
        %v5027 = vpow.pop %v5026
        %v5028 = vmul.f32 %v4901, 1.442695
        %v5029 = vpow.pop %v5028
        %v5030 = vmul.f32 %v4902, 1.442695
        %v5031 = vpow.pop %v5030
        %v5032 = vmul.f32 %v4903, 1.442695
        %v5033 = vpow.pop %v5032
        %v5034 = vmul.f32 %v4904, 1.442695
        %v5035 = vpow.pop %v5034
        %v5036 = vmul.f32 %v4905, 1.442695
        %v5037 = vpow.pop %v5036
        %v5038 = vmul.f32 %v4906, 1.442695
        %v5039 = vpow.pop %v5038
        %v5040 = vmul.f32 %v4907, 1.442695
        %v5041 = vpow.pop %v5040
        %v5042 = vmul.f32 %v4908, 1.442695
        %v5043 = vpow.pop %v5042
        %v5044 = vmul.f32 %v4909, 1.442695
        %v5045 = vpow.pop %v5044
        %v5046 = vmul.f32 %v4910, 1.442695
        %v5047 = vpow.pop %v5046
        %v5048 = vmul.f32 %v4911, 1.442695
        %v5049 = vpow.pop %v5048
        %v5050 = vmul.f32 %v4912, 1.442695
        %v5051 = vpow.pop %v5050
        %v5052 = vmul.f32 %v4913, 1.442695
        %v5053 = vpow.pop %v5052
        %v5054 = vmul.f32 %v4914, 1.442695
        %v5055 = vpow.pop %v5054
        %v5056 = vmul.f32 %v4915, 1.442695
        %v5057 = vpow.pop %v5056
        %v5058 = vmul.f32 %v4916, 1.442695
        %v5059 = vpow.pop %v5058
        %v5060 = vmul.f32 %v4917, 1.442695
        %v5061 = vpow.pop %v5060
        %v5062 = vmul.f32 %v4918, 1.442695
        %v5063 = vpow.pop %v5062
        %v5064 = vmul.f32 %v4919, 1.442695
        %v5065 = vpow.pop %v5064
        %v5066 = vmul.f32 %v4920, 1.442695
        %v5067 = vpow.pop %v5066
        %v5068 = vmul.f32 %v4921, 1.442695
        %v5069 = vpow.pop %v5068
        %v5070 = vmul.f32 %v4922, 1.442695
        %v5071 = vpow.pop %v5070
        %v5072 = vmul.f32 %v4923, 1.442695
        %v5073 = vpow.pop %v5072
        %v5074 = vmul.f32 %v4924, 1.442695
        %v5075 = vpow.pop %v5074
        %v5076 = vmul.f32 %v4925, 1.442695
        %v5077 = vpow.pop %v5076
        %v5078 = vmul.f32 %v4926, 1.442695
        %v5079 = vpow.pop %v5078
        %v5080 = vmul.f32 %v4927, 1.442695
        %v5081 = vpow.pop %v5080
        %v5082 = vmul.f32 %v4928, 1.442695
        %v5083 = vpow.pop %v5082
        %v5084 = vmul.f32 %v4929, 1.442695
        %v5085 = vpow.pop %v5084
        %v5086 = vmul.f32 %v4930, 1.442695
        %v5087 = vpow.pop %v5086
        %v5088 = vmul.f32 %v4931, 1.442695
        %v5089 = vpow.pop %v5088
        %v5090 = vmul.f32 %v4932, 1.442695
        %v5091 = vpow.pop %v5090
        %v5092 = vmul.f32 %v4933, 1.442695
        %v5093 = vpow.pop %v5092
        %v5094 = vadd.f32 %v4935, 1.0
        %v5095 = vadd.f32 %v4937, 1.0
        %v5096 = vadd.f32 %v4939, 1.0
        %v5097 = vadd.f32 %v4941, 1.0
        %v5098 = vadd.f32 %v4943, 1.0
        %v5099 = vadd.f32 %v4945, 1.0
        %v5100 = vadd.f32 %v4947, 1.0
        %v5101 = vadd.f32 %v4949, 1.0
        %v5102 = vadd.f32 %v4951, 1.0
        %v5103 = vadd.f32 %v4953, 1.0
        %v5104 = vadd.f32 %v4955, 1.0
        %v5105 = vadd.f32 %v4957, 1.0
        %v5106 = vadd.f32 %v4959, 1.0
        %v5107 = vadd.f32 %v4961, 1.0
        %v5108 = vadd.f32 %v4963, 1.0
        %v5109 = vadd.f32 %v4965, 1.0
        %v5110 = vadd.f32 %v4967, 1.0
        %v5111 = vadd.f32 %v4969, 1.0
        %v5112 = vadd.f32 %v4971, 1.0
        %v5113 = vadd.f32 %v4973, 1.0
        %v5114 = vadd.f32 %v4975, 1.0
        %v5115 = vadd.f32 %v4977, 1.0
        %v5116 = vadd.f32 %v4979, 1.0
        %v5117 = vadd.f32 %v4981, 1.0
        %v5118 = vadd.f32 %v4983, 1.0
        %v5119 = vadd.f32 %v4985, 1.0
        %v5120 = vadd.f32 %v4987, 1.0
        %v5121 = vadd.f32 %v4989, 1.0
        %v5122 = vadd.f32 %v4991, 1.0
        %v5123 = vadd.f32 %v4993, 1.0
        %v5124 = vadd.f32 %v4995, 1.0
        %v5125 = vadd.f32 %v4997, 1.0
        %v5126 = vadd.f32 %v4999, 1.0
        %v5127 = vadd.f32 %v5001, 1.0
        %v5128 = vadd.f32 %v5003, 1.0
        %v5129 = vadd.f32 %v5005, 1.0
        %v5130 = vadd.f32 %v5007, 1.0
        %v5131 = vadd.f32 %v5009, 1.0
        %v5132 = vadd.f32 %v5011, 1.0
        %v5133 = vadd.f32 %v5013, 1.0
        %v5134 = vadd.f32 %v5015, 1.0
        %v5135 = vadd.f32 %v5017, 1.0
        %v5136 = vadd.f32 %v5019, 1.0
        %v5137 = vadd.f32 %v5021, 1.0
        %v5138 = vadd.f32 %v5023, 1.0
        %v5139 = vadd.f32 %v5025, 1.0
        %v5140 = vadd.f32 %v5027, 1.0
        %v5141 = vadd.f32 %v5029, 1.0
        %v5142 = vadd.f32 %v5031, 1.0
        %v5143 = vadd.f32 %v5033, 1.0
        %v5144 = vadd.f32 %v5035, 1.0
        %v5145 = vadd.f32 %v5037, 1.0
        %v5146 = vadd.f32 %v5039, 1.0
        %v5147 = vadd.f32 %v5041, 1.0
        %v5148 = vadd.f32 %v5043, 1.0
        %v5149 = vadd.f32 %v5045, 1.0
        %v5150 = vadd.f32 %v5047, 1.0
        %v5151 = vadd.f32 %v5049, 1.0
        %v5152 = vadd.f32 %v5051, 1.0
        %v5153 = vadd.f32 %v5053, 1.0
        %v5154 = vadd.f32 %v5055, 1.0
        %v5155 = vadd.f32 %v5057, 1.0
        %v5156 = vadd.f32 %v5059, 1.0
        %v5157 = vadd.f32 %v5061, 1.0
        %v5158 = vadd.f32 %v5063, 1.0
        %v5159 = vadd.f32 %v5065, 1.0
        %v5160 = vadd.f32 %v5067, 1.0
        %v5161 = vadd.f32 %v5069, 1.0
        %v5162 = vadd.f32 %v5071, 1.0
        %v5163 = vadd.f32 %v5073, 1.0
        %v5164 = vadd.f32 %v5075, 1.0
        %v5165 = vadd.f32 %v5077, 1.0
        %v5166 = vadd.f32 %v5079, 1.0
        %v5167 = vadd.f32 %v5081, 1.0
        %v5168 = vadd.f32 %v5083, 1.0
        %v5169 = vadd.f32 %v5085, 1.0
        %v5170 = vadd.f32 %v5087, 1.0
        %v5171 = vadd.f32 %v5089, 1.0
        %v5172 = vadd.f32 %v5091, 1.0
        %v5173 = vadd.f32 %v5093, 1.0
        %v5174 = vrcp.pop %v5094
        %v5175 = vrcp.pop %v5095
        %v5176 = vrcp.pop %v5096
        %v5177 = vrcp.pop %v5097
        %v5178 = vrcp.pop %v5098
        %v5179 = vrcp.pop %v5099
        %v5180 = vrcp.pop %v5100
        %v5181 = vrcp.pop %v5101
        %v5182 = vrcp.pop %v5102
        %v5183 = vrcp.pop %v5103
        %v5184 = vrcp.pop %v5104
        %v5185 = vrcp.pop %v5105
        %v5186 = vrcp.pop %v5106
        %v5187 = vrcp.pop %v5107
        %v5188 = vrcp.pop %v5108
        %v5189 = vrcp.pop %v5109
        %v5190 = vrcp.pop %v5110
        %v5191 = vrcp.pop %v5111
        %v5192 = vrcp.pop %v5112
        %v5193 = vrcp.pop %v5113
        %v5194 = vrcp.pop %v5114
        %v5195 = vrcp.pop %v5115
        %v5196 = vrcp.pop %v5116
        %v5197 = vrcp.pop %v5117
        %v5198 = vrcp.pop %v5118
        %v5199 = vrcp.pop %v5119
        %v5200 = vrcp.pop %v5120
        %v5201 = vrcp.pop %v5121
        %v5202 = vrcp.pop %v5122
        %v5203 = vrcp.pop %v5123
        %v5204 = vrcp.pop %v5124
        %v5205 = vrcp.pop %v5125
        %v5206 = vrcp.pop %v5126
        %v5207 = vrcp.pop %v5127
        %v5208 = vrcp.pop %v5128
        %v5209 = vrcp.pop %v5129
        %v5210 = vrcp.pop %v5130
        %v5211 = vrcp.pop %v5131
        %v5212 = vrcp.pop %v5132
        %v5213 = vrcp.pop %v5133
        %v5214 = vrcp.pop %v5134
        %v5215 = vrcp.pop %v5135
        %v5216 = vrcp.pop %v5136
        %v5217 = vrcp.pop %v5137
        %v5218 = vrcp.pop %v5138
        %v5219 = vrcp.pop %v5139
        %v5220 = vrcp.pop %v5140
        %v5221 = vrcp.pop %v5141
        %v5222 = vrcp.pop %v5142
        %v5223 = vrcp.pop %v5143
        %v5224 = vrcp.pop %v5144
        %v5225 = vrcp.pop %v5145
        %v5226 = vrcp.pop %v5146
        %v5227 = vrcp.pop %v5147
        %v5228 = vrcp.pop %v5148
        %v5229 = vrcp.pop %v5149
        %v5230 = vrcp.pop %v5150
        %v5231 = vrcp.pop %v5151
        %v5232 = vrcp.pop %v5152
        %v5233 = vrcp.pop %v5153
        %v5234 = vrcp.pop %v5154
        %v5235 = vrcp.pop %v5155
        %v5236 = vrcp.pop %v5156
        %v5237 = vrcp.pop %v5157
        %v5238 = vrcp.pop %v5158
        %v5239 = vrcp.pop %v5159
        %v5240 = vrcp.pop %v5160
        %v5241 = vrcp.pop %v5161
        %v5242 = vrcp.pop %v5162
        %v5243 = vrcp.pop %v5163
        %v5244 = vrcp.pop %v5164
        %v5245 = vrcp.pop %v5165
        %v5246 = vrcp.pop %v5166
        %v5247 = vrcp.pop %v5167
        %v5248 = vrcp.pop %v5168
        %v5249 = vrcp.pop %v5169
        %v5250 = vrcp.pop %v5170
        %v5251 = vrcp.pop %v5171
        %v5252 = vrcp.pop %v5172
        %v5253 = vrcp.pop %v5173
        %v5254 = vpack.c.bf16 %v5214, %v5174
        %v5255 = vpack.c.bf16 %v5215, %v5175
        %v5256 = vpack.c.bf16 %v5216, %v5176
        %v5257 = vpack.c.bf16 %v5217, %v5177
        %v5258 = vpack.c.bf16 %v5218, %v5178
        %v5259 = vpack.c.bf16 %v5219, %v5179
        %v5260 = vpack.c.bf16 %v5220, %v5180
        %v5261 = vpack.c.bf16 %v5221, %v5181
        %v5262 = vpack.c.bf16 %v5222, %v5182
        %v5263 = vpack.c.bf16 %v5223, %v5183
        %v5264 = vpack.c.bf16 %v5224, %v5184
        %v5265 = vpack.c.bf16 %v5225, %v5185
        %v5266 = vpack.c.bf16 %v5226, %v5186
        %v5267 = vpack.c.bf16 %v5227, %v5187
        %v5268 = vpack.c.bf16 %v5228, %v5188
        %v5269 = vpack.c.bf16 %v5229, %v5189
        %v5270 = vpack.c.bf16 %v5230, %v5190
        %v5271 = vpack.c.bf16 %v5231, %v5191
        %v5272 = vpack.c.bf16 %v5232, %v5192
        %v5273 = vpack.c.bf16 %v5233, %v5193
        %v5274 = vpack.c.bf16 %v5234, %v5194
        %v5275 = vpack.c.bf16 %v5235, %v5195
        %v5276 = vpack.c.bf16 %v5236, %v5196
        %v5277 = vpack.c.bf16 %v5237, %v5197
        %v5278 = vpack.c.bf16 %v5238, %v5198
        %v5279 = vpack.c.bf16 %v5239, %v5199
        %v5280 = vpack.c.bf16 %v5240, %v5200
        %v5281 = vpack.c.bf16 %v5241, %v5201
        %v5282 = vpack.c.bf16 %v5242, %v5202
        %v5283 = vpack.c.bf16 %v5243, %v5203
        %v5284 = vpack.c.bf16 %v5244, %v5204
        %v5285 = vpack.c.bf16 %v5245, %v5205
        %v5286 = vpack.c.bf16 %v5246, %v5206
        %v5287 = vpack.c.bf16 %v5247, %v5207
        %v5288 = vpack.c.bf16 %v5248, %v5208
        %v5289 = vpack.c.bf16 %v5249, %v5209
        %v5290 = vpack.c.bf16 %v5250, %v5210
        %v5291 = vpack.c.bf16 %v5251, %v5211
        %v5292 = vpack.c.bf16 %v5252, %v5212
        %v5293 = vpack.c.bf16 %v5253, %v5213
        %v5334 = vunpack.c.l.b16 %v5254
        %v5335 = vunpack.c.l.b16 %v5255
        %v5336 = vunpack.c.l.b16 %v5256
        %v5337 = vunpack.c.l.b16 %v5257
        %v5338 = vunpack.c.l.b16 %v5258
        %v5339 = vunpack.c.l.b16 %v5259
        %v5340 = vunpack.c.l.b16 %v5260
        %v5341 = vunpack.c.l.b16 %v5261
        %v5342 = vunpack.c.l.b16 %v5262
        %v5343 = vunpack.c.l.b16 %v5263
        %v5344 = vunpack.c.l.b16 %v5264
        %v5345 = vunpack.c.l.b16 %v5265
        %v5346 = vunpack.c.l.b16 %v5266
        %v5347 = vunpack.c.l.b16 %v5267
        %v5348 = vunpack.c.l.b16 %v5268
        %v5349 = vunpack.c.l.b16 %v5269
        %v5350 = vunpack.c.l.b16 %v5270
        %v5351 = vunpack.c.l.b16 %v5271
        %v5352 = vunpack.c.l.b16 %v5272
        %v5353 = vunpack.c.l.b16 %v5273
        %v5354 = vunpack.c.l.b16 %v5274
        %v5355 = vunpack.c.l.b16 %v5275
        %v5356 = vunpack.c.l.b16 %v5276
        %v5357 = vunpack.c.l.b16 %v5277
        %v5358 = vunpack.c.l.b16 %v5278
        %v5359 = vunpack.c.l.b16 %v5279
        %v5360 = vunpack.c.l.b16 %v5280
        %v5361 = vunpack.c.l.b16 %v5281
        %v5362 = vunpack.c.l.b16 %v5282
        %v5363 = vunpack.c.l.b16 %v5283
        %v5364 = vunpack.c.l.b16 %v5284
        %v5365 = vunpack.c.l.b16 %v5285
        %v5366 = vunpack.c.l.b16 %v5286
        %v5367 = vunpack.c.l.b16 %v5287
        %v5368 = vunpack.c.l.b16 %v5288
        %v5369 = vunpack.c.l.b16 %v5289
        %v5370 = vunpack.c.l.b16 %v5290
        %v5371 = vunpack.c.l.b16 %v5291
        %v5372 = vunpack.c.l.b16 %v5292
        %v5373 = vunpack.c.l.b16 %v5293
        %v5374 = vunpack.c.h.b16 %v5254
        %v5375 = vunpack.c.h.b16 %v5255
        %v5376 = vunpack.c.h.b16 %v5256
        %v5377 = vunpack.c.h.b16 %v5257
        %v5378 = vunpack.c.h.b16 %v5258
        %v5379 = vunpack.c.h.b16 %v5259
        %v5380 = vunpack.c.h.b16 %v5260
        %v5381 = vunpack.c.h.b16 %v5261
        %v5382 = vunpack.c.h.b16 %v5262
        %v5383 = vunpack.c.h.b16 %v5263
        %v5384 = vunpack.c.h.b16 %v5264
        %v5385 = vunpack.c.h.b16 %v5265
        %v5386 = vunpack.c.h.b16 %v5266
        %v5387 = vunpack.c.h.b16 %v5267
        %v5388 = vunpack.c.h.b16 %v5268
        %v5389 = vunpack.c.h.b16 %v5269
        %v5390 = vunpack.c.h.b16 %v5270
        %v5391 = vunpack.c.h.b16 %v5271
        %v5392 = vunpack.c.h.b16 %v5272
        %v5393 = vunpack.c.h.b16 %v5273
        %v5394 = vunpack.c.h.b16 %v5274
        %v5395 = vunpack.c.h.b16 %v5275
        %v5396 = vunpack.c.h.b16 %v5276
        %v5397 = vunpack.c.h.b16 %v5277
        %v5398 = vunpack.c.h.b16 %v5278
        %v5399 = vunpack.c.h.b16 %v5279
        %v5400 = vunpack.c.h.b16 %v5280
        %v5401 = vunpack.c.h.b16 %v5281
        %v5402 = vunpack.c.h.b16 %v5282
        %v5403 = vunpack.c.h.b16 %v5283
        %v5404 = vunpack.c.h.b16 %v5284
        %v5405 = vunpack.c.h.b16 %v5285
        %v5406 = vunpack.c.h.b16 %v5286
        %v5407 = vunpack.c.h.b16 %v5287
        %v5408 = vunpack.c.h.b16 %v5288
        %v5409 = vunpack.c.h.b16 %v5289
        %v5410 = vunpack.c.h.b16 %v5290
        %v5411 = vunpack.c.h.b16 %v5291
        %v5412 = vunpack.c.h.b16 %v5292
        %v5413 = vunpack.c.h.b16 %v5293
        %v5414 = vpack.c.b16 %v5335, %v5334
        %v5415 = vpack.c.b16 %v5337, %v5336
        %v5416 = vpack.c.b16 %v5339, %v5338
        %v5417 = vpack.c.b16 %v5341, %v5340
        %v5418 = vpack.c.b16 %v5343, %v5342
        %v5419 = vpack.c.b16 %v5345, %v5344
        %v5420 = vpack.c.b16 %v5347, %v5346
        %v5421 = vpack.c.b16 %v5349, %v5348
        %v5422 = vpack.c.b16 %v5351, %v5350
        %v5423 = vpack.c.b16 %v5353, %v5352
        %v5424 = vpack.c.b16 %v5355, %v5354
        %v5425 = vpack.c.b16 %v5357, %v5356
        %v5426 = vpack.c.b16 %v5359, %v5358
        %v5427 = vpack.c.b16 %v5361, %v5360
        %v5428 = vpack.c.b16 %v5363, %v5362
        %v5429 = vpack.c.b16 %v5365, %v5364
        %v5430 = vpack.c.b16 %v5367, %v5366
        %v5431 = vpack.c.b16 %v5369, %v5368
        %v5432 = vpack.c.b16 %v5371, %v5370
        %v5433 = vpack.c.b16 %v5373, %v5372
        %v5434 = vpack.c.b16 %v5375, %v5374
        %v5435 = vpack.c.b16 %v5377, %v5376
        %v5436 = vpack.c.b16 %v5379, %v5378
        %v5437 = vpack.c.b16 %v5381, %v5380
        %v5438 = vpack.c.b16 %v5383, %v5382
        %v5439 = vpack.c.b16 %v5385, %v5384
        %v5440 = vpack.c.b16 %v5387, %v5386
        %v5441 = vpack.c.b16 %v5389, %v5388
        %v5442 = vpack.c.b16 %v5391, %v5390
        %v5443 = vpack.c.b16 %v5393, %v5392
        %v5444 = vpack.c.b16 %v5395, %v5394
        %v5445 = vpack.c.b16 %v5397, %v5396
        %v5446 = vpack.c.b16 %v5399, %v5398
        %v5447 = vpack.c.b16 %v5401, %v5400
        %v5448 = vpack.c.b16 %v5403, %v5402
        %v5449 = vpack.c.b16 %v5405, %v5404
        %v5450 = vpack.c.b16 %v5407, %v5406
        %v5451 = vpack.c.b16 %v5409, %v5408
        %v5452 = vpack.c.b16 %v5411, %v5410
        %v5453 = vpack.c.b16 %v5413, %v5412
        %5494 = vst [vmem:[%s360] sm:$0xff] %v5414
        %5495 = vst [vmem:[%s360 + $0x8] sm:$0xff] %v5415
        %5496 = vst [vmem:[%s360 + $0x10] sm:$0xff] %v5416
        %5497 = vst [vmem:[%s360 + $0x18] sm:$0xff] %v5417
        %5498 = vst [vmem:[%s360 + $0x20] sm:$0xff] %v5418
        %5499 = vst [vmem:[%s360 + $0x28] sm:$0xff] %v5419
        %5500 = vst [vmem:[%s360 + $0x30] sm:$0xff] %v5420
        %5501 = vst [vmem:[%s360 + $0x38] sm:$0xff] %v5421
        %5502 = vst [vmem:[%s360 + $0x40] sm:$0xff] %v5422
        %5503 = vst [vmem:[%s360 + $0x48] sm:$0xff] %v5423
        %5504 = vst [vmem:[%s360 + $0x50] sm:$0xff] %v5424
        %5505 = vst [vmem:[%s360 + $0x58] sm:$0xff] %v5425
        %5506 = vst [vmem:[%s360 + $0x60] sm:$0xff] %v5426
        %5507 = vst [vmem:[%s360 + $0x68] sm:$0xff] %v5427
        %5508 = vst [vmem:[%s360 + $0x70] sm:$0xff] %v5428
        %5509 = vst [vmem:[%s360 + $0x78] sm:$0xff] %v5429
        %5510 = vst [vmem:[%s360 + $0x80] sm:$0xff] %v5430
        %5511 = vst [vmem:[%s360 + $0x88] sm:$0xff] %v5431
        %5512 = vst [vmem:[%s360 + $0x90] sm:$0xff] %v5432
        %5513 = vst [vmem:[%s360 + $0x98] sm:$0xff] %v5433
        %5514 = vst [vmem:[%s360 + $0xa0] sm:$0xff] %v5434
        %5515 = vst [vmem:[%s360 + $0xa8] sm:$0xff] %v5435
        %5516 = vst [vmem:[%s360 + $0xb0] sm:$0xff] %v5436
        %5517 = vst [vmem:[%s360 + $0xb8] sm:$0xff] %v5437
        %5518 = vst [vmem:[%s360 + $0xc0] sm:$0xff] %v5438
        %5519 = vst [vmem:[%s360 + $0xc8] sm:$0xff] %v5439
        %5520 = vst [vmem:[%s360 + $0xd0] sm:$0xff] %v5440
        %5521 = vst [vmem:[%s360 + $0xd8] sm:$0xff] %v5441
        %5522 = vst [vmem:[%s360 + $0xe0] sm:$0xff] %v5442
        %5523 = vst [vmem:[%s360 + $0xe8] sm:$0xff] %v5443
        %5524 = vst [vmem:[%s360 + $0xf0] sm:$0xff] %v5444
        %5525 = vst [vmem:[%s360 + $0xf8] sm:$0xff] %v5445
        %5526 = vst [vmem:[%s360 + $0x100] sm:$0xff] %v5446
        %5527 = vst [vmem:[%s360 + $0x108] sm:$0xff] %v5447
        %5528 = vst [vmem:[%s360 + $0x110] sm:$0xff] %v5448
        %5529 = vst [vmem:[%s360 + $0x118] sm:$0xff] %v5449
        %5530 = vst [vmem:[%s360 + $0x120] sm:$0xff] %v5450
        %5531 = vst [vmem:[%s360 + $0x128] sm:$0xff] %v5451
        %5532 = vst [vmem:[%s360 + $0x130] sm:$0xff] %v5452
        %5533 = vst [vmem:[%s360 + $0x138] sm:$0xff] %v5453
        %s5534 = sand.u32 %s168, 1
        %s5535 = sand.u32 %s168, 1
        %s5536 = smul.addr %s5535, 320
        %s5537 = scalar_lea.vmem [#allocation9], %s5536
        // Predicated region
        $region65: #{decoder_forward.1} parent=43 // pred_check
          %p5538 = pneg %p178
        $region66: #{decoder_forward.1} parent=43 // pred_check_branch
          %5540 = sbr.rel (%p5538) target = $region68
        $region67: #{decoder_forward.1} parent=43 // pred_region
          %s5541 = smul.u32 40, %s19
          %s5542 = smul.addr %s5541, 4
          %s5543 = scalar_lea.vmem %s6, %s5542
          // Predicated region
          $region69: #{decoder_forward.1} parent=67 // pred_check
            _
          $region70: #{decoder_forward.1} parent=67 // pred_check_branch
            %5545 = sbr.rel (0) target = $region72
          $region71: #{decoder_forward.1} parent=67 // pred_region
            // Predicated region
            $region73: #{decoder_forward.1} parent=71 // pred_check
              _
            $region74: #{decoder_forward.1} parent=71 // pred_check_branch
              %5547 = sbr.rel (0) target = $region76
            $region75: #{decoder_forward.1} parent=71 // pred_region
              loop: start=0, step=1, limit=1
              $region77: #{decoder_forward.1} parent=75 // loop_pre_header
                _
              $region78: #{decoder_forward.1} parent=75 // loop_header
                %s5549 = sphi 0, %s5553
                %p5550 = scmp.ge.s32.totalorder %s5549, 1
                %s5554 = sphi %s5537, %s5537
                %s5555 = sphi %s5543, %s5543
              $region79: #{decoder_forward.1} parent=75 // loop_header_branch
                %5552 = sbr.rel (%p5550) target = $region83
              $region80: #{decoder_forward.1} parent=75 // loop_body
                %v5556 = vld [vmem:[%s5554] sm:$0xff]
                %5557 = vst [vmem:[%s5555] sm:$0xff] %v5556
                %v5558 = vld [vmem:[%s5554 + $0x8] sm:$0xff]
                %5559 = vst [vmem:[%s5555 + $0x8] sm:$0xff] %v5558
                %v5560 = vld [vmem:[%s5554 + $0x10] sm:$0xff]
                %5561 = vst [vmem:[%s5555 + $0x10] sm:$0xff] %v5560
                %v5562 = vld [vmem:[%s5554 + $0x18] sm:$0xff]
                %5563 = vst [vmem:[%s5555 + $0x18] sm:$0xff] %v5562
                %v5564 = vld [vmem:[%s5554 + $0x20] sm:$0xff]
                %5565 = vst [vmem:[%s5555 + $0x20] sm:$0xff] %v5564
                %v5566 = vld [vmem:[%s5554 + $0x28] sm:$0xff]
                %5567 = vst [vmem:[%s5555 + $0x28] sm:$0xff] %v5566
                %v5568 = vld [vmem:[%s5554 + $0x30] sm:$0xff]
                %5569 = vst [vmem:[%s5555 + $0x30] sm:$0xff] %v5568
                %v5570 = vld [vmem:[%s5554 + $0x38] sm:$0xff]
                %5571 = vst [vmem:[%s5555 + $0x38] sm:$0xff] %v5570
                %v5572 = vld [vmem:[%s5554 + $0x40] sm:$0xff]
                %5573 = vst [vmem:[%s5555 + $0x40] sm:$0xff] %v5572
                %v5574 = vld [vmem:[%s5554 + $0x48] sm:$0xff]
                %5575 = vst [vmem:[%s5555 + $0x48] sm:$0xff] %v5574
                %v5576 = vld [vmem:[%s5554 + $0x50] sm:$0xff]
                %5577 = vst [vmem:[%s5555 + $0x50] sm:$0xff] %v5576
                %v5578 = vld [vmem:[%s5554 + $0x58] sm:$0xff]
                %5579 = vst [vmem:[%s5555 + $0x58] sm:$0xff] %v5578
                %v5580 = vld [vmem:[%s5554 + $0x60] sm:$0xff]
                %5581 = vst [vmem:[%s5555 + $0x60] sm:$0xff] %v5580
                %v5582 = vld [vmem:[%s5554 + $0x68] sm:$0xff]
                %5583 = vst [vmem:[%s5555 + $0x68] sm:$0xff] %v5582
                %v5584 = vld [vmem:[%s5554 + $0x70] sm:$0xff]
                %5585 = vst [vmem:[%s5555 + $0x70] sm:$0xff] %v5584
                %v5586 = vld [vmem:[%s5554 + $0x78] sm:$0xff]
                %5587 = vst [vmem:[%s5555 + $0x78] sm:$0xff] %v5586
                %v5588 = vld [vmem:[%s5554 + $0x80] sm:$0xff]
                %5589 = vst [vmem:[%s5555 + $0x80] sm:$0xff] %v5588
                %v5590 = vld [vmem:[%s5554 + $0x88] sm:$0xff]
                %5591 = vst [vmem:[%s5555 + $0x88] sm:$0xff] %v5590
                %v5592 = vld [vmem:[%s5554 + $0x90] sm:$0xff]
                %5593 = vst [vmem:[%s5555 + $0x90] sm:$0xff] %v5592
                %v5594 = vld [vmem:[%s5554 + $0x98] sm:$0xff]
                %5595 = vst [vmem:[%s5555 + $0x98] sm:$0xff] %v5594
                %v5596 = vld [vmem:[%s5554 + $0xa0] sm:$0xff]
                %5597 = vst [vmem:[%s5555 + $0x140] sm:$0xff] %v5596
                %v5598 = vld [vmem:[%s5554 + $0xa8] sm:$0xff]
                %5599 = vst [vmem:[%s5555 + $0x148] sm:$0xff] %v5598
                %v5600 = vld [vmem:[%s5554 + $0xb0] sm:$0xff]
                %5601 = vst [vmem:[%s5555 + $0x150] sm:$0xff] %v5600
                %v5602 = vld [vmem:[%s5554 + $0xb8] sm:$0xff]
                %5603 = vst [vmem:[%s5555 + $0x158] sm:$0xff] %v5602
                %v5604 = vld [vmem:[%s5554 + $0xc0] sm:$0xff]
                %5605 = vst [vmem:[%s5555 + $0x160] sm:$0xff] %v5604
                %v5606 = vld [vmem:[%s5554 + $0xc8] sm:$0xff]
                %5607 = vst [vmem:[%s5555 + $0x168] sm:$0xff] %v5606
                %v5608 = vld [vmem:[%s5554 + $0xd0] sm:$0xff]
                %5609 = vst [vmem:[%s5555 + $0x170] sm:$0xff] %v5608
                %v5610 = vld [vmem:[%s5554 + $0xd8] sm:$0xff]
                %5611 = vst [vmem:[%s5555 + $0x178] sm:$0xff] %v5610
                %v5612 = vld [vmem:[%s5554 + $0xe0] sm:$0xff]
                %5613 = vst [vmem:[%s5555 + $0x180] sm:$0xff] %v5612
                %v5614 = vld [vmem:[%s5554 + $0xe8] sm:$0xff]
                %5615 = vst [vmem:[%s5555 + $0x188] sm:$0xff] %v5614
                %v5616 = vld [vmem:[%s5554 + $0xf0] sm:$0xff]
                %5617 = vst [vmem:[%s5555 + $0x190] sm:$0xff] %v5616
                %v5618 = vld [vmem:[%s5554 + $0xf8] sm:$0xff]
                %5619 = vst [vmem:[%s5555 + $0x198] sm:$0xff] %v5618
                %v5620 = vld [vmem:[%s5554 + $0x100] sm:$0xff]
                %5621 = vst [vmem:[%s5555 + $0x1a0] sm:$0xff] %v5620
                %v5622 = vld [vmem:[%s5554 + $0x108] sm:$0xff]
                %5623 = vst [vmem:[%s5555 + $0x1a8] sm:$0xff] %v5622
                %v5624 = vld [vmem:[%s5554 + $0x110] sm:$0xff]
                %5625 = vst [vmem:[%s5555 + $0x1b0] sm:$0xff] %v5624
                %v5626 = vld [vmem:[%s5554 + $0x118] sm:$0xff]
                %5627 = vst [vmem:[%s5555 + $0x1b8] sm:$0xff] %v5626
                %v5628 = vld [vmem:[%s5554 + $0x120] sm:$0xff]
                %5629 = vst [vmem:[%s5555 + $0x1c0] sm:$0xff] %v5628
                %v5630 = vld [vmem:[%s5554 + $0x128] sm:$0xff]
                %5631 = vst [vmem:[%s5555 + $0x1c8] sm:$0xff] %v5630
                %v5632 = vld [vmem:[%s5554 + $0x130] sm:$0xff]
                %5633 = vst [vmem:[%s5555 + $0x1d0] sm:$0xff] %v5632
                %v5634 = vld [vmem:[%s5554 + $0x138] sm:$0xff]
                %5635 = vst [vmem:[%s5555 + $0x1d8] sm:$0xff] %v5634
              $region81: #{decoder_forward.1} parent=75 // loop_footer
                %s5553 = sadd.s32 1, %s5549
              $region82: #{decoder_forward.1} parent=75 // loop_footer_branch
                %5548 = sbr.rel target = $region78
              $region83: #{decoder_forward.1} parent=75 // loop_exit
                _
            $region76: #{decoder_forward.1} parent=71 // pred_fallthru
              _
            // Predicated region
            $region84: #{decoder_forward.1} parent=71 // pred_check
              _
            $region85: #{decoder_forward.1} parent=71 // pred_check_branch
              %5637 = sbr.rel target = $region87
            $region86: #{decoder_forward.1} parent=71 // pred_region
              _
            $region87: #{decoder_forward.1} parent=71 // pred_fallthru
              _
          $region72: #{decoder_forward.1} parent=67 // pred_fallthru
            _
          %5638 = vnop
        $region68: #{decoder_forward.1} parent=43 // pred_fallthru
          _
      $region44: #{decoder_forward.1} parent=5 // pred_fallthru
        _
      %p5639 = scmp.le.s32.totalorder 2, %s14
      // Predicated region
      $region88: #{decoder_forward.1} parent=5 // pred_check
        %p5640 = pneg %p5639
      $region89: #{decoder_forward.1} parent=5 // pred_check_branch
        %5642 = sbr.rel (%p5640) target = $region91
      $region90: #{decoder_forward.1} parent=5 // pred_region
        %s5643 = ssub.s32 %s14, 2
        // Predicated region
        $region92: #{decoder_forward.1} parent=90 // pred_check
          %p5644 = pneg %p184
        $region93: #{decoder_forward.1} parent=90 // pred_check_branch
          %5646 = sbr.rel (%p5644) target = $region95
        $region94: #{decoder_forward.1} parent=90 // pred_region
          %s5647 = sand.u32 %s169, 1
          %s5648 = sand.u32 %s169, 1
          %s5649 = smul.addr %s5648, 320
          %s5650 = scalar_lea.vmem [#allocation9], %s5649
        $region95: #{decoder_forward.1} parent=90 // pred_fallthru
          _
      $region91: #{decoder_forward.1} parent=5 // pred_fallthru
        _
    $region6: #{decoder_forward.1} parent=1 // loop_footer
      %s18 = sadd.s32 1, %s14
    $region7: #{decoder_forward.1} parent=1 // loop_footer_branch
      %13 = sbr.rel target = $region3
    $region8: #{decoder_forward.1} parent=1 // loop_exit
      _
    %5651 = vsyncpa [#allocation3], 1
    %s5652 = scalar_lea.sflag [#allocation3], 1
    %5653 = vsyncpa %s5652, 1
    %5654 = vsyncpa [#allocation5], 1

</llo_original>
